<compile_context>
chip_gen: v5e
topology: v5e:2x2
jax: 0.10.0
libtpu: 0.0.40
codegen_flags: <defaults>
</compile_context>

<pallas_src>
import jax
import jax.numpy as jnp
import numpy as np
from jax import lax
from jax.experimental import pallas as pl
from jax.experimental.pallas import tpu as pltpu

LN_EPS = 1e-5


def _choose_tile(batch, seqlen, cap=1024):
    """Largest multiple of seqlen dividing batch*seqlen under `cap`, else a divisor of seqlen."""
    total = batch * seqlen
    best = None
    m = 1
    while m * seqlen <= min(cap, total):
        if total % (m * seqlen) == 0:
            best = m * seqlen
        m += 1
    if best is not None:
        return best
    for cand in (1024, 512, 256, 128, 64, 32, 16, 8):
        if cand <= seqlen and seqlen % cand == 0:
            return cand
    return seqlen


def token_base_embedding(input_ids, emb_table, pos_table, tok_type_row,
                         gamma, beta, start_time=0, tm=None):
    """input_ids: (B, L) int32. Returns (B, L, D) in emb_table.dtype."""
    B, L = input_ids.shape
    V, D = emb_table.shape
    out_dtype = emb_table.dtype
    total = B * L

    if tm is None:
        tm = _choose_tile(B, L)
    assert total % tm == 0, "tile size must divide B*L"
    if tm % L == 0:
        tiled_bias = True           # tiles span whole sequences
        seq_tiles = 1
    else:
        assert L % tm == 0, "tm must divide L or be a multiple of L"
        tiled_bias = False          # tiles live inside one sequence
        seq_tiles = L // tm

    num_tiles = total // tm
    num_shards = 2 if (num_tiles % 2 == 0 and num_tiles >= 2) else 1
    tiles_per_shard = num_tiles // num_shards
    table_dtype = emb_table.dtype

    # ----------------------------- JAX glue ---------------------------------
    ids_flat = jnp.clip(input_ids.reshape(total).astype(jnp.int32), 0, V - 1)
    pos_slice = lax.dynamic_slice(pos_table, (start_time, 0), (L, D)).astype(jnp.float32)
    bias_L = pos_slice + tok_type_row.astype(jnp.float32)[None, :]        # (L, D)
    if tiled_bias:
        bias_op = jnp.tile(bias_L, (tm // L, 1))                          # (tm, D) resident
        bias_block = (tm, D)
    else:
        bias_op = bias_L                                                  # (L, D) resident
        bias_block = (L, D)
    gamma2 = gamma.reshape(1, D).astype(jnp.float32)
    beta2 = beta.reshape(1, D).astype(jnp.float32)

    # ------------------------------ kernel ----------------------------------
    def kernel(ids_ref,        # SMEM (B*L,) int32 ids   (scalar prefetch)
               emb_hbm,        # HBM  (V, D) table       (pl.ANY)
               bias_ref,       # VMEM resident pos+type bias
               gamma_ref,      # VMEM (1, D)
               beta_ref,       # VMEM (1, D)
               out_ref,        # VMEM (tm, D) output tile
               gbuf,           # VMEM (2, tm, D) gather double-buffer (table dtype)
               sem):           # DMA sems (2,)
        s = pl.program_id(0)                 # shard (parallel across cores)
        t = pl.program_id(1)                 # tile within shard (sequential)
        g = s * tiles_per_shard + t          # global tile index
        slot = t % 2

        def issue(tile_idx, slot_idx):
            base = tile_idx * tm

            def issue_row(j):
                row = ids_ref[base + j]
                pltpu.make_async_copy(
                    emb_hbm.at[pl.ds(row, 1), :],
                    gbuf.at[slot_idx, pl.ds(j, 1), :],
                    sem.at[slot_idx],
                ).start()

            if tm <= 64:
                for j in range(tm):          # small tiles: full static unroll
                    issue_row(j)
            else:
                def body(j, carry):
                    issue_row(j)
                    return carry
                lax.fori_loop(0, tm, body, 0, unroll=8)

        # prologue: each shard primes its own first tile (deadlock-free on megacore)
        @pl.when(t == 0)
        def _():
            issue(g, slot)

        # prefetch next tile of this shard into the other slot before computing
        @pl.when(t + 1 < tiles_per_shard)
        def _():
            issue(g + 1, (t + 1) % 2)

        # one aggregate wait for all tm row copies of the current slot
        pltpu.make_async_copy(gbuf.at[slot], gbuf.at[slot], sem.at[slot]).wait()

        # --- add fused (position + token-type) bias, all math in f32 --------
        x = gbuf[slot].astype(jnp.float32)
        if tiled_bias:
            x = x + bias_ref[...]
        else:
            off = pl.multiple_of((g % seq_tiles) * tm, tm)
            x = x + bias_ref[pl.ds(off, tm), :]

        # TODO(synk): s_token_bias path (input_ids == 49410) not exercised —
        # bias is None in the default config; embeddings_act is 'none'.

        # --- LayerNorm over hidden dim (two-pass variance) ------------------
        inv_d = jnp.float32(1.0 / D)
        mean = jnp.sum(x, axis=-1, keepdims=True) * inv_d
        xc = x - mean
        var = jnp.sum(xc * xc, axis=-1, keepdims=True) * inv_d
        inv = lax.rsqrt(var + jnp.float32(LN_EPS))
        out = xc * inv * gamma_ref[...] + beta_ref[...]

        # dropout: identity at inference
        out_ref[...] = out.astype(out_ref.dtype)

    # ---------------------------- pallas_call -------------------------------
    grid_spec = pltpu.PrefetchScalarGridSpec(
        num_scalar_prefetch=1,
        grid=(num_shards, tiles_per_shard),
        in_specs=[
            pl.BlockSpec(memory_space=pl.ANY),                       # table in HBM
            pl.BlockSpec(bias_block, lambda s, t, ids: (0, 0)),      # resident bias
            pl.BlockSpec((1, D), lambda s, t, ids: (0, 0)),          # gamma (resident)
            pl.BlockSpec((1, D), lambda s, t, ids: (0, 0)),          # beta  (resident)
        ],
        out_specs=pl.BlockSpec(
            (tm, D), lambda s, t, ids: (s * tiles_per_shard + t, 0)),
        scratch_shapes=[
            pltpu.VMEM((2, tm, D), table_dtype),                     # gather double-buffer
            pltpu.SemaphoreType.DMA((2,)),                           # one sem per slot
        ],
    )

    itemsize_in = jnp.dtype(table_dtype).itemsize
    itemsize_out = jnp.dtype(out_dtype).itemsize
    cost = pl.CostEstimate(
        flops=10 * total * D,
        transcendentals=total,
        bytes_accessed=(total * D * (itemsize_in + itemsize_out)
                        + bias_op.size * 4 + 2 * D * 4 + total * 4),
    )

    out_flat = pl.pallas_call(
        kernel,
        out_shape=jax.ShapeDtypeStruct((total, D), out_dtype),
        grid_spec=grid_spec,
        compiler_params=pltpu.CompilerParams(
            dimension_semantics=("parallel", "arbitrary"),
        ),
        cost_estimate=cost,
    )(ids_flat, emb_table, bias_op, gamma2, beta2)

    return out_flat.reshape(B, L, D)


def reference(input_ids, emb_table, pos_table, tok_type_row, gamma, beta,
              start_time=0):
    emb = emb_table[input_ids]                                       # (B, L, D)
    L = input_ids.shape[1]
    emb = emb + pos_table[start_time:start_time + L][None]
    emb = emb + tok_type_row[None, None, :]
    mean = emb.mean(-1, keepdims=True)
    var = ((emb - mean) ** 2).mean(-1, keepdims=True)
    return (emb - mean) / jnp.sqrt(var + LN_EPS) * gamma + beta


if __name__ == "__main__":
    # small, module-consistent shapes
    B, L = 4, 32          # batch, sequence length
    V, D = 512, 128       # vocab_size, dim
    MAX_POS = 64          # POSITION_MAX_LEN
    TYPE_V = 2            # TYPE_VOCAB_SIZE

    key = jax.random.PRNGKey(0)
    k_ids, k_emb, k_pos, k_type, k_gamma, k_beta = jax.random.split(key, 6)

    input_ids = jax.random.randint(k_ids, (B, L), 0, V, dtype=jnp.int32)
    emb_table = 0.02 * jax.random.normal(k_emb, (V, D), dtype=jnp.float32)
    pos_table = 0.02 * jax.random.normal(k_pos, (MAX_POS, D), dtype=jnp.float32)
    type_table = 0.02 * jax.random.normal(k_type, (TYPE_V, D), dtype=jnp.float32)
    gamma = 1.0 + 0.01 * jax.random.normal(k_gamma, (D,), dtype=jnp.float32)
    beta = 0.01 * jax.random.normal(k_beta, (D,), dtype=jnp.float32)

    tok_type_row = type_table[0]   # forward uses embeddings_token_type.weight[0]
    ref = reference(input_ids, emb_table, pos_table, tok_type_row, gamma, beta)

    # 1) sequence-spanning tiles: 4 tiles -> 2 shards x 2 tiles, exercises the
    #    cross-step gather prefetch + aggregate-wait path.
    out1 = jax.block_until_ready(
        token_base_embedding(input_ids, emb_table, pos_table, tok_type_row,
                             gamma, beta, start_time=0, tm=32))
    np.testing.assert_allclose(np.asarray(out1), np.asarray(ref),
                               rtol=1e-5, atol=2e-5)

    # 2) sub-sequence tiles (tm < L): exercises the resident (L, D) bias with
    #    an in-kernel dynamic slice.
    out2 = jax.block_until_ready(
        token_base_embedding(input_ids, emb_table, pos_table, tok_type_row,
                             gamma, beta, start_time=0, tm=8))
    np.testing.assert_allclose(np.asarray(out2), np.asarray(ref),
                               rtol=1e-5, atol=2e-5)

    # 3) default (auto) tile choice: one big tile, fori_loop DMA-issue path.
    out3 = jax.block_until_ready(
        token_base_embedding(input_ids, emb_table, pos_table, tok_type_row,
                             gamma, beta, start_time=0))
    np.testing.assert_allclose(np.asarray(out3), np.asarray(ref),
                               rtol=1e-5, atol=2e-5)

    print("KERNEL_OK")
</pallas_src>

<mosaic_0001>
module attributes {stable_mosaic.version = 11 : i64} {
  func.func @kernel(%arg0: i32, %arg1: i32, %arg2: memref<128xi32, #tpu.memory_space<smem>>, %arg3: memref<512x128xf32, #tpu.memory_space<any>>, %arg4: memref<32x128xf32, #tpu.memory_space<vmem>>, %arg5: memref<1x128xf32, #tpu.memory_space<vmem>>, %arg6: memref<1x128xf32, #tpu.memory_space<vmem>>, %arg7: memref<32x128xf32, #tpu.memory_space<vmem>>, %arg8: memref<2x32x128xf32, #tpu.memory_space<vmem>>, %arg9: memref<2x!tpu.dma_semaphore, #tpu.memory_space<semaphore_mem>>) attributes {dimension_semantics = [#tpu.dimension_semantics<parallel>, #tpu.dimension_semantics<arbitrary>], iteration_bounds = array<i64: 2, 2>, scalar_prefetch = 1 : i64, scratch_operands = 2 : i64, tpu.core_type = #tpu.core_type<tc>, window_params = [{}, {pipeline_mode = #tpu.pipeline_mode<synchronous>, transform_indices = @transform_1, window_bounds = array<i64: 32, 128>}, {pipeline_mode = #tpu.pipeline_mode<synchronous>, transform_indices = @transform_2, window_bounds = array<i64: 1, 128>}, {pipeline_mode = #tpu.pipeline_mode<synchronous>, transform_indices = @transform_3, window_bounds = array<i64: 1, 128>}, {transform_indices = @transform_4, window_bounds = array<i64: 32, 128>}]} {
    %c2_i32 = arith.constant 2 : i32
    %0 = arith.muli %arg0, %c2_i32 : i32
    %1 = arith.addi %0, %arg1 : i32
    %c2_i32_0 = arith.constant 2 : i32
    %c0_i32 = arith.constant 0 : i32
    %2 = arith.cmpi eq, %c2_i32_0, %c0_i32 : i32
    %c1_i32 = arith.constant 1 : i32
    %3 = arith.select %2, %c1_i32, %c2_i32_0 : i32
    %4 = arith.remsi %arg1, %3 : i32
    %c0_i32_1 = arith.constant 0 : i32
    %5 = arith.cmpi ne, %4, %c0_i32_1 : i32
    %c0_i32_2 = arith.constant 0 : i32
    %6 = arith.cmpi slt, %4, %c0_i32_2 : i32
    %c0_i32_3 = arith.constant 0 : i32
    %7 = arith.cmpi slt, %3, %c0_i32_3 : i32
    %8 = arith.xori %6, %7 : i1
    %9 = arith.andi %8, %5 : i1
    %10 = arith.addi %4, %3 : i32
    %11 = arith.select %9, %10, %4 : i32
    %c0_i32_4 = arith.constant 0 : i32
    %12 = arith.cmpi eq, %arg1, %c0_i32_4 : i32
    %13 = arith.extui %12 : i1 to i32
    %c0_i32_5 = arith.constant 0 : i32
    %14 = arith.cmpi ne, %13, %c0_i32_5 : i32
    scf.if %14 {
      %c32_i32 = arith.constant 32 : i32
      %53 = arith.muli %1, %c32_i32 : i32
      %c0_i32_26 = arith.constant 0 : i32
      %54 = arith.addi %53, %c0_i32_26 : i32
      %55 = arith.index_cast %54 : i32 to index
      %56 = memref.load %arg2[%55] : memref<128xi32, #tpu.memory_space<smem>>
      %c0_i32_27 = arith.constant 0 : i32
      %57 = tpu.memref_slice %arg3[%56, %c0_i32_27] : memref<512x128xf32, #tpu.memory_space<any>> -> memref<1x128xf32, #tpu.memory_space<any>>
      %c0_i32_28 = arith.constant 0 : i32
      %c0_i32_29 = arith.constant 0 : i32
      %58 = tpu.memref_slice %arg8[%11, %c0_i32_28, %c0_i32_29] : memref<2x32x128xf32, #tpu.memory_space<vmem>> -> memref<1x1x128xf32, #tpu.memory_space<vmem>>
      %59 = tpu.memref_squeeze %58 : memref<1x1x128xf32, #tpu.memory_space<vmem>> -> memref<1x128xf32, #tpu.memory_space<vmem>>
      %60 = tpu.memref_slice %arg9[%11] : memref<2x!tpu.dma_semaphore, #tpu.memory_space<semaphore_mem>> -> memref<1x!tpu.dma_semaphore, #tpu.memory_space<semaphore_mem>>
      %61 = tpu.memref_squeeze %60 : memref<1x!tpu.dma_semaphore, #tpu.memory_space<semaphore_mem>> -> memref<!tpu.dma_semaphore, #tpu.memory_space<semaphore_mem>>
      tpu.enqueue_dma source(%57 : memref<1x128xf32, #tpu.memory_space<any>>) target(%59 : memref<1x128xf32, #tpu.memory_space<vmem>>) target_semaphore(%61 : memref<!tpu.dma_semaphore, #tpu.memory_space<semaphore_mem>>)
      %c1_i32_30 = arith.constant 1 : i32
      %62 = arith.addi %53, %c1_i32_30 : i32
      %63 = arith.index_cast %62 : i32 to index
      %64 = memref.load %arg2[%63] : memref<128xi32, #tpu.memory_space<smem>>
      %c0_i32_31 = arith.constant 0 : i32
      %65 = tpu.memref_slice %arg3[%64, %c0_i32_31] : memref<512x128xf32, #tpu.memory_space<any>> -> memref<1x128xf32, #tpu.memory_space<any>>
      %c1_i32_32 = arith.constant 1 : i32
      %c0_i32_33 = arith.constant 0 : i32
      %66 = tpu.memref_slice %arg8[%11, %c1_i32_32, %c0_i32_33] : memref<2x32x128xf32, #tpu.memory_space<vmem>> -> memref<1x1x128xf32, #tpu.memory_space<vmem>>
      %67 = tpu.memref_squeeze %66 : memref<1x1x128xf32, #tpu.memory_space<vmem>> -> memref<1x128xf32, #tpu.memory_space<vmem>>
      %68 = tpu.memref_slice %arg9[%11] : memref<2x!tpu.dma_semaphore, #tpu.memory_space<semaphore_mem>> -> memref<1x!tpu.dma_semaphore, #tpu.memory_space<semaphore_mem>>
      %69 = tpu.memref_squeeze %68 : memref<1x!tpu.dma_semaphore, #tpu.memory_space<semaphore_mem>> -> memref<!tpu.dma_semaphore, #tpu.memory_space<semaphore_mem>>
      tpu.enqueue_dma source(%65 : memref<1x128xf32, #tpu.memory_space<any>>) target(%67 : memref<1x128xf32, #tpu.memory_space<vmem>>) target_semaphore(%69 : memref<!tpu.dma_semaphore, #tpu.memory_space<semaphore_mem>>)
      %c2_i32_34 = arith.constant 2 : i32
      %70 = arith.addi %53, %c2_i32_34 : i32
      %71 = arith.index_cast %70 : i32 to index
      %72 = memref.load %arg2[%71] : memref<128xi32, #tpu.memory_space<smem>>
      %c0_i32_35 = arith.constant 0 : i32
      %73 = tpu.memref_slice %arg3[%72, %c0_i32_35] : memref<512x128xf32, #tpu.memory_space<any>> -> memref<1x128xf32, #tpu.memory_space<any>>
      %c2_i32_36 = arith.constant 2 : i32
      %c0_i32_37 = arith.constant 0 : i32
      %74 = tpu.memref_slice %arg8[%11, %c2_i32_36, %c0_i32_37] : memref<2x32x128xf32, #tpu.memory_space<vmem>> -> memref<1x1x128xf32, #tpu.memory_space<vmem>>
      %75 = tpu.memref_squeeze %74 : memref<1x1x128xf32, #tpu.memory_space<vmem>> -> memref<1x128xf32, #tpu.memory_space<vmem>>
      %76 = tpu.memref_slice %arg9[%11] : memref<2x!tpu.dma_semaphore, #tpu.memory_space<semaphore_mem>> -> memref<1x!tpu.dma_semaphore, #tpu.memory_space<semaphore_mem>>
      %77 = tpu.memref_squeeze %76 : memref<1x!tpu.dma_semaphore, #tpu.memory_space<semaphore_mem>> -> memref<!tpu.dma_semaphore, #tpu.memory_space<semaphore_mem>>
      tpu.enqueue_dma source(%73 : memref<1x128xf32, #tpu.memory_space<any>>) target(%75 : memref<1x128xf32, #tpu.memory_space<vmem>>) target_semaphore(%77 : memref<!tpu.dma_semaphore, #tpu.memory_space<semaphore_mem>>)
      %c3_i32 = arith.constant 3 : i32
      %78 = arith.addi %53, %c3_i32 : i32
      %79 = arith.index_cast %78 : i32 to index
      %80 = memref.load %arg2[%79] : memref<128xi32, #tpu.memory_space<smem>>
      %c0_i32_38 = arith.constant 0 : i32
      %81 = tpu.memref_slice %arg3[%80, %c0_i32_38] : memref<512x128xf32, #tpu.memory_space<any>> -> memref<1x128xf32, #tpu.memory_space<any>>
      %c3_i32_39 = arith.constant 3 : i32
      %c0_i32_40 = arith.constant 0 : i32
      %82 = tpu.memref_slice %arg8[%11, %c3_i32_39, %c0_i32_40] : memref<2x32x128xf32, #tpu.memory_space<vmem>> -> memref<1x1x128xf32, #tpu.memory_space<vmem>>
      %83 = tpu.memref_squeeze %82 : memref<1x1x128xf32, #tpu.memory_space<vmem>> -> memref<1x128xf32, #tpu.memory_space<vmem>>
      %84 = tpu.memref_slice %arg9[%11] : memref<2x!tpu.dma_semaphore, #tpu.memory_space<semaphore_mem>> -> memref<1x!tpu.dma_semaphore, #tpu.memory_space<semaphore_mem>>
      %85 = tpu.memref_squeeze %84 : memref<1x!tpu.dma_semaphore, #tpu.memory_space<semaphore_mem>> -> memref<!tpu.dma_semaphore, #tpu.memory_space<semaphore_mem>>
      tpu.enqueue_dma source(%81 : memref<1x128xf32, #tpu.memory_space<any>>) target(%83 : memref<1x128xf32, #tpu.memory_space<vmem>>) target_semaphore(%85 : memref<!tpu.dma_semaphore, #tpu.memory_space<semaphore_mem>>)
      %c4_i32 = arith.constant 4 : i32
      %86 = arith.addi %53, %c4_i32 : i32
      %87 = arith.index_cast %86 : i32 to index
      %88 = memref.load %arg2[%87] : memref<128xi32, #tpu.memory_space<smem>>
      %c0_i32_41 = arith.constant 0 : i32
      %89 = tpu.memref_slice %arg3[%88, %c0_i32_41] : memref<512x128xf32, #tpu.memory_space<any>> -> memref<1x128xf32, #tpu.memory_space<any>>
      %c4_i32_42 = arith.constant 4 : i32
      %c0_i32_43 = arith.constant 0 : i32
      %90 = tpu.memref_slice %arg8[%11, %c4_i32_42, %c0_i32_43] : memref<2x32x128xf32, #tpu.memory_space<vmem>> -> memref<1x1x128xf32, #tpu.memory_space<vmem>>
      %91 = tpu.memref_squeeze %90 : memref<1x1x128xf32, #tpu.memory_space<vmem>> -> memref<1x128xf32, #tpu.memory_space<vmem>>
      %92 = tpu.memref_slice %arg9[%11] : memref<2x!tpu.dma_semaphore, #tpu.memory_space<semaphore_mem>> -> memref<1x!tpu.dma_semaphore, #tpu.memory_space<semaphore_mem>>
      %93 = tpu.memref_squeeze %92 : memref<1x!tpu.dma_semaphore, #tpu.memory_space<semaphore_mem>> -> memref<!tpu.dma_semaphore, #tpu.memory_space<semaphore_mem>>
      tpu.enqueue_dma source(%89 : memref<1x128xf32, #tpu.memory_space<any>>) target(%91 : memref<1x128xf32, #tpu.memory_space<vmem>>) target_semaphore(%93 : memref<!tpu.dma_semaphore, #tpu.memory_space<semaphore_mem>>)
      %c5_i32 = arith.constant 5 : i32
      %94 = arith.addi %53, %c5_i32 : i32
      %95 = arith.index_cast %94 : i32 to index
      %96 = memref.load %arg2[%95] : memref<128xi32, #tpu.memory_space<smem>>
      %c0_i32_44 = arith.constant 0 : i32
      %97 = tpu.memref_slice %arg3[%96, %c0_i32_44] : memref<512x128xf32, #tpu.memory_space<any>> -> memref<1x128xf32, #tpu.memory_space<any>>
      %c5_i32_45 = arith.constant 5 : i32
      %c0_i32_46 = arith.constant 0 : i32
      %98 = tpu.memref_slice %arg8[%11, %c5_i32_45, %c0_i32_46] : memref<2x32x128xf32, #tpu.memory_space<vmem>> -> memref<1x1x128xf32, #tpu.memory_space<vmem>>
      %99 = tpu.memref_squeeze %98 : memref<1x1x128xf32, #tpu.memory_space<vmem>> -> memref<1x128xf32, #tpu.memory_space<vmem>>
      %100 = tpu.memref_slice %arg9[%11] : memref<2x!tpu.dma_semaphore, #tpu.memory_space<semaphore_mem>> -> memref<1x!tpu.dma_semaphore, #tpu.memory_space<semaphore_mem>>
      %101 = tpu.memref_squeeze %100 : memref<1x!tpu.dma_semaphore, #tpu.memory_space<semaphore_mem>> -> memref<!tpu.dma_semaphore, #tpu.memory_space<semaphore_mem>>
      tpu.enqueue_dma source(%97 : memref<1x128xf32, #tpu.memory_space<any>>) target(%99 : memref<1x128xf32, #tpu.memory_space<vmem>>) target_semaphore(%101 : memref<!tpu.dma_semaphore, #tpu.memory_space<semaphore_mem>>)
      %c6_i32 = arith.constant 6 : i32
      %102 = arith.addi %53, %c6_i32 : i32
      %103 = arith.index_cast %102 : i32 to index
      %104 = memref.load %arg2[%103] : memref<128xi32, #tpu.memory_space<smem>>
      %c0_i32_47 = arith.constant 0 : i32
      %105 = tpu.memref_slice %arg3[%104, %c0_i32_47] : memref<512x128xf32, #tpu.memory_space<any>> -> memref<1x128xf32, #tpu.memory_space<any>>
      %c6_i32_48 = arith.constant 6 : i32
      %c0_i32_49 = arith.constant 0 : i32
      %106 = tpu.memref_slice %arg8[%11, %c6_i32_48, %c0_i32_49] : memref<2x32x128xf32, #tpu.memory_space<vmem>> -> memref<1x1x128xf32, #tpu.memory_space<vmem>>
      %107 = tpu.memref_squeeze %106 : memref<1x1x128xf32, #tpu.memory_space<vmem>> -> memref<1x128xf32, #tpu.memory_space<vmem>>
      %108 = tpu.memref_slice %arg9[%11] : memref<2x!tpu.dma_semaphore, #tpu.memory_space<semaphore_mem>> -> memref<1x!tpu.dma_semaphore, #tpu.memory_space<semaphore_mem>>
      %109 = tpu.memref_squeeze %108 : memref<1x!tpu.dma_semaphore, #tpu.memory_space<semaphore_mem>> -> memref<!tpu.dma_semaphore, #tpu.memory_space<semaphore_mem>>
      tpu.enqueue_dma source(%105 : memref<1x128xf32, #tpu.memory_space<any>>) target(%107 : memref<1x128xf32, #tpu.memory_space<vmem>>) target_semaphore(%109 : memref<!tpu.dma_semaphore, #tpu.memory_space<semaphore_mem>>)
      %c7_i32 = arith.constant 7 : i32
      %110 = arith.addi %53, %c7_i32 : i32
      %111 = arith.index_cast %110 : i32 to index
      %112 = memref.load %arg2[%111] : memref<128xi32, #tpu.memory_space<smem>>
      %c0_i32_50 = arith.constant 0 : i32
      %113 = tpu.memref_slice %arg3[%112, %c0_i32_50] : memref<512x128xf32, #tpu.memory_space<any>> -> memref<1x128xf32, #tpu.memory_space<any>>
      %c7_i32_51 = arith.constant 7 : i32
      %c0_i32_52 = arith.constant 0 : i32
      %114 = tpu.memref_slice %arg8[%11, %c7_i32_51, %c0_i32_52] : memref<2x32x128xf32, #tpu.memory_space<vmem>> -> memref<1x1x128xf32, #tpu.memory_space<vmem>>
      %115 = tpu.memref_squeeze %114 : memref<1x1x128xf32, #tpu.memory_space<vmem>> -> memref<1x128xf32, #tpu.memory_space<vmem>>
      %116 = tpu.memref_slice %arg9[%11] : memref<2x!tpu.dma_semaphore, #tpu.memory_space<semaphore_mem>> -> memref<1x!tpu.dma_semaphore, #tpu.memory_space<semaphore_mem>>
      %117 = tpu.memref_squeeze %116 : memref<1x!tpu.dma_semaphore, #tpu.memory_space<semaphore_mem>> -> memref<!tpu.dma_semaphore, #tpu.memory_space<semaphore_mem>>
      tpu.enqueue_dma source(%113 : memref<1x128xf32, #tpu.memory_space<any>>) target(%115 : memref<1x128xf32, #tpu.memory_space<vmem>>) target_semaphore(%117 : memref<!tpu.dma_semaphore, #tpu.memory_space<semaphore_mem>>)
      %c8_i32 = arith.constant 8 : i32
      %118 = arith.addi %53, %c8_i32 : i32
      %119 = arith.index_cast %118 : i32 to index
      %120 = memref.load %arg2[%119] : memref<128xi32, #tpu.memory_space<smem>>
      %c0_i32_53 = arith.constant 0 : i32
      %121 = tpu.memref_slice %arg3[%120, %c0_i32_53] : memref<512x128xf32, #tpu.memory_space<any>> -> memref<1x128xf32, #tpu.memory_space<any>>
      %c8_i32_54 = arith.constant 8 : i32
      %c0_i32_55 = arith.constant 0 : i32
      %122 = tpu.memref_slice %arg8[%11, %c8_i32_54, %c0_i32_55] : memref<2x32x128xf32, #tpu.memory_space<vmem>> -> memref<1x1x128xf32, #tpu.memory_space<vmem>>
      %123 = tpu.memref_squeeze %122 : memref<1x1x128xf32, #tpu.memory_space<vmem>> -> memref<1x128xf32, #tpu.memory_space<vmem>>
      %124 = tpu.memref_slice %arg9[%11] : memref<2x!tpu.dma_semaphore, #tpu.memory_space<semaphore_mem>> -> memref<1x!tpu.dma_semaphore, #tpu.memory_space<semaphore_mem>>
      %125 = tpu.memref_squeeze %124 : memref<1x!tpu.dma_semaphore, #tpu.memory_space<semaphore_mem>> -> memref<!tpu.dma_semaphore, #tpu.memory_space<semaphore_mem>>
      tpu.enqueue_dma source(%121 : memref<1x128xf32, #tpu.memory_space<any>>) target(%123 : memref<1x128xf32, #tpu.memory_space<vmem>>) target_semaphore(%125 : memref<!tpu.dma_semaphore, #tpu.memory_space<semaphore_mem>>)
      %c9_i32 = arith.constant 9 : i32
      %126 = arith.addi %53, %c9_i32 : i32
      %127 = arith.index_cast %126 : i32 to index
      %128 = memref.load %arg2[%127] : memref<128xi32, #tpu.memory_space<smem>>
      %c0_i32_56 = arith.constant 0 : i32
      %129 = tpu.memref_slice %arg3[%128, %c0_i32_56] : memref<512x128xf32, #tpu.memory_space<any>> -> memref<1x128xf32, #tpu.memory_space<any>>
      %c9_i32_57 = arith.constant 9 : i32
      %c0_i32_58 = arith.constant 0 : i32
      %130 = tpu.memref_slice %arg8[%11, %c9_i32_57, %c0_i32_58] : memref<2x32x128xf32, #tpu.memory_space<vmem>> -> memref<1x1x128xf32, #tpu.memory_space<vmem>>
      %131 = tpu.memref_squeeze %130 : memref<1x1x128xf32, #tpu.memory_space<vmem>> -> memref<1x128xf32, #tpu.memory_space<vmem>>
      %132 = tpu.memref_slice %arg9[%11] : memref<2x!tpu.dma_semaphore, #tpu.memory_space<semaphore_mem>> -> memref<1x!tpu.dma_semaphore, #tpu.memory_space<semaphore_mem>>
      %133 = tpu.memref_squeeze %132 : memref<1x!tpu.dma_semaphore, #tpu.memory_space<semaphore_mem>> -> memref<!tpu.dma_semaphore, #tpu.memory_space<semaphore_mem>>
      tpu.enqueue_dma source(%129 : memref<1x128xf32, #tpu.memory_space<any>>) target(%131 : memref<1x128xf32, #tpu.memory_space<vmem>>) target_semaphore(%133 : memref<!tpu.dma_semaphore, #tpu.memory_space<semaphore_mem>>)
      %c10_i32 = arith.constant 10 : i32
      %134 = arith.addi %53, %c10_i32 : i32
      %135 = arith.index_cast %134 : i32 to index
      %136 = memref.load %arg2[%135] : memref<128xi32, #tpu.memory_space<smem>>
      %c0_i32_59 = arith.constant 0 : i32
      %137 = tpu.memref_slice %arg3[%136, %c0_i32_59] : memref<512x128xf32, #tpu.memory_space<any>> -> memref<1x128xf32, #tpu.memory_space<any>>
      %c10_i32_60 = arith.constant 10 : i32
      %c0_i32_61 = arith.constant 0 : i32
      %138 = tpu.memref_slice %arg8[%11, %c10_i32_60, %c0_i32_61] : memref<2x32x128xf32, #tpu.memory_space<vmem>> -> memref<1x1x128xf32, #tpu.memory_space<vmem>>
      %139 = tpu.memref_squeeze %138 : memref<1x1x128xf32, #tpu.memory_space<vmem>> -> memref<1x128xf32, #tpu.memory_space<vmem>>
      %140 = tpu.memref_slice %arg9[%11] : memref<2x!tpu.dma_semaphore, #tpu.memory_space<semaphore_mem>> -> memref<1x!tpu.dma_semaphore, #tpu.memory_space<semaphore_mem>>
      %141 = tpu.memref_squeeze %140 : memref<1x!tpu.dma_semaphore, #tpu.memory_space<semaphore_mem>> -> memref<!tpu.dma_semaphore, #tpu.memory_space<semaphore_mem>>
      tpu.enqueue_dma source(%137 : memref<1x128xf32, #tpu.memory_space<any>>) target(%139 : memref<1x128xf32, #tpu.memory_space<vmem>>) target_semaphore(%141 : memref<!tpu.dma_semaphore, #tpu.memory_space<semaphore_mem>>)
      %c11_i32 = arith.constant 11 : i32
      %142 = arith.addi %53, %c11_i32 : i32
      %143 = arith.index_cast %142 : i32 to index
      %144 = memref.load %arg2[%143] : memref<128xi32, #tpu.memory_space<smem>>
      %c0_i32_62 = arith.constant 0 : i32
      %145 = tpu.memref_slice %arg3[%144, %c0_i32_62] : memref<512x128xf32, #tpu.memory_space<any>> -> memref<1x128xf32, #tpu.memory_space<any>>
      %c11_i32_63 = arith.constant 11 : i32
      %c0_i32_64 = arith.constant 0 : i32
      %146 = tpu.memref_slice %arg8[%11, %c11_i32_63, %c0_i32_64] : memref<2x32x128xf32, #tpu.memory_space<vmem>> -> memref<1x1x128xf32, #tpu.memory_space<vmem>>
      %147 = tpu.memref_squeeze %146 : memref<1x1x128xf32, #tpu.memory_space<vmem>> -> memref<1x128xf32, #tpu.memory_space<vmem>>
      %148 = tpu.memref_slice %arg9[%11] : memref<2x!tpu.dma_semaphore, #tpu.memory_space<semaphore_mem>> -> memref<1x!tpu.dma_semaphore, #tpu.memory_space<semaphore_mem>>
      %149 = tpu.memref_squeeze %148 : memref<1x!tpu.dma_semaphore, #tpu.memory_space<semaphore_mem>> -> memref<!tpu.dma_semaphore, #tpu.memory_space<semaphore_mem>>
      tpu.enqueue_dma source(%145 : memref<1x128xf32, #tpu.memory_space<any>>) target(%147 : memref<1x128xf32, #tpu.memory_space<vmem>>) target_semaphore(%149 : memref<!tpu.dma_semaphore, #tpu.memory_space<semaphore_mem>>)
      %c12_i32 = arith.constant 12 : i32
      %150 = arith.addi %53, %c12_i32 : i32
      %151 = arith.index_cast %150 : i32 to index
      %152 = memref.load %arg2[%151] : memref<128xi32, #tpu.memory_space<smem>>
      %c0_i32_65 = arith.constant 0 : i32
      %153 = tpu.memref_slice %arg3[%152, %c0_i32_65] : memref<512x128xf32, #tpu.memory_space<any>> -> memref<1x128xf32, #tpu.memory_space<any>>
      %c12_i32_66 = arith.constant 12 : i32
      %c0_i32_67 = arith.constant 0 : i32
      %154 = tpu.memref_slice %arg8[%11, %c12_i32_66, %c0_i32_67] : memref<2x32x128xf32, #tpu.memory_space<vmem>> -> memref<1x1x128xf32, #tpu.memory_space<vmem>>
      %155 = tpu.memref_squeeze %154 : memref<1x1x128xf32, #tpu.memory_space<vmem>> -> memref<1x128xf32, #tpu.memory_space<vmem>>
      %156 = tpu.memref_slice %arg9[%11] : memref<2x!tpu.dma_semaphore, #tpu.memory_space<semaphore_mem>> -> memref<1x!tpu.dma_semaphore, #tpu.memory_space<semaphore_mem>>
      %157 = tpu.memref_squeeze %156 : memref<1x!tpu.dma_semaphore, #tpu.memory_space<semaphore_mem>> -> memref<!tpu.dma_semaphore, #tpu.memory_space<semaphore_mem>>
      tpu.enqueue_dma source(%153 : memref<1x128xf32, #tpu.memory_space<any>>) target(%155 : memref<1x128xf32, #tpu.memory_space<vmem>>) target_semaphore(%157 : memref<!tpu.dma_semaphore, #tpu.memory_space<semaphore_mem>>)
      %c13_i32 = arith.constant 13 : i32
      %158 = arith.addi %53, %c13_i32 : i32
      %159 = arith.index_cast %158 : i32 to index
      %160 = memref.load %arg2[%159] : memref<128xi32, #tpu.memory_space<smem>>
      %c0_i32_68 = arith.constant 0 : i32
      %161 = tpu.memref_slice %arg3[%160, %c0_i32_68] : memref<512x128xf32, #tpu.memory_space<any>> -> memref<1x128xf32, #tpu.memory_space<any>>
      %c13_i32_69 = arith.constant 13 : i32
      %c0_i32_70 = arith.constant 0 : i32
      %162 = tpu.memref_slice %arg8[%11, %c13_i32_69, %c0_i32_70] : memref<2x32x128xf32, #tpu.memory_space<vmem>> -> memref<1x1x128xf32, #tpu.memory_space<vmem>>
      %163 = tpu.memref_squeeze %162 : memref<1x1x128xf32, #tpu.memory_space<vmem>> -> memref<1x128xf32, #tpu.memory_space<vmem>>
      %164 = tpu.memref_slice %arg9[%11] : memref<2x!tpu.dma_semaphore, #tpu.memory_space<semaphore_mem>> -> memref<1x!tpu.dma_semaphore, #tpu.memory_space<semaphore_mem>>
      %165 = tpu.memref_squeeze %164 : memref<1x!tpu.dma_semaphore, #tpu.memory_space<semaphore_mem>> -> memref<!tpu.dma_semaphore, #tpu.memory_space<semaphore_mem>>
      tpu.enqueue_dma source(%161 : memref<1x128xf32, #tpu.memory_space<any>>) target(%163 : memref<1x128xf32, #tpu.memory_space<vmem>>) target_semaphore(%165 : memref<!tpu.dma_semaphore, #tpu.memory_space<semaphore_mem>>)
      %c14_i32 = arith.constant 14 : i32
      %166 = arith.addi %53, %c14_i32 : i32
      %167 = arith.index_cast %166 : i32 to index
      %168 = memref.load %arg2[%167] : memref<128xi32, #tpu.memory_space<smem>>
      %c0_i32_71 = arith.constant 0 : i32
      %169 = tpu.memref_slice %arg3[%168, %c0_i32_71] : memref<512x128xf32, #tpu.memory_space<any>> -> memref<1x128xf32, #tpu.memory_space<any>>
      %c14_i32_72 = arith.constant 14 : i32
      %c0_i32_73 = arith.constant 0 : i32
      %170 = tpu.memref_slice %arg8[%11, %c14_i32_72, %c0_i32_73] : memref<2x32x128xf32, #tpu.memory_space<vmem>> -> memref<1x1x128xf32, #tpu.memory_space<vmem>>
      %171 = tpu.memref_squeeze %170 : memref<1x1x128xf32, #tpu.memory_space<vmem>> -> memref<1x128xf32, #tpu.memory_space<vmem>>
      %172 = tpu.memref_slice %arg9[%11] : memref<2x!tpu.dma_semaphore, #tpu.memory_space<semaphore_mem>> -> memref<1x!tpu.dma_semaphore, #tpu.memory_space<semaphore_mem>>
      %173 = tpu.memref_squeeze %172 : memref<1x!tpu.dma_semaphore, #tpu.memory_space<semaphore_mem>> -> memref<!tpu.dma_semaphore, #tpu.memory_space<semaphore_mem>>
      tpu.enqueue_dma source(%169 : memref<1x128xf32, #tpu.memory_space<any>>) target(%171 : memref<1x128xf32, #tpu.memory_space<vmem>>) target_semaphore(%173 : memref<!tpu.dma_semaphore, #tpu.memory_space<semaphore_mem>>)
      %c15_i32 = arith.constant 15 : i32
      %174 = arith.addi %53, %c15_i32 : i32
      %175 = arith.index_cast %174 : i32 to index
      %176 = memref.load %arg2[%175] : memref<128xi32, #tpu.memory_space<smem>>
      %c0_i32_74 = arith.constant 0 : i32
      %177 = tpu.memref_slice %arg3[%176, %c0_i32_74] : memref<512x128xf32, #tpu.memory_space<any>> -> memref<1x128xf32, #tpu.memory_space<any>>
      %c15_i32_75 = arith.constant 15 : i32
      %c0_i32_76 = arith.constant 0 : i32
      %178 = tpu.memref_slice %arg8[%11, %c15_i32_75, %c0_i32_76] : memref<2x32x128xf32, #tpu.memory_space<vmem>> -> memref<1x1x128xf32, #tpu.memory_space<vmem>>
      %179 = tpu.memref_squeeze %178 : memref<1x1x128xf32, #tpu.memory_space<vmem>> -> memref<1x128xf32, #tpu.memory_space<vmem>>
      %180 = tpu.memref_slice %arg9[%11] : memref<2x!tpu.dma_semaphore, #tpu.memory_space<semaphore_mem>> -> memref<1x!tpu.dma_semaphore, #tpu.memory_space<semaphore_mem>>
      %181 = tpu.memref_squeeze %180 : memref<1x!tpu.dma_semaphore, #tpu.memory_space<semaphore_mem>> -> memref<!tpu.dma_semaphore, #tpu.memory_space<semaphore_mem>>
      tpu.enqueue_dma source(%177 : memref<1x128xf32, #tpu.memory_space<any>>) target(%179 : memref<1x128xf32, #tpu.memory_space<vmem>>) target_semaphore(%181 : memref<!tpu.dma_semaphore, #tpu.memory_space<semaphore_mem>>)
      %c16_i32 = arith.constant 16 : i32
      %182 = arith.addi %53, %c16_i32 : i32
      %183 = arith.index_cast %182 : i32 to index
      %184 = memref.load %arg2[%183] : memref<128xi32, #tpu.memory_space<smem>>
      %c0_i32_77 = arith.constant 0 : i32
      %185 = tpu.memref_slice %arg3[%184, %c0_i32_77] : memref<512x128xf32, #tpu.memory_space<any>> -> memref<1x128xf32, #tpu.memory_space<any>>
      %c16_i32_78 = arith.constant 16 : i32
      %c0_i32_79 = arith.constant 0 : i32
      %186 = tpu.memref_slice %arg8[%11, %c16_i32_78, %c0_i32_79] : memref<2x32x128xf32, #tpu.memory_space<vmem>> -> memref<1x1x128xf32, #tpu.memory_space<vmem>>
      %187 = tpu.memref_squeeze %186 : memref<1x1x128xf32, #tpu.memory_space<vmem>> -> memref<1x128xf32, #tpu.memory_space<vmem>>
      %188 = tpu.memref_slice %arg9[%11] : memref<2x!tpu.dma_semaphore, #tpu.memory_space<semaphore_mem>> -> memref<1x!tpu.dma_semaphore, #tpu.memory_space<semaphore_mem>>
      %189 = tpu.memref_squeeze %188 : memref<1x!tpu.dma_semaphore, #tpu.memory_space<semaphore_mem>> -> memref<!tpu.dma_semaphore, #tpu.memory_space<semaphore_mem>>
      tpu.enqueue_dma source(%185 : memref<1x128xf32, #tpu.memory_space<any>>) target(%187 : memref<1x128xf32, #tpu.memory_space<vmem>>) target_semaphore(%189 : memref<!tpu.dma_semaphore, #tpu.memory_space<semaphore_mem>>)
      %c17_i32 = arith.constant 17 : i32
      %190 = arith.addi %53, %c17_i32 : i32
      %191 = arith.index_cast %190 : i32 to index
      %192 = memref.load %arg2[%191] : memref<128xi32, #tpu.memory_space<smem>>
      %c0_i32_80 = arith.constant 0 : i32
      %193 = tpu.memref_slice %arg3[%192, %c0_i32_80] : memref<512x128xf32, #tpu.memory_space<any>> -> memref<1x128xf32, #tpu.memory_space<any>>
      %c17_i32_81 = arith.constant 17 : i32
      %c0_i32_82 = arith.constant 0 : i32
      %194 = tpu.memref_slice %arg8[%11, %c17_i32_81, %c0_i32_82] : memref<2x32x128xf32, #tpu.memory_space<vmem>> -> memref<1x1x128xf32, #tpu.memory_space<vmem>>
      %195 = tpu.memref_squeeze %194 : memref<1x1x128xf32, #tpu.memory_space<vmem>> -> memref<1x128xf32, #tpu.memory_space<vmem>>
      %196 = tpu.memref_slice %arg9[%11] : memref<2x!tpu.dma_semaphore, #tpu.memory_space<semaphore_mem>> -> memref<1x!tpu.dma_semaphore, #tpu.memory_space<semaphore_mem>>
      %197 = tpu.memref_squeeze %196 : memref<1x!tpu.dma_semaphore, #tpu.memory_space<semaphore_mem>> -> memref<!tpu.dma_semaphore, #tpu.memory_space<semaphore_mem>>
      tpu.enqueue_dma source(%193 : memref<1x128xf32, #tpu.memory_space<any>>) target(%195 : memref<1x128xf32, #tpu.memory_space<vmem>>) target_semaphore(%197 : memref<!tpu.dma_semaphore, #tpu.memory_space<semaphore_mem>>)
      %c18_i32 = arith.constant 18 : i32
      %198 = arith.addi %53, %c18_i32 : i32
      %199 = arith.index_cast %198 : i32 to index
      %200 = memref.load %arg2[%199] : memref<128xi32, #tpu.memory_space<smem>>
      %c0_i32_83 = arith.constant 0 : i32
      %201 = tpu.memref_slice %arg3[%200, %c0_i32_83] : memref<512x128xf32, #tpu.memory_space<any>> -> memref<1x128xf32, #tpu.memory_space<any>>
      %c18_i32_84 = arith.constant 18 : i32
      %c0_i32_85 = arith.constant 0 : i32
      %202 = tpu.memref_slice %arg8[%11, %c18_i32_84, %c0_i32_85] : memref<2x32x128xf32, #tpu.memory_space<vmem>> -> memref<1x1x128xf32, #tpu.memory_space<vmem>>
      %203 = tpu.memref_squeeze %202 : memref<1x1x128xf32, #tpu.memory_space<vmem>> -> memref<1x128xf32, #tpu.memory_space<vmem>>
      %204 = tpu.memref_slice %arg9[%11] : memref<2x!tpu.dma_semaphore, #tpu.memory_space<semaphore_mem>> -> memref<1x!tpu.dma_semaphore, #tpu.memory_space<semaphore_mem>>
      %205 = tpu.memref_squeeze %204 : memref<1x!tpu.dma_semaphore, #tpu.memory_space<semaphore_mem>> -> memref<!tpu.dma_semaphore, #tpu.memory_space<semaphore_mem>>
      tpu.enqueue_dma source(%201 : memref<1x128xf32, #tpu.memory_space<any>>) target(%203 : memref<1x128xf32, #tpu.memory_space<vmem>>) target_semaphore(%205 : memref<!tpu.dma_semaphore, #tpu.memory_space<semaphore_mem>>)
      %c19_i32 = arith.constant 19 : i32
      %206 = arith.addi %53, %c19_i32 : i32
      %207 = arith.index_cast %206 : i32 to index
      %208 = memref.load %arg2[%207] : memref<128xi32, #tpu.memory_space<smem>>
      %c0_i32_86 = arith.constant 0 : i32
      %209 = tpu.memref_slice %arg3[%208, %c0_i32_86] : memref<512x128xf32, #tpu.memory_space<any>> -> memref<1x128xf32, #tpu.memory_space<any>>
      %c19_i32_87 = arith.constant 19 : i32
      %c0_i32_88 = arith.constant 0 : i32
      %210 = tpu.memref_slice %arg8[%11, %c19_i32_87, %c0_i32_88] : memref<2x32x128xf32, #tpu.memory_space<vmem>> -> memref<1x1x128xf32, #tpu.memory_space<vmem>>
      %211 = tpu.memref_squeeze %210 : memref<1x1x128xf32, #tpu.memory_space<vmem>> -> memref<1x128xf32, #tpu.memory_space<vmem>>
      %212 = tpu.memref_slice %arg9[%11] : memref<2x!tpu.dma_semaphore, #tpu.memory_space<semaphore_mem>> -> memref<1x!tpu.dma_semaphore, #tpu.memory_space<semaphore_mem>>
      %213 = tpu.memref_squeeze %212 : memref<1x!tpu.dma_semaphore, #tpu.memory_space<semaphore_mem>> -> memref<!tpu.dma_semaphore, #tpu.memory_space<semaphore_mem>>
      tpu.enqueue_dma source(%209 : memref<1x128xf32, #tpu.memory_space<any>>) target(%211 : memref<1x128xf32, #tpu.memory_space<vmem>>) target_semaphore(%213 : memref<!tpu.dma_semaphore, #tpu.memory_space<semaphore_mem>>)
      %c20_i32 = arith.constant 20 : i32
      %214 = arith.addi %53, %c20_i32 : i32
      %215 = arith.index_cast %214 : i32 to index
      %216 = memref.load %arg2[%215] : memref<128xi32, #tpu.memory_space<smem>>
      %c0_i32_89 = arith.constant 0 : i32
      %217 = tpu.memref_slice %arg3[%216, %c0_i32_89] : memref<512x128xf32, #tpu.memory_space<any>> -> memref<1x128xf32, #tpu.memory_space<any>>
      %c20_i32_90 = arith.constant 20 : i32
      %c0_i32_91 = arith.constant 0 : i32
      %218 = tpu.memref_slice %arg8[%11, %c20_i32_90, %c0_i32_91] : memref<2x32x128xf32, #tpu.memory_space<vmem>> -> memref<1x1x128xf32, #tpu.memory_space<vmem>>
      %219 = tpu.memref_squeeze %218 : memref<1x1x128xf32, #tpu.memory_space<vmem>> -> memref<1x128xf32, #tpu.memory_space<vmem>>
      %220 = tpu.memref_slice %arg9[%11] : memref<2x!tpu.dma_semaphore, #tpu.memory_space<semaphore_mem>> -> memref<1x!tpu.dma_semaphore, #tpu.memory_space<semaphore_mem>>
      %221 = tpu.memref_squeeze %220 : memref<1x!tpu.dma_semaphore, #tpu.memory_space<semaphore_mem>> -> memref<!tpu.dma_semaphore, #tpu.memory_space<semaphore_mem>>
      tpu.enqueue_dma source(%217 : memref<1x128xf32, #tpu.memory_space<any>>) target(%219 : memref<1x128xf32, #tpu.memory_space<vmem>>) target_semaphore(%221 : memref<!tpu.dma_semaphore, #tpu.memory_space<semaphore_mem>>)
      %c21_i32 = arith.constant 21 : i32
      %222 = arith.addi %53, %c21_i32 : i32
      %223 = arith.index_cast %222 : i32 to index
      %224 = memref.load %arg2[%223] : memref<128xi32, #tpu.memory_space<smem>>
      %c0_i32_92 = arith.constant 0 : i32
      %225 = tpu.memref_slice %arg3[%224, %c0_i32_92] : memref<512x128xf32, #tpu.memory_space<any>> -> memref<1x128xf32, #tpu.memory_space<any>>
      %c21_i32_93 = arith.constant 21 : i32
      %c0_i32_94 = arith.constant 0 : i32
      %226 = tpu.memref_slice %arg8[%11, %c21_i32_93, %c0_i32_94] : memref<2x32x128xf32, #tpu.memory_space<vmem>> -> memref<1x1x128xf32, #tpu.memory_space<vmem>>
      %227 = tpu.memref_squeeze %226 : memref<1x1x128xf32, #tpu.memory_space<vmem>> -> memref<1x128xf32, #tpu.memory_space<vmem>>
      %228 = tpu.memref_slice %arg9[%11] : memref<2x!tpu.dma_semaphore, #tpu.memory_space<semaphore_mem>> -> memref<1x!tpu.dma_semaphore, #tpu.memory_space<semaphore_mem>>
      %229 = tpu.memref_squeeze %228 : memref<1x!tpu.dma_semaphore, #tpu.memory_space<semaphore_mem>> -> memref<!tpu.dma_semaphore, #tpu.memory_space<semaphore_mem>>
      tpu.enqueue_dma source(%225 : memref<1x128xf32, #tpu.memory_space<any>>) target(%227 : memref<1x128xf32, #tpu.memory_space<vmem>>) target_semaphore(%229 : memref<!tpu.dma_semaphore, #tpu.memory_space<semaphore_mem>>)
      %c22_i32 = arith.constant 22 : i32
      %230 = arith.addi %53, %c22_i32 : i32
      %231 = arith.index_cast %230 : i32 to index
      %232 = memref.load %arg2[%231] : memref<128xi32, #tpu.memory_space<smem>>
      %c0_i32_95 = arith.constant 0 : i32
      %233 = tpu.memref_slice %arg3[%232, %c0_i32_95] : memref<512x128xf32, #tpu.memory_space<any>> -> memref<1x128xf32, #tpu.memory_space<any>>
      %c22_i32_96 = arith.constant 22 : i32
      %c0_i32_97 = arith.constant 0 : i32
      %234 = tpu.memref_slice %arg8[%11, %c22_i32_96, %c0_i32_97] : memref<2x32x128xf32, #tpu.memory_space<vmem>> -> memref<1x1x128xf32, #tpu.memory_space<vmem>>
      %235 = tpu.memref_squeeze %234 : memref<1x1x128xf32, #tpu.memory_space<vmem>> -> memref<1x128xf32, #tpu.memory_space<vmem>>
      %236 = tpu.memref_slice %arg9[%11] : memref<2x!tpu.dma_semaphore, #tpu.memory_space<semaphore_mem>> -> memref<1x!tpu.dma_semaphore, #tpu.memory_space<semaphore_mem>>
      %237 = tpu.memref_squeeze %236 : memref<1x!tpu.dma_semaphore, #tpu.memory_space<semaphore_mem>> -> memref<!tpu.dma_semaphore, #tpu.memory_space<semaphore_mem>>
      tpu.enqueue_dma source(%233 : memref<1x128xf32, #tpu.memory_space<any>>) target(%235 : memref<1x128xf32, #tpu.memory_space<vmem>>) target_semaphore(%237 : memref<!tpu.dma_semaphore, #tpu.memory_space<semaphore_mem>>)
      %c23_i32 = arith.constant 23 : i32
      %238 = arith.addi %53, %c23_i32 : i32
      %239 = arith.index_cast %238 : i32 to index
      %240 = memref.load %arg2[%239] : memref<128xi32, #tpu.memory_space<smem>>
      %c0_i32_98 = arith.constant 0 : i32
      %241 = tpu.memref_slice %arg3[%240, %c0_i32_98] : memref<512x128xf32, #tpu.memory_space<any>> -> memref<1x128xf32, #tpu.memory_space<any>>
      %c23_i32_99 = arith.constant 23 : i32
      %c0_i32_100 = arith.constant 0 : i32
      %242 = tpu.memref_slice %arg8[%11, %c23_i32_99, %c0_i32_100] : memref<2x32x128xf32, #tpu.memory_space<vmem>> -> memref<1x1x128xf32, #tpu.memory_space<vmem>>
      %243 = tpu.memref_squeeze %242 : memref<1x1x128xf32, #tpu.memory_space<vmem>> -> memref<1x128xf32, #tpu.memory_space<vmem>>
      %244 = tpu.memref_slice %arg9[%11] : memref<2x!tpu.dma_semaphore, #tpu.memory_space<semaphore_mem>> -> memref<1x!tpu.dma_semaphore, #tpu.memory_space<semaphore_mem>>
      %245 = tpu.memref_squeeze %244 : memref<1x!tpu.dma_semaphore, #tpu.memory_space<semaphore_mem>> -> memref<!tpu.dma_semaphore, #tpu.memory_space<semaphore_mem>>
      tpu.enqueue_dma source(%241 : memref<1x128xf32, #tpu.memory_space<any>>) target(%243 : memref<1x128xf32, #tpu.memory_space<vmem>>) target_semaphore(%245 : memref<!tpu.dma_semaphore, #tpu.memory_space<semaphore_mem>>)
      %c24_i32 = arith.constant 24 : i32
      %246 = arith.addi %53, %c24_i32 : i32
      %247 = arith.index_cast %246 : i32 to index
      %248 = memref.load %arg2[%247] : memref<128xi32, #tpu.memory_space<smem>>
      %c0_i32_101 = arith.constant 0 : i32
      %249 = tpu.memref_slice %arg3[%248, %c0_i32_101] : memref<512x128xf32, #tpu.memory_space<any>> -> memref<1x128xf32, #tpu.memory_space<any>>
      %c24_i32_102 = arith.constant 24 : i32
      %c0_i32_103 = arith.constant 0 : i32
      %250 = tpu.memref_slice %arg8[%11, %c24_i32_102, %c0_i32_103] : memref<2x32x128xf32, #tpu.memory_space<vmem>> -> memref<1x1x128xf32, #tpu.memory_space<vmem>>
      %251 = tpu.memref_squeeze %250 : memref<1x1x128xf32, #tpu.memory_space<vmem>> -> memref<1x128xf32, #tpu.memory_space<vmem>>
      %252 = tpu.memref_slice %arg9[%11] : memref<2x!tpu.dma_semaphore, #tpu.memory_space<semaphore_mem>> -> memref<1x!tpu.dma_semaphore, #tpu.memory_space<semaphore_mem>>
      %253 = tpu.memref_squeeze %252 : memref<1x!tpu.dma_semaphore, #tpu.memory_space<semaphore_mem>> -> memref<!tpu.dma_semaphore, #tpu.memory_space<semaphore_mem>>
      tpu.enqueue_dma source(%249 : memref<1x128xf32, #tpu.memory_space<any>>) target(%251 : memref<1x128xf32, #tpu.memory_space<vmem>>) target_semaphore(%253 : memref<!tpu.dma_semaphore, #tpu.memory_space<semaphore_mem>>)
      %c25_i32 = arith.constant 25 : i32
      %254 = arith.addi %53, %c25_i32 : i32
      %255 = arith.index_cast %254 : i32 to index
      %256 = memref.load %arg2[%255] : memref<128xi32, #tpu.memory_space<smem>>
      %c0_i32_104 = arith.constant 0 : i32
      %257 = tpu.memref_slice %arg3[%256, %c0_i32_104] : memref<512x128xf32, #tpu.memory_space<any>> -> memref<1x128xf32, #tpu.memory_space<any>>
      %c25_i32_105 = arith.constant 25 : i32
      %c0_i32_106 = arith.constant 0 : i32
      %258 = tpu.memref_slice %arg8[%11, %c25_i32_105, %c0_i32_106] : memref<2x32x128xf32, #tpu.memory_space<vmem>> -> memref<1x1x128xf32, #tpu.memory_space<vmem>>
      %259 = tpu.memref_squeeze %258 : memref<1x1x128xf32, #tpu.memory_space<vmem>> -> memref<1x128xf32, #tpu.memory_space<vmem>>
      %260 = tpu.memref_slice %arg9[%11] : memref<2x!tpu.dma_semaphore, #tpu.memory_space<semaphore_mem>> -> memref<1x!tpu.dma_semaphore, #tpu.memory_space<semaphore_mem>>
      %261 = tpu.memref_squeeze %260 : memref<1x!tpu.dma_semaphore, #tpu.memory_space<semaphore_mem>> -> memref<!tpu.dma_semaphore, #tpu.memory_space<semaphore_mem>>
      tpu.enqueue_dma source(%257 : memref<1x128xf32, #tpu.memory_space<any>>) target(%259 : memref<1x128xf32, #tpu.memory_space<vmem>>) target_semaphore(%261 : memref<!tpu.dma_semaphore, #tpu.memory_space<semaphore_mem>>)
      %c26_i32 = arith.constant 26 : i32
      %262 = arith.addi %53, %c26_i32 : i32
      %263 = arith.index_cast %262 : i32 to index
      %264 = memref.load %arg2[%263] : memref<128xi32, #tpu.memory_space<smem>>
      %c0_i32_107 = arith.constant 0 : i32
      %265 = tpu.memref_slice %arg3[%264, %c0_i32_107] : memref<512x128xf32, #tpu.memory_space<any>> -> memref<1x128xf32, #tpu.memory_space<any>>
      %c26_i32_108 = arith.constant 26 : i32
      %c0_i32_109 = arith.constant 0 : i32
      %266 = tpu.memref_slice %arg8[%11, %c26_i32_108, %c0_i32_109] : memref<2x32x128xf32, #tpu.memory_space<vmem>> -> memref<1x1x128xf32, #tpu.memory_space<vmem>>
      %267 = tpu.memref_squeeze %266 : memref<1x1x128xf32, #tpu.memory_space<vmem>> -> memref<1x128xf32, #tpu.memory_space<vmem>>
      %268 = tpu.memref_slice %arg9[%11] : memref<2x!tpu.dma_semaphore, #tpu.memory_space<semaphore_mem>> -> memref<1x!tpu.dma_semaphore, #tpu.memory_space<semaphore_mem>>
      %269 = tpu.memref_squeeze %268 : memref<1x!tpu.dma_semaphore, #tpu.memory_space<semaphore_mem>> -> memref<!tpu.dma_semaphore, #tpu.memory_space<semaphore_mem>>
      tpu.enqueue_dma source(%265 : memref<1x128xf32, #tpu.memory_space<any>>) target(%267 : memref<1x128xf32, #tpu.memory_space<vmem>>) target_semaphore(%269 : memref<!tpu.dma_semaphore, #tpu.memory_space<semaphore_mem>>)
      %c27_i32 = arith.constant 27 : i32
      %270 = arith.addi %53, %c27_i32 : i32
      %271 = arith.index_cast %270 : i32 to index
      %272 = memref.load %arg2[%271] : memref<128xi32, #tpu.memory_space<smem>>
      %c0_i32_110 = arith.constant 0 : i32
      %273 = tpu.memref_slice %arg3[%272, %c0_i32_110] : memref<512x128xf32, #tpu.memory_space<any>> -> memref<1x128xf32, #tpu.memory_space<any>>
      %c27_i32_111 = arith.constant 27 : i32
      %c0_i32_112 = arith.constant 0 : i32
      %274 = tpu.memref_slice %arg8[%11, %c27_i32_111, %c0_i32_112] : memref<2x32x128xf32, #tpu.memory_space<vmem>> -> memref<1x1x128xf32, #tpu.memory_space<vmem>>
      %275 = tpu.memref_squeeze %274 : memref<1x1x128xf32, #tpu.memory_space<vmem>> -> memref<1x128xf32, #tpu.memory_space<vmem>>
      %276 = tpu.memref_slice %arg9[%11] : memref<2x!tpu.dma_semaphore, #tpu.memory_space<semaphore_mem>> -> memref<1x!tpu.dma_semaphore, #tpu.memory_space<semaphore_mem>>
      %277 = tpu.memref_squeeze %276 : memref<1x!tpu.dma_semaphore, #tpu.memory_space<semaphore_mem>> -> memref<!tpu.dma_semaphore, #tpu.memory_space<semaphore_mem>>
      tpu.enqueue_dma source(%273 : memref<1x128xf32, #tpu.memory_space<any>>) target(%275 : memref<1x128xf32, #tpu.memory_space<vmem>>) target_semaphore(%277 : memref<!tpu.dma_semaphore, #tpu.memory_space<semaphore_mem>>)
      %c28_i32 = arith.constant 28 : i32
      %278 = arith.addi %53, %c28_i32 : i32
      %279 = arith.index_cast %278 : i32 to index
      %280 = memref.load %arg2[%279] : memref<128xi32, #tpu.memory_space<smem>>
      %c0_i32_113 = arith.constant 0 : i32
      %281 = tpu.memref_slice %arg3[%280, %c0_i32_113] : memref<512x128xf32, #tpu.memory_space<any>> -> memref<1x128xf32, #tpu.memory_space<any>>
      %c28_i32_114 = arith.constant 28 : i32
      %c0_i32_115 = arith.constant 0 : i32
      %282 = tpu.memref_slice %arg8[%11, %c28_i32_114, %c0_i32_115] : memref<2x32x128xf32, #tpu.memory_space<vmem>> -> memref<1x1x128xf32, #tpu.memory_space<vmem>>
      %283 = tpu.memref_squeeze %282 : memref<1x1x128xf32, #tpu.memory_space<vmem>> -> memref<1x128xf32, #tpu.memory_space<vmem>>
      %284 = tpu.memref_slice %arg9[%11] : memref<2x!tpu.dma_semaphore, #tpu.memory_space<semaphore_mem>> -> memref<1x!tpu.dma_semaphore, #tpu.memory_space<semaphore_mem>>
      %285 = tpu.memref_squeeze %284 : memref<1x!tpu.dma_semaphore, #tpu.memory_space<semaphore_mem>> -> memref<!tpu.dma_semaphore, #tpu.memory_space<semaphore_mem>>
      tpu.enqueue_dma source(%281 : memref<1x128xf32, #tpu.memory_space<any>>) target(%283 : memref<1x128xf32, #tpu.memory_space<vmem>>) target_semaphore(%285 : memref<!tpu.dma_semaphore, #tpu.memory_space<semaphore_mem>>)
      %c29_i32 = arith.constant 29 : i32
      %286 = arith.addi %53, %c29_i32 : i32
      %287 = arith.index_cast %286 : i32 to index
      %288 = memref.load %arg2[%287] : memref<128xi32, #tpu.memory_space<smem>>
      %c0_i32_116 = arith.constant 0 : i32
      %289 = tpu.memref_slice %arg3[%288, %c0_i32_116] : memref<512x128xf32, #tpu.memory_space<any>> -> memref<1x128xf32, #tpu.memory_space<any>>
      %c29_i32_117 = arith.constant 29 : i32
      %c0_i32_118 = arith.constant 0 : i32
      %290 = tpu.memref_slice %arg8[%11, %c29_i32_117, %c0_i32_118] : memref<2x32x128xf32, #tpu.memory_space<vmem>> -> memref<1x1x128xf32, #tpu.memory_space<vmem>>
      %291 = tpu.memref_squeeze %290 : memref<1x1x128xf32, #tpu.memory_space<vmem>> -> memref<1x128xf32, #tpu.memory_space<vmem>>
      %292 = tpu.memref_slice %arg9[%11] : memref<2x!tpu.dma_semaphore, #tpu.memory_space<semaphore_mem>> -> memref<1x!tpu.dma_semaphore, #tpu.memory_space<semaphore_mem>>
      %293 = tpu.memref_squeeze %292 : memref<1x!tpu.dma_semaphore, #tpu.memory_space<semaphore_mem>> -> memref<!tpu.dma_semaphore, #tpu.memory_space<semaphore_mem>>
      tpu.enqueue_dma source(%289 : memref<1x128xf32, #tpu.memory_space<any>>) target(%291 : memref<1x128xf32, #tpu.memory_space<vmem>>) target_semaphore(%293 : memref<!tpu.dma_semaphore, #tpu.memory_space<semaphore_mem>>)
      %c30_i32 = arith.constant 30 : i32
      %294 = arith.addi %53, %c30_i32 : i32
      %295 = arith.index_cast %294 : i32 to index
      %296 = memref.load %arg2[%295] : memref<128xi32, #tpu.memory_space<smem>>
      %c0_i32_119 = arith.constant 0 : i32
      %297 = tpu.memref_slice %arg3[%296, %c0_i32_119] : memref<512x128xf32, #tpu.memory_space<any>> -> memref<1x128xf32, #tpu.memory_space<any>>
      %c30_i32_120 = arith.constant 30 : i32
      %c0_i32_121 = arith.constant 0 : i32
      %298 = tpu.memref_slice %arg8[%11, %c30_i32_120, %c0_i32_121] : memref<2x32x128xf32, #tpu.memory_space<vmem>> -> memref<1x1x128xf32, #tpu.memory_space<vmem>>
      %299 = tpu.memref_squeeze %298 : memref<1x1x128xf32, #tpu.memory_space<vmem>> -> memref<1x128xf32, #tpu.memory_space<vmem>>
      %300 = tpu.memref_slice %arg9[%11] : memref<2x!tpu.dma_semaphore, #tpu.memory_space<semaphore_mem>> -> memref<1x!tpu.dma_semaphore, #tpu.memory_space<semaphore_mem>>
      %301 = tpu.memref_squeeze %300 : memref<1x!tpu.dma_semaphore, #tpu.memory_space<semaphore_mem>> -> memref<!tpu.dma_semaphore, #tpu.memory_space<semaphore_mem>>
      tpu.enqueue_dma source(%297 : memref<1x128xf32, #tpu.memory_space<any>>) target(%299 : memref<1x128xf32, #tpu.memory_space<vmem>>) target_semaphore(%301 : memref<!tpu.dma_semaphore, #tpu.memory_space<semaphore_mem>>)
      %c31_i32 = arith.constant 31 : i32
      %302 = arith.addi %53, %c31_i32 : i32
      %303 = arith.index_cast %302 : i32 to index
      %304 = memref.load %arg2[%303] : memref<128xi32, #tpu.memory_space<smem>>
      %c0_i32_122 = arith.constant 0 : i32
      %305 = tpu.memref_slice %arg3[%304, %c0_i32_122] : memref<512x128xf32, #tpu.memory_space<any>> -> memref<1x128xf32, #tpu.memory_space<any>>
      %c31_i32_123 = arith.constant 31 : i32
      %c0_i32_124 = arith.constant 0 : i32
      %306 = tpu.memref_slice %arg8[%11, %c31_i32_123, %c0_i32_124] : memref<2x32x128xf32, #tpu.memory_space<vmem>> -> memref<1x1x128xf32, #tpu.memory_space<vmem>>
      %307 = tpu.memref_squeeze %306 : memref<1x1x128xf32, #tpu.memory_space<vmem>> -> memref<1x128xf32, #tpu.memory_space<vmem>>
      %308 = tpu.memref_slice %arg9[%11] : memref<2x!tpu.dma_semaphore, #tpu.memory_space<semaphore_mem>> -> memref<1x!tpu.dma_semaphore, #tpu.memory_space<semaphore_mem>>
      %309 = tpu.memref_squeeze %308 : memref<1x!tpu.dma_semaphore, #tpu.memory_space<semaphore_mem>> -> memref<!tpu.dma_semaphore, #tpu.memory_space<semaphore_mem>>
      tpu.enqueue_dma source(%305 : memref<1x128xf32, #tpu.memory_space<any>>) target(%307 : memref<1x128xf32, #tpu.memory_space<vmem>>) target_semaphore(%309 : memref<!tpu.dma_semaphore, #tpu.memory_space<semaphore_mem>>)
    } else {
    }
    %c1_i32_6 = arith.constant 1 : i32
    %15 = arith.addi %arg1, %c1_i32_6 : i32
    %c2_i32_7 = arith.constant 2 : i32
    %16 = arith.cmpi slt, %15, %c2_i32_7 : i32
    %17 = arith.extui %16 : i1 to i32
    %c0_i32_8 = arith.constant 0 : i32
    %18 = arith.cmpi ne, %17, %c0_i32_8 : i32
    scf.if %18 {
      %c1_i32_26 = arith.constant 1 : i32
      %53 = arith.addi %1, %c1_i32_26 : i32
      %c1_i32_27 = arith.constant 1 : i32
      %54 = arith.addi %arg1, %c1_i32_27 : i32
      %c2_i32_28 = arith.constant 2 : i32
      %c0_i32_29 = arith.constant 0 : i32
      %55 = arith.cmpi eq, %c2_i32_28, %c0_i32_29 : i32
      %c1_i32_30 = arith.constant 1 : i32
      %56 = arith.select %55, %c1_i32_30, %c2_i32_28 : i32
      %57 = arith.remsi %54, %56 : i32
      %c0_i32_31 = arith.constant 0 : i32
      %58 = arith.cmpi ne, %57, %c0_i32_31 : i32
      %c0_i32_32 = arith.constant 0 : i32
      %59 = arith.cmpi slt, %57, %c0_i32_32 : i32
      %c0_i32_33 = arith.constant 0 : i32
      %60 = arith.cmpi slt, %56, %c0_i32_33 : i32
      %61 = arith.xori %59, %60 : i1
      %62 = arith.andi %61, %58 : i1
      %63 = arith.addi %57, %56 : i32
      %64 = arith.select %62, %63, %57 : i32
      %c32_i32 = arith.constant 32 : i32
      %65 = arith.muli %53, %c32_i32 : i32
      %c0_i32_34 = arith.constant 0 : i32
      %66 = arith.addi %65, %c0_i32_34 : i32
      %67 = arith.index_cast %66 : i32 to index
      %68 = memref.load %arg2[%67] : memref<128xi32, #tpu.memory_space<smem>>
      %c0_i32_35 = arith.constant 0 : i32
      %69 = tpu.memref_slice %arg3[%68, %c0_i32_35] : memref<512x128xf32, #tpu.memory_space<any>> -> memref<1x128xf32, #tpu.memory_space<any>>
      %c0_i32_36 = arith.constant 0 : i32
      %c0_i32_37 = arith.constant 0 : i32
      %70 = tpu.memref_slice %arg8[%64, %c0_i32_36, %c0_i32_37] : memref<2x32x128xf32, #tpu.memory_space<vmem>> -> memref<1x1x128xf32, #tpu.memory_space<vmem>>
      %71 = tpu.memref_squeeze %70 : memref<1x1x128xf32, #tpu.memory_space<vmem>> -> memref<1x128xf32, #tpu.memory_space<vmem>>
      %72 = tpu.memref_slice %arg9[%64] : memref<2x!tpu.dma_semaphore, #tpu.memory_space<semaphore_mem>> -> memref<1x!tpu.dma_semaphore, #tpu.memory_space<semaphore_mem>>
      %73 = tpu.memref_squeeze %72 : memref<1x!tpu.dma_semaphore, #tpu.memory_space<semaphore_mem>> -> memref<!tpu.dma_semaphore, #tpu.memory_space<semaphore_mem>>
      tpu.enqueue_dma source(%69 : memref<1x128xf32, #tpu.memory_space<any>>) target(%71 : memref<1x128xf32, #tpu.memory_space<vmem>>) target_semaphore(%73 : memref<!tpu.dma_semaphore, #tpu.memory_space<semaphore_mem>>)
      %c1_i32_38 = arith.constant 1 : i32
      %74 = arith.addi %65, %c1_i32_38 : i32
      %75 = arith.index_cast %74 : i32 to index
      %76 = memref.load %arg2[%75] : memref<128xi32, #tpu.memory_space<smem>>
      %c0_i32_39 = arith.constant 0 : i32
      %77 = tpu.memref_slice %arg3[%76, %c0_i32_39] : memref<512x128xf32, #tpu.memory_space<any>> -> memref<1x128xf32, #tpu.memory_space<any>>
      %c1_i32_40 = arith.constant 1 : i32
      %c0_i32_41 = arith.constant 0 : i32
      %78 = tpu.memref_slice %arg8[%64, %c1_i32_40, %c0_i32_41] : memref<2x32x128xf32, #tpu.memory_space<vmem>> -> memref<1x1x128xf32, #tpu.memory_space<vmem>>
      %79 = tpu.memref_squeeze %78 : memref<1x1x128xf32, #tpu.memory_space<vmem>> -> memref<1x128xf32, #tpu.memory_space<vmem>>
      %80 = tpu.memref_slice %arg9[%64] : memref<2x!tpu.dma_semaphore, #tpu.memory_space<semaphore_mem>> -> memref<1x!tpu.dma_semaphore, #tpu.memory_space<semaphore_mem>>
      %81 = tpu.memref_squeeze %80 : memref<1x!tpu.dma_semaphore, #tpu.memory_space<semaphore_mem>> -> memref<!tpu.dma_semaphore, #tpu.memory_space<semaphore_mem>>
      tpu.enqueue_dma source(%77 : memref<1x128xf32, #tpu.memory_space<any>>) target(%79 : memref<1x128xf32, #tpu.memory_space<vmem>>) target_semaphore(%81 : memref<!tpu.dma_semaphore, #tpu.memory_space<semaphore_mem>>)
      %c2_i32_42 = arith.constant 2 : i32
      %82 = arith.addi %65, %c2_i32_42 : i32
      %83 = arith.index_cast %82 : i32 to index
      %84 = memref.load %arg2[%83] : memref<128xi32, #tpu.memory_space<smem>>
      %c0_i32_43 = arith.constant 0 : i32
      %85 = tpu.memref_slice %arg3[%84, %c0_i32_43] : memref<512x128xf32, #tpu.memory_space<any>> -> memref<1x128xf32, #tpu.memory_space<any>>
      %c2_i32_44 = arith.constant 2 : i32
      %c0_i32_45 = arith.constant 0 : i32
      %86 = tpu.memref_slice %arg8[%64, %c2_i32_44, %c0_i32_45] : memref<2x32x128xf32, #tpu.memory_space<vmem>> -> memref<1x1x128xf32, #tpu.memory_space<vmem>>
      %87 = tpu.memref_squeeze %86 : memref<1x1x128xf32, #tpu.memory_space<vmem>> -> memref<1x128xf32, #tpu.memory_space<vmem>>
      %88 = tpu.memref_slice %arg9[%64] : memref<2x!tpu.dma_semaphore, #tpu.memory_space<semaphore_mem>> -> memref<1x!tpu.dma_semaphore, #tpu.memory_space<semaphore_mem>>
      %89 = tpu.memref_squeeze %88 : memref<1x!tpu.dma_semaphore, #tpu.memory_space<semaphore_mem>> -> memref<!tpu.dma_semaphore, #tpu.memory_space<semaphore_mem>>
      tpu.enqueue_dma source(%85 : memref<1x128xf32, #tpu.memory_space<any>>) target(%87 : memref<1x128xf32, #tpu.memory_space<vmem>>) target_semaphore(%89 : memref<!tpu.dma_semaphore, #tpu.memory_space<semaphore_mem>>)
      %c3_i32 = arith.constant 3 : i32
      %90 = arith.addi %65, %c3_i32 : i32
      %91 = arith.index_cast %90 : i32 to index
      %92 = memref.load %arg2[%91] : memref<128xi32, #tpu.memory_space<smem>>
      %c0_i32_46 = arith.constant 0 : i32
      %93 = tpu.memref_slice %arg3[%92, %c0_i32_46] : memref<512x128xf32, #tpu.memory_space<any>> -> memref<1x128xf32, #tpu.memory_space<any>>
      %c3_i32_47 = arith.constant 3 : i32
      %c0_i32_48 = arith.constant 0 : i32
      %94 = tpu.memref_slice %arg8[%64, %c3_i32_47, %c0_i32_48] : memref<2x32x128xf32, #tpu.memory_space<vmem>> -> memref<1x1x128xf32, #tpu.memory_space<vmem>>
      %95 = tpu.memref_squeeze %94 : memref<1x1x128xf32, #tpu.memory_space<vmem>> -> memref<1x128xf32, #tpu.memory_space<vmem>>
      %96 = tpu.memref_slice %arg9[%64] : memref<2x!tpu.dma_semaphore, #tpu.memory_space<semaphore_mem>> -> memref<1x!tpu.dma_semaphore, #tpu.memory_space<semaphore_mem>>
      %97 = tpu.memref_squeeze %96 : memref<1x!tpu.dma_semaphore, #tpu.memory_space<semaphore_mem>> -> memref<!tpu.dma_semaphore, #tpu.memory_space<semaphore_mem>>
      tpu.enqueue_dma source(%93 : memref<1x128xf32, #tpu.memory_space<any>>) target(%95 : memref<1x128xf32, #tpu.memory_space<vmem>>) target_semaphore(%97 : memref<!tpu.dma_semaphore, #tpu.memory_space<semaphore_mem>>)
      %c4_i32 = arith.constant 4 : i32
      %98 = arith.addi %65, %c4_i32 : i32
      %99 = arith.index_cast %98 : i32 to index
      %100 = memref.load %arg2[%99] : memref<128xi32, #tpu.memory_space<smem>>
      %c0_i32_49 = arith.constant 0 : i32
      %101 = tpu.memref_slice %arg3[%100, %c0_i32_49] : memref<512x128xf32, #tpu.memory_space<any>> -> memref<1x128xf32, #tpu.memory_space<any>>
      %c4_i32_50 = arith.constant 4 : i32
      %c0_i32_51 = arith.constant 0 : i32
      %102 = tpu.memref_slice %arg8[%64, %c4_i32_50, %c0_i32_51] : memref<2x32x128xf32, #tpu.memory_space<vmem>> -> memref<1x1x128xf32, #tpu.memory_space<vmem>>
      %103 = tpu.memref_squeeze %102 : memref<1x1x128xf32, #tpu.memory_space<vmem>> -> memref<1x128xf32, #tpu.memory_space<vmem>>
      %104 = tpu.memref_slice %arg9[%64] : memref<2x!tpu.dma_semaphore, #tpu.memory_space<semaphore_mem>> -> memref<1x!tpu.dma_semaphore, #tpu.memory_space<semaphore_mem>>
      %105 = tpu.memref_squeeze %104 : memref<1x!tpu.dma_semaphore, #tpu.memory_space<semaphore_mem>> -> memref<!tpu.dma_semaphore, #tpu.memory_space<semaphore_mem>>
      tpu.enqueue_dma source(%101 : memref<1x128xf32, #tpu.memory_space<any>>) target(%103 : memref<1x128xf32, #tpu.memory_space<vmem>>) target_semaphore(%105 : memref<!tpu.dma_semaphore, #tpu.memory_space<semaphore_mem>>)
      %c5_i32 = arith.constant 5 : i32
      %106 = arith.addi %65, %c5_i32 : i32
      %107 = arith.index_cast %106 : i32 to index
      %108 = memref.load %arg2[%107] : memref<128xi32, #tpu.memory_space<smem>>
      %c0_i32_52 = arith.constant 0 : i32
      %109 = tpu.memref_slice %arg3[%108, %c0_i32_52] : memref<512x128xf32, #tpu.memory_space<any>> -> memref<1x128xf32, #tpu.memory_space<any>>
      %c5_i32_53 = arith.constant 5 : i32
      %c0_i32_54 = arith.constant 0 : i32
      %110 = tpu.memref_slice %arg8[%64, %c5_i32_53, %c0_i32_54] : memref<2x32x128xf32, #tpu.memory_space<vmem>> -> memref<1x1x128xf32, #tpu.memory_space<vmem>>
      %111 = tpu.memref_squeeze %110 : memref<1x1x128xf32, #tpu.memory_space<vmem>> -> memref<1x128xf32, #tpu.memory_space<vmem>>
      %112 = tpu.memref_slice %arg9[%64] : memref<2x!tpu.dma_semaphore, #tpu.memory_space<semaphore_mem>> -> memref<1x!tpu.dma_semaphore, #tpu.memory_space<semaphore_mem>>
      %113 = tpu.memref_squeeze %112 : memref<1x!tpu.dma_semaphore, #tpu.memory_space<semaphore_mem>> -> memref<!tpu.dma_semaphore, #tpu.memory_space<semaphore_mem>>
      tpu.enqueue_dma source(%109 : memref<1x128xf32, #tpu.memory_space<any>>) target(%111 : memref<1x128xf32, #tpu.memory_space<vmem>>) target_semaphore(%113 : memref<!tpu.dma_semaphore, #tpu.memory_space<semaphore_mem>>)
      %c6_i32 = arith.constant 6 : i32
      %114 = arith.addi %65, %c6_i32 : i32
      %115 = arith.index_cast %114 : i32 to index
      %116 = memref.load %arg2[%115] : memref<128xi32, #tpu.memory_space<smem>>
      %c0_i32_55 = arith.constant 0 : i32
      %117 = tpu.memref_slice %arg3[%116, %c0_i32_55] : memref<512x128xf32, #tpu.memory_space<any>> -> memref<1x128xf32, #tpu.memory_space<any>>
      %c6_i32_56 = arith.constant 6 : i32
      %c0_i32_57 = arith.constant 0 : i32
      %118 = tpu.memref_slice %arg8[%64, %c6_i32_56, %c0_i32_57] : memref<2x32x128xf32, #tpu.memory_space<vmem>> -> memref<1x1x128xf32, #tpu.memory_space<vmem>>
      %119 = tpu.memref_squeeze %118 : memref<1x1x128xf32, #tpu.memory_space<vmem>> -> memref<1x128xf32, #tpu.memory_space<vmem>>
      %120 = tpu.memref_slice %arg9[%64] : memref<2x!tpu.dma_semaphore, #tpu.memory_space<semaphore_mem>> -> memref<1x!tpu.dma_semaphore, #tpu.memory_space<semaphore_mem>>
      %121 = tpu.memref_squeeze %120 : memref<1x!tpu.dma_semaphore, #tpu.memory_space<semaphore_mem>> -> memref<!tpu.dma_semaphore, #tpu.memory_space<semaphore_mem>>
      tpu.enqueue_dma source(%117 : memref<1x128xf32, #tpu.memory_space<any>>) target(%119 : memref<1x128xf32, #tpu.memory_space<vmem>>) target_semaphore(%121 : memref<!tpu.dma_semaphore, #tpu.memory_space<semaphore_mem>>)
      %c7_i32 = arith.constant 7 : i32
      %122 = arith.addi %65, %c7_i32 : i32
      %123 = arith.index_cast %122 : i32 to index
      %124 = memref.load %arg2[%123] : memref<128xi32, #tpu.memory_space<smem>>
      %c0_i32_58 = arith.constant 0 : i32
      %125 = tpu.memref_slice %arg3[%124, %c0_i32_58] : memref<512x128xf32, #tpu.memory_space<any>> -> memref<1x128xf32, #tpu.memory_space<any>>
      %c7_i32_59 = arith.constant 7 : i32
      %c0_i32_60 = arith.constant 0 : i32
      %126 = tpu.memref_slice %arg8[%64, %c7_i32_59, %c0_i32_60] : memref<2x32x128xf32, #tpu.memory_space<vmem>> -> memref<1x1x128xf32, #tpu.memory_space<vmem>>
      %127 = tpu.memref_squeeze %126 : memref<1x1x128xf32, #tpu.memory_space<vmem>> -> memref<1x128xf32, #tpu.memory_space<vmem>>
      %128 = tpu.memref_slice %arg9[%64] : memref<2x!tpu.dma_semaphore, #tpu.memory_space<semaphore_mem>> -> memref<1x!tpu.dma_semaphore, #tpu.memory_space<semaphore_mem>>
      %129 = tpu.memref_squeeze %128 : memref<1x!tpu.dma_semaphore, #tpu.memory_space<semaphore_mem>> -> memref<!tpu.dma_semaphore, #tpu.memory_space<semaphore_mem>>
      tpu.enqueue_dma source(%125 : memref<1x128xf32, #tpu.memory_space<any>>) target(%127 : memref<1x128xf32, #tpu.memory_space<vmem>>) target_semaphore(%129 : memref<!tpu.dma_semaphore, #tpu.memory_space<semaphore_mem>>)
      %c8_i32 = arith.constant 8 : i32
      %130 = arith.addi %65, %c8_i32 : i32
      %131 = arith.index_cast %130 : i32 to index
      %132 = memref.load %arg2[%131] : memref<128xi32, #tpu.memory_space<smem>>
      %c0_i32_61 = arith.constant 0 : i32
      %133 = tpu.memref_slice %arg3[%132, %c0_i32_61] : memref<512x128xf32, #tpu.memory_space<any>> -> memref<1x128xf32, #tpu.memory_space<any>>
      %c8_i32_62 = arith.constant 8 : i32
      %c0_i32_63 = arith.constant 0 : i32
      %134 = tpu.memref_slice %arg8[%64, %c8_i32_62, %c0_i32_63] : memref<2x32x128xf32, #tpu.memory_space<vmem>> -> memref<1x1x128xf32, #tpu.memory_space<vmem>>
      %135 = tpu.memref_squeeze %134 : memref<1x1x128xf32, #tpu.memory_space<vmem>> -> memref<1x128xf32, #tpu.memory_space<vmem>>
      %136 = tpu.memref_slice %arg9[%64] : memref<2x!tpu.dma_semaphore, #tpu.memory_space<semaphore_mem>> -> memref<1x!tpu.dma_semaphore, #tpu.memory_space<semaphore_mem>>
      %137 = tpu.memref_squeeze %136 : memref<1x!tpu.dma_semaphore, #tpu.memory_space<semaphore_mem>> -> memref<!tpu.dma_semaphore, #tpu.memory_space<semaphore_mem>>
      tpu.enqueue_dma source(%133 : memref<1x128xf32, #tpu.memory_space<any>>) target(%135 : memref<1x128xf32, #tpu.memory_space<vmem>>) target_semaphore(%137 : memref<!tpu.dma_semaphore, #tpu.memory_space<semaphore_mem>>)
      %c9_i32 = arith.constant 9 : i32
      %138 = arith.addi %65, %c9_i32 : i32
      %139 = arith.index_cast %138 : i32 to index
      %140 = memref.load %arg2[%139] : memref<128xi32, #tpu.memory_space<smem>>
      %c0_i32_64 = arith.constant 0 : i32
      %141 = tpu.memref_slice %arg3[%140, %c0_i32_64] : memref<512x128xf32, #tpu.memory_space<any>> -> memref<1x128xf32, #tpu.memory_space<any>>
      %c9_i32_65 = arith.constant 9 : i32
      %c0_i32_66 = arith.constant 0 : i32
      %142 = tpu.memref_slice %arg8[%64, %c9_i32_65, %c0_i32_66] : memref<2x32x128xf32, #tpu.memory_space<vmem>> -> memref<1x1x128xf32, #tpu.memory_space<vmem>>
      %143 = tpu.memref_squeeze %142 : memref<1x1x128xf32, #tpu.memory_space<vmem>> -> memref<1x128xf32, #tpu.memory_space<vmem>>
      %144 = tpu.memref_slice %arg9[%64] : memref<2x!tpu.dma_semaphore, #tpu.memory_space<semaphore_mem>> -> memref<1x!tpu.dma_semaphore, #tpu.memory_space<semaphore_mem>>
      %145 = tpu.memref_squeeze %144 : memref<1x!tpu.dma_semaphore, #tpu.memory_space<semaphore_mem>> -> memref<!tpu.dma_semaphore, #tpu.memory_space<semaphore_mem>>
      tpu.enqueue_dma source(%141 : memref<1x128xf32, #tpu.memory_space<any>>) target(%143 : memref<1x128xf32, #tpu.memory_space<vmem>>) target_semaphore(%145 : memref<!tpu.dma_semaphore, #tpu.memory_space<semaphore_mem>>)
      %c10_i32 = arith.constant 10 : i32
      %146 = arith.addi %65, %c10_i32 : i32
      %147 = arith.index_cast %146 : i32 to index
      %148 = memref.load %arg2[%147] : memref<128xi32, #tpu.memory_space<smem>>
      %c0_i32_67 = arith.constant 0 : i32
      %149 = tpu.memref_slice %arg3[%148, %c0_i32_67] : memref<512x128xf32, #tpu.memory_space<any>> -> memref<1x128xf32, #tpu.memory_space<any>>
      %c10_i32_68 = arith.constant 10 : i32
      %c0_i32_69 = arith.constant 0 : i32
      %150 = tpu.memref_slice %arg8[%64, %c10_i32_68, %c0_i32_69] : memref<2x32x128xf32, #tpu.memory_space<vmem>> -> memref<1x1x128xf32, #tpu.memory_space<vmem>>
      %151 = tpu.memref_squeeze %150 : memref<1x1x128xf32, #tpu.memory_space<vmem>> -> memref<1x128xf32, #tpu.memory_space<vmem>>
      %152 = tpu.memref_slice %arg9[%64] : memref<2x!tpu.dma_semaphore, #tpu.memory_space<semaphore_mem>> -> memref<1x!tpu.dma_semaphore, #tpu.memory_space<semaphore_mem>>
      %153 = tpu.memref_squeeze %152 : memref<1x!tpu.dma_semaphore, #tpu.memory_space<semaphore_mem>> -> memref<!tpu.dma_semaphore, #tpu.memory_space<semaphore_mem>>
      tpu.enqueue_dma source(%149 : memref<1x128xf32, #tpu.memory_space<any>>) target(%151 : memref<1x128xf32, #tpu.memory_space<vmem>>) target_semaphore(%153 : memref<!tpu.dma_semaphore, #tpu.memory_space<semaphore_mem>>)
      %c11_i32 = arith.constant 11 : i32
      %154 = arith.addi %65, %c11_i32 : i32
      %155 = arith.index_cast %154 : i32 to index
      %156 = memref.load %arg2[%155] : memref<128xi32, #tpu.memory_space<smem>>
      %c0_i32_70 = arith.constant 0 : i32
      %157 = tpu.memref_slice %arg3[%156, %c0_i32_70] : memref<512x128xf32, #tpu.memory_space<any>> -> memref<1x128xf32, #tpu.memory_space<any>>
      %c11_i32_71 = arith.constant 11 : i32
      %c0_i32_72 = arith.constant 0 : i32
      %158 = tpu.memref_slice %arg8[%64, %c11_i32_71, %c0_i32_72] : memref<2x32x128xf32, #tpu.memory_space<vmem>> -> memref<1x1x128xf32, #tpu.memory_space<vmem>>
      %159 = tpu.memref_squeeze %158 : memref<1x1x128xf32, #tpu.memory_space<vmem>> -> memref<1x128xf32, #tpu.memory_space<vmem>>
      %160 = tpu.memref_slice %arg9[%64] : memref<2x!tpu.dma_semaphore, #tpu.memory_space<semaphore_mem>> -> memref<1x!tpu.dma_semaphore, #tpu.memory_space<semaphore_mem>>
      %161 = tpu.memref_squeeze %160 : memref<1x!tpu.dma_semaphore, #tpu.memory_space<semaphore_mem>> -> memref<!tpu.dma_semaphore, #tpu.memory_space<semaphore_mem>>
      tpu.enqueue_dma source(%157 : memref<1x128xf32, #tpu.memory_space<any>>) target(%159 : memref<1x128xf32, #tpu.memory_space<vmem>>) target_semaphore(%161 : memref<!tpu.dma_semaphore, #tpu.memory_space<semaphore_mem>>)
      %c12_i32 = arith.constant 12 : i32
      %162 = arith.addi %65, %c12_i32 : i32
      %163 = arith.index_cast %162 : i32 to index
      %164 = memref.load %arg2[%163] : memref<128xi32, #tpu.memory_space<smem>>
      %c0_i32_73 = arith.constant 0 : i32
      %165 = tpu.memref_slice %arg3[%164, %c0_i32_73] : memref<512x128xf32, #tpu.memory_space<any>> -> memref<1x128xf32, #tpu.memory_space<any>>
      %c12_i32_74 = arith.constant 12 : i32
      %c0_i32_75 = arith.constant 0 : i32
      %166 = tpu.memref_slice %arg8[%64, %c12_i32_74, %c0_i32_75] : memref<2x32x128xf32, #tpu.memory_space<vmem>> -> memref<1x1x128xf32, #tpu.memory_space<vmem>>
      %167 = tpu.memref_squeeze %166 : memref<1x1x128xf32, #tpu.memory_space<vmem>> -> memref<1x128xf32, #tpu.memory_space<vmem>>
      %168 = tpu.memref_slice %arg9[%64] : memref<2x!tpu.dma_semaphore, #tpu.memory_space<semaphore_mem>> -> memref<1x!tpu.dma_semaphore, #tpu.memory_space<semaphore_mem>>
      %169 = tpu.memref_squeeze %168 : memref<1x!tpu.dma_semaphore, #tpu.memory_space<semaphore_mem>> -> memref<!tpu.dma_semaphore, #tpu.memory_space<semaphore_mem>>
      tpu.enqueue_dma source(%165 : memref<1x128xf32, #tpu.memory_space<any>>) target(%167 : memref<1x128xf32, #tpu.memory_space<vmem>>) target_semaphore(%169 : memref<!tpu.dma_semaphore, #tpu.memory_space<semaphore_mem>>)
      %c13_i32 = arith.constant 13 : i32
      %170 = arith.addi %65, %c13_i32 : i32
      %171 = arith.index_cast %170 : i32 to index
      %172 = memref.load %arg2[%171] : memref<128xi32, #tpu.memory_space<smem>>
      %c0_i32_76 = arith.constant 0 : i32
      %173 = tpu.memref_slice %arg3[%172, %c0_i32_76] : memref<512x128xf32, #tpu.memory_space<any>> -> memref<1x128xf32, #tpu.memory_space<any>>
      %c13_i32_77 = arith.constant 13 : i32
      %c0_i32_78 = arith.constant 0 : i32
      %174 = tpu.memref_slice %arg8[%64, %c13_i32_77, %c0_i32_78] : memref<2x32x128xf32, #tpu.memory_space<vmem>> -> memref<1x1x128xf32, #tpu.memory_space<vmem>>
      %175 = tpu.memref_squeeze %174 : memref<1x1x128xf32, #tpu.memory_space<vmem>> -> memref<1x128xf32, #tpu.memory_space<vmem>>
      %176 = tpu.memref_slice %arg9[%64] : memref<2x!tpu.dma_semaphore, #tpu.memory_space<semaphore_mem>> -> memref<1x!tpu.dma_semaphore, #tpu.memory_space<semaphore_mem>>
      %177 = tpu.memref_squeeze %176 : memref<1x!tpu.dma_semaphore, #tpu.memory_space<semaphore_mem>> -> memref<!tpu.dma_semaphore, #tpu.memory_space<semaphore_mem>>
      tpu.enqueue_dma source(%173 : memref<1x128xf32, #tpu.memory_space<any>>) target(%175 : memref<1x128xf32, #tpu.memory_space<vmem>>) target_semaphore(%177 : memref<!tpu.dma_semaphore, #tpu.memory_space<semaphore_mem>>)
      %c14_i32 = arith.constant 14 : i32
      %178 = arith.addi %65, %c14_i32 : i32
      %179 = arith.index_cast %178 : i32 to index
      %180 = memref.load %arg2[%179] : memref<128xi32, #tpu.memory_space<smem>>
      %c0_i32_79 = arith.constant 0 : i32
      %181 = tpu.memref_slice %arg3[%180, %c0_i32_79] : memref<512x128xf32, #tpu.memory_space<any>> -> memref<1x128xf32, #tpu.memory_space<any>>
      %c14_i32_80 = arith.constant 14 : i32
      %c0_i32_81 = arith.constant 0 : i32
      %182 = tpu.memref_slice %arg8[%64, %c14_i32_80, %c0_i32_81] : memref<2x32x128xf32, #tpu.memory_space<vmem>> -> memref<1x1x128xf32, #tpu.memory_space<vmem>>
      %183 = tpu.memref_squeeze %182 : memref<1x1x128xf32, #tpu.memory_space<vmem>> -> memref<1x128xf32, #tpu.memory_space<vmem>>
      %184 = tpu.memref_slice %arg9[%64] : memref<2x!tpu.dma_semaphore, #tpu.memory_space<semaphore_mem>> -> memref<1x!tpu.dma_semaphore, #tpu.memory_space<semaphore_mem>>
      %185 = tpu.memref_squeeze %184 : memref<1x!tpu.dma_semaphore, #tpu.memory_space<semaphore_mem>> -> memref<!tpu.dma_semaphore, #tpu.memory_space<semaphore_mem>>
      tpu.enqueue_dma source(%181 : memref<1x128xf32, #tpu.memory_space<any>>) target(%183 : memref<1x128xf32, #tpu.memory_space<vmem>>) target_semaphore(%185 : memref<!tpu.dma_semaphore, #tpu.memory_space<semaphore_mem>>)
      %c15_i32 = arith.constant 15 : i32
      %186 = arith.addi %65, %c15_i32 : i32
      %187 = arith.index_cast %186 : i32 to index
      %188 = memref.load %arg2[%187] : memref<128xi32, #tpu.memory_space<smem>>
      %c0_i32_82 = arith.constant 0 : i32
      %189 = tpu.memref_slice %arg3[%188, %c0_i32_82] : memref<512x128xf32, #tpu.memory_space<any>> -> memref<1x128xf32, #tpu.memory_space<any>>
      %c15_i32_83 = arith.constant 15 : i32
      %c0_i32_84 = arith.constant 0 : i32
      %190 = tpu.memref_slice %arg8[%64, %c15_i32_83, %c0_i32_84] : memref<2x32x128xf32, #tpu.memory_space<vmem>> -> memref<1x1x128xf32, #tpu.memory_space<vmem>>
      %191 = tpu.memref_squeeze %190 : memref<1x1x128xf32, #tpu.memory_space<vmem>> -> memref<1x128xf32, #tpu.memory_space<vmem>>
      %192 = tpu.memref_slice %arg9[%64] : memref<2x!tpu.dma_semaphore, #tpu.memory_space<semaphore_mem>> -> memref<1x!tpu.dma_semaphore, #tpu.memory_space<semaphore_mem>>
      %193 = tpu.memref_squeeze %192 : memref<1x!tpu.dma_semaphore, #tpu.memory_space<semaphore_mem>> -> memref<!tpu.dma_semaphore, #tpu.memory_space<semaphore_mem>>
      tpu.enqueue_dma source(%189 : memref<1x128xf32, #tpu.memory_space<any>>) target(%191 : memref<1x128xf32, #tpu.memory_space<vmem>>) target_semaphore(%193 : memref<!tpu.dma_semaphore, #tpu.memory_space<semaphore_mem>>)
      %c16_i32 = arith.constant 16 : i32
      %194 = arith.addi %65, %c16_i32 : i32
      %195 = arith.index_cast %194 : i32 to index
      %196 = memref.load %arg2[%195] : memref<128xi32, #tpu.memory_space<smem>>
      %c0_i32_85 = arith.constant 0 : i32
      %197 = tpu.memref_slice %arg3[%196, %c0_i32_85] : memref<512x128xf32, #tpu.memory_space<any>> -> memref<1x128xf32, #tpu.memory_space<any>>
      %c16_i32_86 = arith.constant 16 : i32
      %c0_i32_87 = arith.constant 0 : i32
      %198 = tpu.memref_slice %arg8[%64, %c16_i32_86, %c0_i32_87] : memref<2x32x128xf32, #tpu.memory_space<vmem>> -> memref<1x1x128xf32, #tpu.memory_space<vmem>>
      %199 = tpu.memref_squeeze %198 : memref<1x1x128xf32, #tpu.memory_space<vmem>> -> memref<1x128xf32, #tpu.memory_space<vmem>>
      %200 = tpu.memref_slice %arg9[%64] : memref<2x!tpu.dma_semaphore, #tpu.memory_space<semaphore_mem>> -> memref<1x!tpu.dma_semaphore, #tpu.memory_space<semaphore_mem>>
      %201 = tpu.memref_squeeze %200 : memref<1x!tpu.dma_semaphore, #tpu.memory_space<semaphore_mem>> -> memref<!tpu.dma_semaphore, #tpu.memory_space<semaphore_mem>>
      tpu.enqueue_dma source(%197 : memref<1x128xf32, #tpu.memory_space<any>>) target(%199 : memref<1x128xf32, #tpu.memory_space<vmem>>) target_semaphore(%201 : memref<!tpu.dma_semaphore, #tpu.memory_space<semaphore_mem>>)
      %c17_i32 = arith.constant 17 : i32
      %202 = arith.addi %65, %c17_i32 : i32
      %203 = arith.index_cast %202 : i32 to index
      %204 = memref.load %arg2[%203] : memref<128xi32, #tpu.memory_space<smem>>
      %c0_i32_88 = arith.constant 0 : i32
      %205 = tpu.memref_slice %arg3[%204, %c0_i32_88] : memref<512x128xf32, #tpu.memory_space<any>> -> memref<1x128xf32, #tpu.memory_space<any>>
      %c17_i32_89 = arith.constant 17 : i32
      %c0_i32_90 = arith.constant 0 : i32
      %206 = tpu.memref_slice %arg8[%64, %c17_i32_89, %c0_i32_90] : memref<2x32x128xf32, #tpu.memory_space<vmem>> -> memref<1x1x128xf32, #tpu.memory_space<vmem>>
      %207 = tpu.memref_squeeze %206 : memref<1x1x128xf32, #tpu.memory_space<vmem>> -> memref<1x128xf32, #tpu.memory_space<vmem>>
      %208 = tpu.memref_slice %arg9[%64] : memref<2x!tpu.dma_semaphore, #tpu.memory_space<semaphore_mem>> -> memref<1x!tpu.dma_semaphore, #tpu.memory_space<semaphore_mem>>
      %209 = tpu.memref_squeeze %208 : memref<1x!tpu.dma_semaphore, #tpu.memory_space<semaphore_mem>> -> memref<!tpu.dma_semaphore, #tpu.memory_space<semaphore_mem>>
      tpu.enqueue_dma source(%205 : memref<1x128xf32, #tpu.memory_space<any>>) target(%207 : memref<1x128xf32, #tpu.memory_space<vmem>>) target_semaphore(%209 : memref<!tpu.dma_semaphore, #tpu.memory_space<semaphore_mem>>)
      %c18_i32 = arith.constant 18 : i32
      %210 = arith.addi %65, %c18_i32 : i32
      %211 = arith.index_cast %210 : i32 to index
      %212 = memref.load %arg2[%211] : memref<128xi32, #tpu.memory_space<smem>>
      %c0_i32_91 = arith.constant 0 : i32
      %213 = tpu.memref_slice %arg3[%212, %c0_i32_91] : memref<512x128xf32, #tpu.memory_space<any>> -> memref<1x128xf32, #tpu.memory_space<any>>
      %c18_i32_92 = arith.constant 18 : i32
      %c0_i32_93 = arith.constant 0 : i32
      %214 = tpu.memref_slice %arg8[%64, %c18_i32_92, %c0_i32_93] : memref<2x32x128xf32, #tpu.memory_space<vmem>> -> memref<1x1x128xf32, #tpu.memory_space<vmem>>
      %215 = tpu.memref_squeeze %214 : memref<1x1x128xf32, #tpu.memory_space<vmem>> -> memref<1x128xf32, #tpu.memory_space<vmem>>
      %216 = tpu.memref_slice %arg9[%64] : memref<2x!tpu.dma_semaphore, #tpu.memory_space<semaphore_mem>> -> memref<1x!tpu.dma_semaphore, #tpu.memory_space<semaphore_mem>>
      %217 = tpu.memref_squeeze %216 : memref<1x!tpu.dma_semaphore, #tpu.memory_space<semaphore_mem>> -> memref<!tpu.dma_semaphore, #tpu.memory_space<semaphore_mem>>
      tpu.enqueue_dma source(%213 : memref<1x128xf32, #tpu.memory_space<any>>) target(%215 : memref<1x128xf32, #tpu.memory_space<vmem>>) target_semaphore(%217 : memref<!tpu.dma_semaphore, #tpu.memory_space<semaphore_mem>>)
      %c19_i32 = arith.constant 19 : i32
      %218 = arith.addi %65, %c19_i32 : i32
      %219 = arith.index_cast %218 : i32 to index
      %220 = memref.load %arg2[%219] : memref<128xi32, #tpu.memory_space<smem>>
      %c0_i32_94 = arith.constant 0 : i32
      %221 = tpu.memref_slice %arg3[%220, %c0_i32_94] : memref<512x128xf32, #tpu.memory_space<any>> -> memref<1x128xf32, #tpu.memory_space<any>>
      %c19_i32_95 = arith.constant 19 : i32
      %c0_i32_96 = arith.constant 0 : i32
      %222 = tpu.memref_slice %arg8[%64, %c19_i32_95, %c0_i32_96] : memref<2x32x128xf32, #tpu.memory_space<vmem>> -> memref<1x1x128xf32, #tpu.memory_space<vmem>>
      %223 = tpu.memref_squeeze %222 : memref<1x1x128xf32, #tpu.memory_space<vmem>> -> memref<1x128xf32, #tpu.memory_space<vmem>>
      %224 = tpu.memref_slice %arg9[%64] : memref<2x!tpu.dma_semaphore, #tpu.memory_space<semaphore_mem>> -> memref<1x!tpu.dma_semaphore, #tpu.memory_space<semaphore_mem>>
      %225 = tpu.memref_squeeze %224 : memref<1x!tpu.dma_semaphore, #tpu.memory_space<semaphore_mem>> -> memref<!tpu.dma_semaphore, #tpu.memory_space<semaphore_mem>>
      tpu.enqueue_dma source(%221 : memref<1x128xf32, #tpu.memory_space<any>>) target(%223 : memref<1x128xf32, #tpu.memory_space<vmem>>) target_semaphore(%225 : memref<!tpu.dma_semaphore, #tpu.memory_space<semaphore_mem>>)
      %c20_i32 = arith.constant 20 : i32
      %226 = arith.addi %65, %c20_i32 : i32
      %227 = arith.index_cast %226 : i32 to index
      %228 = memref.load %arg2[%227] : memref<128xi32, #tpu.memory_space<smem>>
      %c0_i32_97 = arith.constant 0 : i32
      %229 = tpu.memref_slice %arg3[%228, %c0_i32_97] : memref<512x128xf32, #tpu.memory_space<any>> -> memref<1x128xf32, #tpu.memory_space<any>>
      %c20_i32_98 = arith.constant 20 : i32
      %c0_i32_99 = arith.constant 0 : i32
      %230 = tpu.memref_slice %arg8[%64, %c20_i32_98, %c0_i32_99] : memref<2x32x128xf32, #tpu.memory_space<vmem>> -> memref<1x1x128xf32, #tpu.memory_space<vmem>>
      %231 = tpu.memref_squeeze %230 : memref<1x1x128xf32, #tpu.memory_space<vmem>> -> memref<1x128xf32, #tpu.memory_space<vmem>>
      %232 = tpu.memref_slice %arg9[%64] : memref<2x!tpu.dma_semaphore, #tpu.memory_space<semaphore_mem>> -> memref<1x!tpu.dma_semaphore, #tpu.memory_space<semaphore_mem>>
      %233 = tpu.memref_squeeze %232 : memref<1x!tpu.dma_semaphore, #tpu.memory_space<semaphore_mem>> -> memref<!tpu.dma_semaphore, #tpu.memory_space<semaphore_mem>>
      tpu.enqueue_dma source(%229 : memref<1x128xf32, #tpu.memory_space<any>>) target(%231 : memref<1x128xf32, #tpu.memory_space<vmem>>) target_semaphore(%233 : memref<!tpu.dma_semaphore, #tpu.memory_space<semaphore_mem>>)
      %c21_i32 = arith.constant 21 : i32
      %234 = arith.addi %65, %c21_i32 : i32
      %235 = arith.index_cast %234 : i32 to index
      %236 = memref.load %arg2[%235] : memref<128xi32, #tpu.memory_space<smem>>
      %c0_i32_100 = arith.constant 0 : i32
      %237 = tpu.memref_slice %arg3[%236, %c0_i32_100] : memref<512x128xf32, #tpu.memory_space<any>> -> memref<1x128xf32, #tpu.memory_space<any>>
      %c21_i32_101 = arith.constant 21 : i32
      %c0_i32_102 = arith.constant 0 : i32
      %238 = tpu.memref_slice %arg8[%64, %c21_i32_101, %c0_i32_102] : memref<2x32x128xf32, #tpu.memory_space<vmem>> -> memref<1x1x128xf32, #tpu.memory_space<vmem>>
      %239 = tpu.memref_squeeze %238 : memref<1x1x128xf32, #tpu.memory_space<vmem>> -> memref<1x128xf32, #tpu.memory_space<vmem>>
      %240 = tpu.memref_slice %arg9[%64] : memref<2x!tpu.dma_semaphore, #tpu.memory_space<semaphore_mem>> -> memref<1x!tpu.dma_semaphore, #tpu.memory_space<semaphore_mem>>
      %241 = tpu.memref_squeeze %240 : memref<1x!tpu.dma_semaphore, #tpu.memory_space<semaphore_mem>> -> memref<!tpu.dma_semaphore, #tpu.memory_space<semaphore_mem>>
      tpu.enqueue_dma source(%237 : memref<1x128xf32, #tpu.memory_space<any>>) target(%239 : memref<1x128xf32, #tpu.memory_space<vmem>>) target_semaphore(%241 : memref<!tpu.dma_semaphore, #tpu.memory_space<semaphore_mem>>)
      %c22_i32 = arith.constant 22 : i32
      %242 = arith.addi %65, %c22_i32 : i32
      %243 = arith.index_cast %242 : i32 to index
      %244 = memref.load %arg2[%243] : memref<128xi32, #tpu.memory_space<smem>>
      %c0_i32_103 = arith.constant 0 : i32
      %245 = tpu.memref_slice %arg3[%244, %c0_i32_103] : memref<512x128xf32, #tpu.memory_space<any>> -> memref<1x128xf32, #tpu.memory_space<any>>
      %c22_i32_104 = arith.constant 22 : i32
      %c0_i32_105 = arith.constant 0 : i32
      %246 = tpu.memref_slice %arg8[%64, %c22_i32_104, %c0_i32_105] : memref<2x32x128xf32, #tpu.memory_space<vmem>> -> memref<1x1x128xf32, #tpu.memory_space<vmem>>
      %247 = tpu.memref_squeeze %246 : memref<1x1x128xf32, #tpu.memory_space<vmem>> -> memref<1x128xf32, #tpu.memory_space<vmem>>
      %248 = tpu.memref_slice %arg9[%64] : memref<2x!tpu.dma_semaphore, #tpu.memory_space<semaphore_mem>> -> memref<1x!tpu.dma_semaphore, #tpu.memory_space<semaphore_mem>>
      %249 = tpu.memref_squeeze %248 : memref<1x!tpu.dma_semaphore, #tpu.memory_space<semaphore_mem>> -> memref<!tpu.dma_semaphore, #tpu.memory_space<semaphore_mem>>
      tpu.enqueue_dma source(%245 : memref<1x128xf32, #tpu.memory_space<any>>) target(%247 : memref<1x128xf32, #tpu.memory_space<vmem>>) target_semaphore(%249 : memref<!tpu.dma_semaphore, #tpu.memory_space<semaphore_mem>>)
      %c23_i32 = arith.constant 23 : i32
      %250 = arith.addi %65, %c23_i32 : i32
      %251 = arith.index_cast %250 : i32 to index
      %252 = memref.load %arg2[%251] : memref<128xi32, #tpu.memory_space<smem>>
      %c0_i32_106 = arith.constant 0 : i32
      %253 = tpu.memref_slice %arg3[%252, %c0_i32_106] : memref<512x128xf32, #tpu.memory_space<any>> -> memref<1x128xf32, #tpu.memory_space<any>>
      %c23_i32_107 = arith.constant 23 : i32
      %c0_i32_108 = arith.constant 0 : i32
      %254 = tpu.memref_slice %arg8[%64, %c23_i32_107, %c0_i32_108] : memref<2x32x128xf32, #tpu.memory_space<vmem>> -> memref<1x1x128xf32, #tpu.memory_space<vmem>>
      %255 = tpu.memref_squeeze %254 : memref<1x1x128xf32, #tpu.memory_space<vmem>> -> memref<1x128xf32, #tpu.memory_space<vmem>>
      %256 = tpu.memref_slice %arg9[%64] : memref<2x!tpu.dma_semaphore, #tpu.memory_space<semaphore_mem>> -> memref<1x!tpu.dma_semaphore, #tpu.memory_space<semaphore_mem>>
      %257 = tpu.memref_squeeze %256 : memref<1x!tpu.dma_semaphore, #tpu.memory_space<semaphore_mem>> -> memref<!tpu.dma_semaphore, #tpu.memory_space<semaphore_mem>>
      tpu.enqueue_dma source(%253 : memref<1x128xf32, #tpu.memory_space<any>>) target(%255 : memref<1x128xf32, #tpu.memory_space<vmem>>) target_semaphore(%257 : memref<!tpu.dma_semaphore, #tpu.memory_space<semaphore_mem>>)
      %c24_i32 = arith.constant 24 : i32
      %258 = arith.addi %65, %c24_i32 : i32
      %259 = arith.index_cast %258 : i32 to index
      %260 = memref.load %arg2[%259] : memref<128xi32, #tpu.memory_space<smem>>
      %c0_i32_109 = arith.constant 0 : i32
      %261 = tpu.memref_slice %arg3[%260, %c0_i32_109] : memref<512x128xf32, #tpu.memory_space<any>> -> memref<1x128xf32, #tpu.memory_space<any>>
      %c24_i32_110 = arith.constant 24 : i32
      %c0_i32_111 = arith.constant 0 : i32
      %262 = tpu.memref_slice %arg8[%64, %c24_i32_110, %c0_i32_111] : memref<2x32x128xf32, #tpu.memory_space<vmem>> -> memref<1x1x128xf32, #tpu.memory_space<vmem>>
      %263 = tpu.memref_squeeze %262 : memref<1x1x128xf32, #tpu.memory_space<vmem>> -> memref<1x128xf32, #tpu.memory_space<vmem>>
      %264 = tpu.memref_slice %arg9[%64] : memref<2x!tpu.dma_semaphore, #tpu.memory_space<semaphore_mem>> -> memref<1x!tpu.dma_semaphore, #tpu.memory_space<semaphore_mem>>
      %265 = tpu.memref_squeeze %264 : memref<1x!tpu.dma_semaphore, #tpu.memory_space<semaphore_mem>> -> memref<!tpu.dma_semaphore, #tpu.memory_space<semaphore_mem>>
      tpu.enqueue_dma source(%261 : memref<1x128xf32, #tpu.memory_space<any>>) target(%263 : memref<1x128xf32, #tpu.memory_space<vmem>>) target_semaphore(%265 : memref<!tpu.dma_semaphore, #tpu.memory_space<semaphore_mem>>)
      %c25_i32 = arith.constant 25 : i32
      %266 = arith.addi %65, %c25_i32 : i32
      %267 = arith.index_cast %266 : i32 to index
      %268 = memref.load %arg2[%267] : memref<128xi32, #tpu.memory_space<smem>>
      %c0_i32_112 = arith.constant 0 : i32
      %269 = tpu.memref_slice %arg3[%268, %c0_i32_112] : memref<512x128xf32, #tpu.memory_space<any>> -> memref<1x128xf32, #tpu.memory_space<any>>
      %c25_i32_113 = arith.constant 25 : i32
      %c0_i32_114 = arith.constant 0 : i32
      %270 = tpu.memref_slice %arg8[%64, %c25_i32_113, %c0_i32_114] : memref<2x32x128xf32, #tpu.memory_space<vmem>> -> memref<1x1x128xf32, #tpu.memory_space<vmem>>
      %271 = tpu.memref_squeeze %270 : memref<1x1x128xf32, #tpu.memory_space<vmem>> -> memref<1x128xf32, #tpu.memory_space<vmem>>
      %272 = tpu.memref_slice %arg9[%64] : memref<2x!tpu.dma_semaphore, #tpu.memory_space<semaphore_mem>> -> memref<1x!tpu.dma_semaphore, #tpu.memory_space<semaphore_mem>>
      %273 = tpu.memref_squeeze %272 : memref<1x!tpu.dma_semaphore, #tpu.memory_space<semaphore_mem>> -> memref<!tpu.dma_semaphore, #tpu.memory_space<semaphore_mem>>
      tpu.enqueue_dma source(%269 : memref<1x128xf32, #tpu.memory_space<any>>) target(%271 : memref<1x128xf32, #tpu.memory_space<vmem>>) target_semaphore(%273 : memref<!tpu.dma_semaphore, #tpu.memory_space<semaphore_mem>>)
      %c26_i32 = arith.constant 26 : i32
      %274 = arith.addi %65, %c26_i32 : i32
      %275 = arith.index_cast %274 : i32 to index
      %276 = memref.load %arg2[%275] : memref<128xi32, #tpu.memory_space<smem>>
      %c0_i32_115 = arith.constant 0 : i32
      %277 = tpu.memref_slice %arg3[%276, %c0_i32_115] : memref<512x128xf32, #tpu.memory_space<any>> -> memref<1x128xf32, #tpu.memory_space<any>>
      %c26_i32_116 = arith.constant 26 : i32
      %c0_i32_117 = arith.constant 0 : i32
      %278 = tpu.memref_slice %arg8[%64, %c26_i32_116, %c0_i32_117] : memref<2x32x128xf32, #tpu.memory_space<vmem>> -> memref<1x1x128xf32, #tpu.memory_space<vmem>>
      %279 = tpu.memref_squeeze %278 : memref<1x1x128xf32, #tpu.memory_space<vmem>> -> memref<1x128xf32, #tpu.memory_space<vmem>>
      %280 = tpu.memref_slice %arg9[%64] : memref<2x!tpu.dma_semaphore, #tpu.memory_space<semaphore_mem>> -> memref<1x!tpu.dma_semaphore, #tpu.memory_space<semaphore_mem>>
      %281 = tpu.memref_squeeze %280 : memref<1x!tpu.dma_semaphore, #tpu.memory_space<semaphore_mem>> -> memref<!tpu.dma_semaphore, #tpu.memory_space<semaphore_mem>>
      tpu.enqueue_dma source(%277 : memref<1x128xf32, #tpu.memory_space<any>>) target(%279 : memref<1x128xf32, #tpu.memory_space<vmem>>) target_semaphore(%281 : memref<!tpu.dma_semaphore, #tpu.memory_space<semaphore_mem>>)
      %c27_i32 = arith.constant 27 : i32
      %282 = arith.addi %65, %c27_i32 : i32
      %283 = arith.index_cast %282 : i32 to index
      %284 = memref.load %arg2[%283] : memref<128xi32, #tpu.memory_space<smem>>
      %c0_i32_118 = arith.constant 0 : i32
      %285 = tpu.memref_slice %arg3[%284, %c0_i32_118] : memref<512x128xf32, #tpu.memory_space<any>> -> memref<1x128xf32, #tpu.memory_space<any>>
      %c27_i32_119 = arith.constant 27 : i32
      %c0_i32_120 = arith.constant 0 : i32
      %286 = tpu.memref_slice %arg8[%64, %c27_i32_119, %c0_i32_120] : memref<2x32x128xf32, #tpu.memory_space<vmem>> -> memref<1x1x128xf32, #tpu.memory_space<vmem>>
      %287 = tpu.memref_squeeze %286 : memref<1x1x128xf32, #tpu.memory_space<vmem>> -> memref<1x128xf32, #tpu.memory_space<vmem>>
      %288 = tpu.memref_slice %arg9[%64] : memref<2x!tpu.dma_semaphore, #tpu.memory_space<semaphore_mem>> -> memref<1x!tpu.dma_semaphore, #tpu.memory_space<semaphore_mem>>
      %289 = tpu.memref_squeeze %288 : memref<1x!tpu.dma_semaphore, #tpu.memory_space<semaphore_mem>> -> memref<!tpu.dma_semaphore, #tpu.memory_space<semaphore_mem>>
      tpu.enqueue_dma source(%285 : memref<1x128xf32, #tpu.memory_space<any>>) target(%287 : memref<1x128xf32, #tpu.memory_space<vmem>>) target_semaphore(%289 : memref<!tpu.dma_semaphore, #tpu.memory_space<semaphore_mem>>)
      %c28_i32 = arith.constant 28 : i32
      %290 = arith.addi %65, %c28_i32 : i32
      %291 = arith.index_cast %290 : i32 to index
      %292 = memref.load %arg2[%291] : memref<128xi32, #tpu.memory_space<smem>>
      %c0_i32_121 = arith.constant 0 : i32
      %293 = tpu.memref_slice %arg3[%292, %c0_i32_121] : memref<512x128xf32, #tpu.memory_space<any>> -> memref<1x128xf32, #tpu.memory_space<any>>
      %c28_i32_122 = arith.constant 28 : i32
      %c0_i32_123 = arith.constant 0 : i32
      %294 = tpu.memref_slice %arg8[%64, %c28_i32_122, %c0_i32_123] : memref<2x32x128xf32, #tpu.memory_space<vmem>> -> memref<1x1x128xf32, #tpu.memory_space<vmem>>
      %295 = tpu.memref_squeeze %294 : memref<1x1x128xf32, #tpu.memory_space<vmem>> -> memref<1x128xf32, #tpu.memory_space<vmem>>
      %296 = tpu.memref_slice %arg9[%64] : memref<2x!tpu.dma_semaphore, #tpu.memory_space<semaphore_mem>> -> memref<1x!tpu.dma_semaphore, #tpu.memory_space<semaphore_mem>>
      %297 = tpu.memref_squeeze %296 : memref<1x!tpu.dma_semaphore, #tpu.memory_space<semaphore_mem>> -> memref<!tpu.dma_semaphore, #tpu.memory_space<semaphore_mem>>
      tpu.enqueue_dma source(%293 : memref<1x128xf32, #tpu.memory_space<any>>) target(%295 : memref<1x128xf32, #tpu.memory_space<vmem>>) target_semaphore(%297 : memref<!tpu.dma_semaphore, #tpu.memory_space<semaphore_mem>>)
      %c29_i32 = arith.constant 29 : i32
      %298 = arith.addi %65, %c29_i32 : i32
      %299 = arith.index_cast %298 : i32 to index
      %300 = memref.load %arg2[%299] : memref<128xi32, #tpu.memory_space<smem>>
      %c0_i32_124 = arith.constant 0 : i32
      %301 = tpu.memref_slice %arg3[%300, %c0_i32_124] : memref<512x128xf32, #tpu.memory_space<any>> -> memref<1x128xf32, #tpu.memory_space<any>>
      %c29_i32_125 = arith.constant 29 : i32
      %c0_i32_126 = arith.constant 0 : i32
      %302 = tpu.memref_slice %arg8[%64, %c29_i32_125, %c0_i32_126] : memref<2x32x128xf32, #tpu.memory_space<vmem>> -> memref<1x1x128xf32, #tpu.memory_space<vmem>>
      %303 = tpu.memref_squeeze %302 : memref<1x1x128xf32, #tpu.memory_space<vmem>> -> memref<1x128xf32, #tpu.memory_space<vmem>>
      %304 = tpu.memref_slice %arg9[%64] : memref<2x!tpu.dma_semaphore, #tpu.memory_space<semaphore_mem>> -> memref<1x!tpu.dma_semaphore, #tpu.memory_space<semaphore_mem>>
      %305 = tpu.memref_squeeze %304 : memref<1x!tpu.dma_semaphore, #tpu.memory_space<semaphore_mem>> -> memref<!tpu.dma_semaphore, #tpu.memory_space<semaphore_mem>>
      tpu.enqueue_dma source(%301 : memref<1x128xf32, #tpu.memory_space<any>>) target(%303 : memref<1x128xf32, #tpu.memory_space<vmem>>) target_semaphore(%305 : memref<!tpu.dma_semaphore, #tpu.memory_space<semaphore_mem>>)
      %c30_i32 = arith.constant 30 : i32
      %306 = arith.addi %65, %c30_i32 : i32
      %307 = arith.index_cast %306 : i32 to index
      %308 = memref.load %arg2[%307] : memref<128xi32, #tpu.memory_space<smem>>
      %c0_i32_127 = arith.constant 0 : i32
      %309 = tpu.memref_slice %arg3[%308, %c0_i32_127] : memref<512x128xf32, #tpu.memory_space<any>> -> memref<1x128xf32, #tpu.memory_space<any>>
      %c30_i32_128 = arith.constant 30 : i32
      %c0_i32_129 = arith.constant 0 : i32
      %310 = tpu.memref_slice %arg8[%64, %c30_i32_128, %c0_i32_129] : memref<2x32x128xf32, #tpu.memory_space<vmem>> -> memref<1x1x128xf32, #tpu.memory_space<vmem>>
      %311 = tpu.memref_squeeze %310 : memref<1x1x128xf32, #tpu.memory_space<vmem>> -> memref<1x128xf32, #tpu.memory_space<vmem>>
      %312 = tpu.memref_slice %arg9[%64] : memref<2x!tpu.dma_semaphore, #tpu.memory_space<semaphore_mem>> -> memref<1x!tpu.dma_semaphore, #tpu.memory_space<semaphore_mem>>
      %313 = tpu.memref_squeeze %312 : memref<1x!tpu.dma_semaphore, #tpu.memory_space<semaphore_mem>> -> memref<!tpu.dma_semaphore, #tpu.memory_space<semaphore_mem>>
      tpu.enqueue_dma source(%309 : memref<1x128xf32, #tpu.memory_space<any>>) target(%311 : memref<1x128xf32, #tpu.memory_space<vmem>>) target_semaphore(%313 : memref<!tpu.dma_semaphore, #tpu.memory_space<semaphore_mem>>)
      %c31_i32 = arith.constant 31 : i32
      %314 = arith.addi %65, %c31_i32 : i32
      %315 = arith.index_cast %314 : i32 to index
      %316 = memref.load %arg2[%315] : memref<128xi32, #tpu.memory_space<smem>>
      %c0_i32_130 = arith.constant 0 : i32
      %317 = tpu.memref_slice %arg3[%316, %c0_i32_130] : memref<512x128xf32, #tpu.memory_space<any>> -> memref<1x128xf32, #tpu.memory_space<any>>
      %c31_i32_131 = arith.constant 31 : i32
      %c0_i32_132 = arith.constant 0 : i32
      %318 = tpu.memref_slice %arg8[%64, %c31_i32_131, %c0_i32_132] : memref<2x32x128xf32, #tpu.memory_space<vmem>> -> memref<1x1x128xf32, #tpu.memory_space<vmem>>
      %319 = tpu.memref_squeeze %318 : memref<1x1x128xf32, #tpu.memory_space<vmem>> -> memref<1x128xf32, #tpu.memory_space<vmem>>
      %320 = tpu.memref_slice %arg9[%64] : memref<2x!tpu.dma_semaphore, #tpu.memory_space<semaphore_mem>> -> memref<1x!tpu.dma_semaphore, #tpu.memory_space<semaphore_mem>>
      %321 = tpu.memref_squeeze %320 : memref<1x!tpu.dma_semaphore, #tpu.memory_space<semaphore_mem>> -> memref<!tpu.dma_semaphore, #tpu.memory_space<semaphore_mem>>
      tpu.enqueue_dma source(%317 : memref<1x128xf32, #tpu.memory_space<any>>) target(%319 : memref<1x128xf32, #tpu.memory_space<vmem>>) target_semaphore(%321 : memref<!tpu.dma_semaphore, #tpu.memory_space<semaphore_mem>>)
    } else {
    }
    %c0_i32_9 = arith.constant 0 : i32
    %c0_i32_10 = arith.constant 0 : i32
    %19 = tpu.memref_slice %arg8[%11, %c0_i32_9, %c0_i32_10] : memref<2x32x128xf32, #tpu.memory_space<vmem>> -> memref<1x32x128xf32, #tpu.memory_space<vmem>>
    %20 = tpu.memref_squeeze %19 : memref<1x32x128xf32, #tpu.memory_space<vmem>> -> memref<32x128xf32, #tpu.memory_space<vmem>>
    %c0_i32_11 = arith.constant 0 : i32
    %c0_i32_12 = arith.constant 0 : i32
    %21 = tpu.memref_slice %arg8[%11, %c0_i32_11, %c0_i32_12] : memref<2x32x128xf32, #tpu.memory_space<vmem>> -> memref<1x32x128xf32, #tpu.memory_space<vmem>>
    %22 = tpu.memref_squeeze %21 : memref<1x32x128xf32, #tpu.memory_space<vmem>> -> memref<32x128xf32, #tpu.memory_space<vmem>>
    %23 = tpu.memref_slice %arg9[%11] : memref<2x!tpu.dma_semaphore, #tpu.memory_space<semaphore_mem>> -> memref<1x!tpu.dma_semaphore, #tpu.memory_space<semaphore_mem>>
    %24 = tpu.memref_squeeze %23 : memref<1x!tpu.dma_semaphore, #tpu.memory_space<semaphore_mem>> -> memref<!tpu.dma_semaphore, #tpu.memory_space<semaphore_mem>>
    tpu.wait_dma2 semaphore(%24 : memref<!tpu.dma_semaphore, #tpu.memory_space<semaphore_mem>>) src(%20 : memref<32x128xf32, #tpu.memory_space<vmem>>) dst(%22 : memref<32x128xf32, #tpu.memory_space<vmem>>)
    %25 = arith.index_cast %11 : i32 to index
    %c0 = arith.constant 0 : index
    %c0_13 = arith.constant 0 : index
    %26 = vector.load %arg8[%25, %c0, %c0_13] : memref<2x32x128xf32, #tpu.memory_space<vmem>>, vector<1x32x128xf32>
    %27 = vector.shape_cast %26 : vector<1x32x128xf32> to vector<32x128xf32>
    %c0_14 = arith.constant 0 : index
    %c0_15 = arith.constant 0 : index
    %28 = vector.load %arg4[%c0_14, %c0_15] : memref<32x128xf32, #tpu.memory_space<vmem>>, vector<32x128xf32>
    %29 = arith.addf %27, %28 : vector<32x128xf32>
    %cst = arith.constant dense<0.000000e+00> : vector<32xf32>
    %30 = vector.multi_reduction <add>, %29, %cst [1] : vector<32x128xf32> to vector<32xf32>
    %31 = vector.shape_cast %30 : vector<32xf32> to vector<32x1xf32>
    %cst_16 = arith.constant 7.812500e-03 : f32
    %32 = vector.broadcast %cst_16 : f32 to vector<32x1xf32>
    %33 = arith.mulf %31, %32 : vector<32x1xf32>
    %34 = vector.broadcast %33 : vector<32x1xf32> to vector<32x128xf32>
    %35 = arith.subf %29, %34 : vector<32x128xf32>
    %36 = arith.mulf %35, %35 : vector<32x128xf32>
    %cst_17 = arith.constant dense<0.000000e+00> : vector<32xf32>
    %37 = vector.multi_reduction <add>, %36, %cst_17 [1] : vector<32x128xf32> to vector<32xf32>
    %38 = vector.shape_cast %37 : vector<32xf32> to vector<32x1xf32>
    %cst_18 = arith.constant 7.812500e-03 : f32
    %39 = vector.broadcast %cst_18 : f32 to vector<32x1xf32>
    %40 = arith.mulf %38, %39 : vector<32x1xf32>
    %cst_19 = arith.constant 9.99999974E-6 : f32
    %41 = vector.broadcast %cst_19 : f32 to vector<32x1xf32>
    %42 = arith.addf %40, %41 : vector<32x1xf32>
    %43 = math.rsqrt %42 : vector<32x1xf32>
    %44 = vector.broadcast %43 : vector<32x1xf32> to vector<32x128xf32>
    %45 = arith.mulf %35, %44 : vector<32x128xf32>
    %c0_20 = arith.constant 0 : index
    %c0_21 = arith.constant 0 : index
    %46 = vector.load %arg5[%c0_20, %c0_21] : memref<1x128xf32, #tpu.memory_space<vmem>>, vector<1x128xf32>
    %47 = vector.broadcast %46 : vector<1x128xf32> to vector<32x128xf32>
    %48 = arith.mulf %45, %47 : vector<32x128xf32>
    %c0_22 = arith.constant 0 : index
    %c0_23 = arith.constant 0 : index
    %49 = vector.load %arg6[%c0_22, %c0_23] : memref<1x128xf32, #tpu.memory_space<vmem>>, vector<1x128xf32>
    %50 = vector.broadcast %49 : vector<1x128xf32> to vector<32x128xf32>
    %51 = arith.addf %48, %50 : vector<32x128xf32>
    %c0_24 = arith.constant 0 : index
    %c0_25 = arith.constant 0 : index
    %52 = vector.load %arg7[%c0_24, %c0_25] : memref<32x128xf32, #tpu.memory_space<vmem>>, vector<32x128xf32>
    tpu.vector_store %arg7[%c0_24, %c0_25], %51 {strides = array<i32>} : memref<32x128xf32, #tpu.memory_space<vmem>>, vector<32x128xf32>,
    return
  }
  func.func @transform_1(%arg0: i32, %arg1: i32, %arg2: memref<128xi32, #tpu.memory_space<smem>>) -> (i32, i32) {
    %c0_i32 = arith.constant 0 : i32
    %c0_i32_0 = arith.constant 0 : i32
    %c0_i32_1 = arith.constant 0 : i32
    return %c0_i32, %c0_i32_0 : i32, i32
  }
  func.func @transform_2(%arg0: i32, %arg1: i32, %arg2: memref<128xi32, #tpu.memory_space<smem>>) -> (i32, i32) {
    %c0_i32 = arith.constant 0 : i32
    %c0_i32_0 = arith.constant 0 : i32
    %c0_i32_1 = arith.constant 0 : i32
    return %c0_i32, %c0_i32_0 : i32, i32
  }
  func.func @transform_3(%arg0: i32, %arg1: i32, %arg2: memref<128xi32, #tpu.memory_space<smem>>) -> (i32, i32) {
    %c0_i32 = arith.constant 0 : i32
    %c0_i32_0 = arith.constant 0 : i32
    %c0_i32_1 = arith.constant 0 : i32
    return %c0_i32, %c0_i32_0 : i32, i32
  }
  func.func @transform_4(%arg0: i32, %arg1: i32, %arg2: memref<128xi32, #tpu.memory_space<smem>>) -> (i32, i32) {
    %c2_i32 = arith.constant 2 : i32
    %0 = arith.muli %arg0, %c2_i32 : i32
    %1 = arith.addi %0, %arg1 : i32
    %c0_i32 = arith.constant 0 : i32
    %c0_i32_0 = arith.constant 0 : i32
    return %1, %c0_i32 : i32, i32
  }
}

</mosaic_0001>

<llo_original>
// kernel: tpu_custom_call.1
$region0: #{tpu_custom_call.1}
  #allocation0 [shape = 'u32[]', space=smem, size = 0x4, offset = 0x4, fixed_abs, tag = 'smem constant byte address 0x4 - core index']
  #allocation1 [shape = 'u32[72,128]{1,0:T(1,128)}', space=vmem, size = 0x9000, scoped, tag = 'internal scratch']
  #allocation2 [shape = 'f32[2,32,128]{2,1,0:T(8,128)}', space=vmem, size = 0x8000, scoped, tag = 'scratch operand']
  #allocation3 [shape = 's32[2]{0}', space=sflag, size = 0x8, scoped, tag = 'scratch operand']
  #allocation4 [shape = 's32[1]{0}', space=sflag, size = 0x4, scoped, tag = 'scoped memory for tpu_custom_call.1']
  #allocation5 [shape = 'u8[512]{0}', space=smem, size = 0x200, scoped, tag = 'prefetched SMEM operand 0']
  #allocation10 [shape = 's32[]', space=sflag, size = 0x4, offset = 0, fixed_abs, tag = 'sflag constant byte address 0x0 - dummy sync flag']
  #allocation11 [shape = 's32[]', space=sflag, size = 0x4, offset = 0, fixed_abs, tag = 'sflag constant byte address 0x0 - dummy sync flag']
  #allocation12 [shape = 'u32[]', space=smem, size = 0x4, offset = 0x44, fixed_abs, tag = 'smem constant byte address 0x44 - assertion arg 0']
  #allocation13 [shape = 'u32[]', space=smem, size = 0x4, offset = 0x48, fixed_abs, tag = 'smem constant byte address 0x48 - assertion arg 1']
  #allocation14 [shape = 's32[]', space=sflag, size = 0x4, offset = 0, fixed_abs, tag = 'sflag constant byte address 0x0 - dummy sync flag']
  #allocation15 [shape = 's32[]', space=sflag, size = 0x4, offset = 0, fixed_abs, tag = 'sflag constant byte address 0x0 - dummy sync flag']
  #allocation16 [shape = 's32[]', space=sflag, size = 0x4, offset = 0, fixed_abs, tag = 'sflag constant byte address 0x0 - dummy sync flag']
  #allocation17 [shape = 's32[]', space=sflag, size = 0x4, offset = 0, fixed_abs, tag = 'sflag constant byte address 0x0 - dummy sync flag']
  #allocation18 [shape = 's32[]', space=sflag, size = 0x4, offset = 0, fixed_abs, tag = 'sflag constant byte address 0x0 - dummy sync flag']
  #allocation19 [shape = 's32[]', space=sflag, size = 0x4, offset = 0, fixed_abs, tag = 'sflag constant byte address 0x0 - dummy sync flag']
  #allocation20 [shape = 's32[]', space=sflag, size = 0x4, offset = 0, fixed_abs, tag = 'sflag constant byte address 0x0 - dummy sync flag']
  #allocation21 [shape = 's32[]', space=sflag, size = 0x4, offset = 0, fixed_abs, tag = 'sflag constant byte address 0x0 - dummy sync flag']
  #allocation22 [shape = 's32[]', space=sflag, size = 0x4, offset = 0, fixed_abs, tag = 'sflag constant byte address 0x0 - dummy sync flag']
  #allocation23 [shape = 's32[]', space=sflag, size = 0x4, offset = 0, fixed_abs, tag = 'sflag constant byte address 0x0 - dummy sync flag']
  #allocation24 [shape = 's32[]', space=sflag, size = 0x4, offset = 0, fixed_abs, tag = 'sflag constant byte address 0x0 - dummy sync flag']
  #allocation25 [shape = 's32[]', space=sflag, size = 0x4, offset = 0, fixed_abs, tag = 'sflag constant byte address 0x0 - dummy sync flag']
  #allocation26 [shape = 's32[]', space=sflag, size = 0x4, offset = 0, fixed_abs, tag = 'sflag constant byte address 0x0 - dummy sync flag']
  #allocation27 [shape = 's32[]', space=sflag, size = 0x4, offset = 0, fixed_abs, tag = 'sflag constant byte address 0x0 - dummy sync flag']
  #allocation28 [shape = 's32[]', space=sflag, size = 0x4, offset = 0, fixed_abs, tag = 'sflag constant byte address 0x0 - dummy sync flag']
  #allocation29 [shape = 's32[]', space=sflag, size = 0x4, offset = 0, fixed_abs, tag = 'sflag constant byte address 0x0 - dummy sync flag']
  #allocation30 [shape = 's32[]', space=sflag, size = 0x4, offset = 0, fixed_abs, tag = 'sflag constant byte address 0x0 - dummy sync flag']
  #allocation31 [shape = 's32[]', space=sflag, size = 0x4, offset = 0, fixed_abs, tag = 'sflag constant byte address 0x0 - dummy sync flag']
  #allocation32 [shape = 's32[]', space=sflag, size = 0x4, offset = 0, fixed_abs, tag = 'sflag constant byte address 0x0 - dummy sync flag']
  #allocation33 [shape = 's32[]', space=sflag, size = 0x4, offset = 0, fixed_abs, tag = 'sflag constant byte address 0x0 - dummy sync flag']
  #allocation34 [shape = 's32[]', space=sflag, size = 0x4, offset = 0, fixed_abs, tag = 'sflag constant byte address 0x0 - dummy sync flag']
  #allocation35 [shape = 's32[]', space=sflag, size = 0x4, offset = 0, fixed_abs, tag = 'sflag constant byte address 0x0 - dummy sync flag']
  #allocation36 [shape = 's32[]', space=sflag, size = 0x4, offset = 0, fixed_abs, tag = 'sflag constant byte address 0x0 - dummy sync flag']
  #allocation37 [shape = 's32[]', space=sflag, size = 0x4, offset = 0, fixed_abs, tag = 'sflag constant byte address 0x0 - dummy sync flag']
  #allocation38 [shape = 's32[]', space=sflag, size = 0x4, offset = 0, fixed_abs, tag = 'sflag constant byte address 0x0 - dummy sync flag']
  #allocation39 [shape = 's32[]', space=sflag, size = 0x4, offset = 0, fixed_abs, tag = 'sflag constant byte address 0x0 - dummy sync flag']
  #allocation40 [shape = 's32[]', space=sflag, size = 0x4, offset = 0, fixed_abs, tag = 'sflag constant byte address 0x0 - dummy sync flag']
  #allocation41 [shape = 's32[]', space=sflag, size = 0x4, offset = 0, fixed_abs, tag = 'sflag constant byte address 0x0 - dummy sync flag']
  #allocation42 [shape = 's32[]', space=sflag, size = 0x4, offset = 0, fixed_abs, tag = 'sflag constant byte address 0x0 - dummy sync flag']
  #allocation43 [shape = 's32[]', space=sflag, size = 0x4, offset = 0, fixed_abs, tag = 'sflag constant byte address 0x0 - dummy sync flag']
  #allocation44 [shape = 's32[]', space=sflag, size = 0x4, offset = 0, fixed_abs, tag = 'sflag constant byte address 0x0 - dummy sync flag']
  #allocation45 [shape = 's32[]', space=sflag, size = 0x4, offset = 0, fixed_abs, tag = 'sflag constant byte address 0x0 - dummy sync flag']
  #allocation46 [shape = 's32[]', space=sflag, size = 0x4, offset = 0, fixed_abs, tag = 'sflag constant byte address 0x0 - dummy sync flag']
  #allocation47 [shape = 's32[]', space=sflag, size = 0x4, offset = 0, fixed_abs, tag = 'sflag constant byte address 0x0 - dummy sync flag']
  #allocation48 [shape = 's32[]', space=sflag, size = 0x4, offset = 0, fixed_abs, tag = 'sflag constant byte address 0x0 - dummy sync flag']
  #allocation49 [shape = 's32[]', space=sflag, size = 0x4, offset = 0, fixed_abs, tag = 'sflag constant byte address 0x0 - dummy sync flag']
  #allocation50 [shape = 's32[]', space=sflag, size = 0x4, offset = 0, fixed_abs, tag = 'sflag constant byte address 0x0 - dummy sync flag']
  #allocation51 [shape = 's32[]', space=sflag, size = 0x4, offset = 0, fixed_abs, tag = 'sflag constant byte address 0x0 - dummy sync flag']
  #allocation52 [shape = 's32[]', space=sflag, size = 0x4, offset = 0, fixed_abs, tag = 'sflag constant byte address 0x0 - dummy sync flag']
  #allocation53 [shape = 's32[]', space=sflag, size = 0x4, offset = 0, fixed_abs, tag = 'sflag constant byte address 0x0 - dummy sync flag']
  #allocation54 [shape = 's32[]', space=sflag, size = 0x4, offset = 0, fixed_abs, tag = 'sflag constant byte address 0x0 - dummy sync flag']
  #allocation55 [shape = 's32[]', space=sflag, size = 0x4, offset = 0, fixed_abs, tag = 'sflag constant byte address 0x0 - dummy sync flag']
  #allocation56 [shape = 's32[]', space=sflag, size = 0x4, offset = 0, fixed_abs, tag = 'sflag constant byte address 0x0 - dummy sync flag']
  #allocation57 [shape = 's32[]', space=sflag, size = 0x4, offset = 0, fixed_abs, tag = 'sflag constant byte address 0x0 - dummy sync flag']
  #allocation58 [shape = 's32[]', space=sflag, size = 0x4, offset = 0, fixed_abs, tag = 'sflag constant byte address 0x0 - dummy sync flag']
  #allocation59 [shape = 's32[]', space=sflag, size = 0x4, offset = 0, fixed_abs, tag = 'sflag constant byte address 0x0 - dummy sync flag']
  #allocation60 [shape = 's32[]', space=sflag, size = 0x4, offset = 0, fixed_abs, tag = 'sflag constant byte address 0x0 - dummy sync flag']
  #allocation61 [shape = 's32[]', space=sflag, size = 0x4, offset = 0, fixed_abs, tag = 'sflag constant byte address 0x0 - dummy sync flag']
  #allocation62 [shape = 's32[]', space=sflag, size = 0x4, offset = 0, fixed_abs, tag = 'sflag constant byte address 0x0 - dummy sync flag']
  #allocation63 [shape = 's32[]', space=sflag, size = 0x4, offset = 0, fixed_abs, tag = 'sflag constant byte address 0x0 - dummy sync flag']
  #allocation64 [shape = 's32[]', space=sflag, size = 0x4, offset = 0, fixed_abs, tag = 'sflag constant byte address 0x0 - dummy sync flag']
  #allocation65 [shape = 's32[]', space=sflag, size = 0x4, offset = 0, fixed_abs, tag = 'sflag constant byte address 0x0 - dummy sync flag']
  #allocation66 [shape = 's32[]', space=sflag, size = 0x4, offset = 0, fixed_abs, tag = 'sflag constant byte address 0x0 - dummy sync flag']
  #allocation67 [shape = 's32[]', space=sflag, size = 0x4, offset = 0, fixed_abs, tag = 'sflag constant byte address 0x0 - dummy sync flag']
  #allocation68 [shape = 's32[]', space=sflag, size = 0x4, offset = 0, fixed_abs, tag = 'sflag constant byte address 0x0 - dummy sync flag']
  #allocation69 [shape = 's32[]', space=sflag, size = 0x4, offset = 0, fixed_abs, tag = 'sflag constant byte address 0x0 - dummy sync flag']
  #allocation70 [shape = 's32[]', space=sflag, size = 0x4, offset = 0, fixed_abs, tag = 'sflag constant byte address 0x0 - dummy sync flag']
  #allocation71 [shape = 's32[]', space=sflag, size = 0x4, offset = 0, fixed_abs, tag = 'sflag constant byte address 0x0 - dummy sync flag']
  #allocation72 [shape = 's32[]', space=sflag, size = 0x4, offset = 0, fixed_abs, tag = 'sflag constant byte address 0x0 - dummy sync flag']
  #allocation73 [shape = 's32[]', space=sflag, size = 0x4, offset = 0, fixed_abs, tag = 'sflag constant byte address 0x0 - dummy sync flag']
  #allocation74 [shape = 's32[]', space=sflag, size = 0x4, offset = 0, fixed_abs, tag = 'sflag constant byte address 0x0 - dummy sync flag']
  #allocation75 [shape = 's32[]', space=sflag, size = 0x4, offset = 0, fixed_abs, tag = 'sflag constant byte address 0x0 - dummy sync flag']
  #allocation76 [shape = 's32[]', space=sflag, size = 0x4, offset = 0, fixed_abs, tag = 'sflag constant byte address 0x0 - dummy sync flag']
  #allocation77 [shape = 's32[]', space=sflag, size = 0x4, offset = 0, fixed_abs, tag = 'sflag constant byte address 0x0 - dummy sync flag']
  #allocation78 [shape = 's32[]', space=sflag, size = 0x4, offset = 0, fixed_abs, tag = 'sflag constant byte address 0x0 - dummy sync flag']
  #allocation79 [shape = 's32[]', space=sflag, size = 0x4, offset = 0, fixed_abs, tag = 'sflag constant byte address 0x0 - dummy sync flag']
  #allocation80 [shape = 's32[]', space=sflag, size = 0x4, offset = 0, fixed_abs, tag = 'sflag constant byte address 0x0 - dummy sync flag']
  #allocation81 [shape = 's32[]', space=sflag, size = 0x4, offset = 0, fixed_abs, tag = 'sflag constant byte address 0x0 - dummy sync flag']
  #allocation82 [shape = 's32[]', space=sflag, size = 0x4, offset = 0, fixed_abs, tag = 'sflag constant byte address 0x0 - dummy sync flag']
  #allocation83 [shape = 's32[]', space=sflag, size = 0x4, offset = 0, fixed_abs, tag = 'sflag constant byte address 0x0 - dummy sync flag']
  #allocation84 [shape = 's32[]', space=sflag, size = 0x4, offset = 0, fixed_abs, tag = 'sflag constant byte address 0x0 - dummy sync flag']
  #allocation85 [shape = 's32[]', space=sflag, size = 0x4, offset = 0, fixed_abs, tag = 'sflag constant byte address 0x0 - dummy sync flag']
  #allocation86 [shape = 's32[]', space=sflag, size = 0x4, offset = 0, fixed_abs, tag = 'sflag constant byte address 0x0 - dummy sync flag']
  #allocation87 [shape = 's32[]', space=sflag, size = 0x4, offset = 0, fixed_abs, tag = 'sflag constant byte address 0x0 - dummy sync flag']
  #allocation88 [shape = 's32[]', space=sflag, size = 0x4, offset = 0, fixed_abs, tag = 'sflag constant byte address 0x0 - dummy sync flag']
  #allocation89 [shape = 's32[]', space=sflag, size = 0x4, offset = 0, fixed_abs, tag = 'sflag constant byte address 0x0 - dummy sync flag']
  #allocation90 [shape = 's32[]', space=sflag, size = 0x4, offset = 0, fixed_abs, tag = 'sflag constant byte address 0x0 - dummy sync flag']
  #allocation91 [shape = 's32[]', space=sflag, size = 0x4, offset = 0, fixed_abs, tag = 'sflag constant byte address 0x0 - dummy sync flag']
  #allocation92 [shape = 's32[]', space=sflag, size = 0x4, offset = 0, fixed_abs, tag = 'sflag constant byte address 0x0 - dummy sync flag']
  #allocation93 [shape = 's32[]', space=sflag, size = 0x4, offset = 0, fixed_abs, tag = 'sflag constant byte address 0x0 - dummy sync flag']
  #allocation94 [shape = 's32[]', space=sflag, size = 0x4, offset = 0, fixed_abs, tag = 'sflag constant byte address 0x0 - dummy sync flag']
  #allocation95 [shape = 's32[]', space=sflag, size = 0x4, offset = 0, fixed_abs, tag = 'sflag constant byte address 0x0 - dummy sync flag']
  #allocation96 [shape = 's32[]', space=sflag, size = 0x4, offset = 0, fixed_abs, tag = 'sflag constant byte address 0x0 - dummy sync flag']
  #allocation97 [shape = 's32[]', space=sflag, size = 0x4, offset = 0, fixed_abs, tag = 'sflag constant byte address 0x0 - dummy sync flag']
  #allocation98 [shape = 's32[]', space=sflag, size = 0x4, offset = 0, fixed_abs, tag = 'sflag constant byte address 0x0 - dummy sync flag']
  #allocation99 [shape = 's32[]', space=sflag, size = 0x4, offset = 0, fixed_abs, tag = 'sflag constant byte address 0x0 - dummy sync flag']
  #allocation100 [shape = 's32[]', space=sflag, size = 0x4, offset = 0, fixed_abs, tag = 'sflag constant byte address 0x0 - dummy sync flag']
  #allocation101 [shape = 's32[]', space=sflag, size = 0x4, offset = 0, fixed_abs, tag = 'sflag constant byte address 0x0 - dummy sync flag']
  #allocation102 [shape = 's32[]', space=sflag, size = 0x4, offset = 0, fixed_abs, tag = 'sflag constant byte address 0x0 - dummy sync flag']
  #allocation103 [shape = 's32[]', space=sflag, size = 0x4, offset = 0, fixed_abs, tag = 'sflag constant byte address 0x0 - dummy sync flag']
  #allocation104 [shape = 's32[]', space=sflag, size = 0x4, offset = 0, fixed_abs, tag = 'sflag constant byte address 0x0 - dummy sync flag']
  #allocation105 [shape = 's32[]', space=sflag, size = 0x4, offset = 0, fixed_abs, tag = 'sflag constant byte address 0x0 - dummy sync flag']
  #allocation106 [shape = 's32[]', space=sflag, size = 0x4, offset = 0, fixed_abs, tag = 'sflag constant byte address 0x0 - dummy sync flag']
  #allocation107 [shape = 's32[]', space=sflag, size = 0x4, offset = 0, fixed_abs, tag = 'sflag constant byte address 0x0 - dummy sync flag']
  #allocation108 [shape = 's32[]', space=sflag, size = 0x4, offset = 0, fixed_abs, tag = 'sflag constant byte address 0x0 - dummy sync flag']
  #allocation109 [shape = 's32[]', space=sflag, size = 0x4, offset = 0, fixed_abs, tag = 'sflag constant byte address 0x0 - dummy sync flag']
  #allocation110 [shape = 's32[]', space=sflag, size = 0x4, offset = 0, fixed_abs, tag = 'sflag constant byte address 0x0 - dummy sync flag']
  #allocation111 [shape = 's32[]', space=sflag, size = 0x4, offset = 0, fixed_abs, tag = 'sflag constant byte address 0x0 - dummy sync flag']
  #allocation112 [shape = 's32[]', space=sflag, size = 0x4, offset = 0, fixed_abs, tag = 'sflag constant byte address 0x0 - dummy sync flag']
  #allocation113 [shape = 's32[]', space=sflag, size = 0x4, offset = 0, fixed_abs, tag = 'sflag constant byte address 0x0 - dummy sync flag']
  #allocation114 [shape = 's32[]', space=sflag, size = 0x4, offset = 0, fixed_abs, tag = 'sflag constant byte address 0x0 - dummy sync flag']
  #allocation115 [shape = 's32[]', space=sflag, size = 0x4, offset = 0, fixed_abs, tag = 'sflag constant byte address 0x0 - dummy sync flag']
  #allocation116 [shape = 's32[]', space=sflag, size = 0x4, offset = 0, fixed_abs, tag = 'sflag constant byte address 0x0 - dummy sync flag']
  #allocation117 [shape = 's32[]', space=sflag, size = 0x4, offset = 0, fixed_abs, tag = 'sflag constant byte address 0x0 - dummy sync flag']
  #allocation118 [shape = 's32[]', space=sflag, size = 0x4, offset = 0, fixed_abs, tag = 'sflag constant byte address 0x0 - dummy sync flag']
  #allocation119 [shape = 's32[]', space=sflag, size = 0x4, offset = 0, fixed_abs, tag = 'sflag constant byte address 0x0 - dummy sync flag']
  #allocation120 [shape = 's32[]', space=sflag, size = 0x4, offset = 0, fixed_abs, tag = 'sflag constant byte address 0x0 - dummy sync flag']
  #allocation121 [shape = 's32[]', space=sflag, size = 0x4, offset = 0, fixed_abs, tag = 'sflag constant byte address 0x0 - dummy sync flag']
  #allocation122 [shape = 's32[]', space=sflag, size = 0x4, offset = 0, fixed_abs, tag = 'sflag constant byte address 0x0 - dummy sync flag']
  #allocation123 [shape = 's32[]', space=sflag, size = 0x4, offset = 0, fixed_abs, tag = 'sflag constant byte address 0x0 - dummy sync flag']
  #allocation124 [shape = 's32[]', space=sflag, size = 0x4, offset = 0, fixed_abs, tag = 'sflag constant byte address 0x0 - dummy sync flag']
  #allocation125 [shape = 's32[]', space=sflag, size = 0x4, offset = 0, fixed_abs, tag = 'sflag constant byte address 0x0 - dummy sync flag']
  #allocation126 [shape = 's32[]', space=sflag, size = 0x4, offset = 0, fixed_abs, tag = 'sflag constant byte address 0x0 - dummy sync flag']
  #allocation127 [shape = 's32[]', space=sflag, size = 0x4, offset = 0, fixed_abs, tag = 'sflag constant byte address 0x0 - dummy sync flag']
  #allocation128 [shape = 's32[]', space=sflag, size = 0x4, offset = 0, fixed_abs, tag = 'sflag constant byte address 0x0 - dummy sync flag']
  #allocation129 [shape = 's32[]', space=sflag, size = 0x4, offset = 0, fixed_abs, tag = 'sflag constant byte address 0x0 - dummy sync flag']
  #allocation130 [shape = 's32[]', space=sflag, size = 0x4, offset = 0, fixed_abs, tag = 'sflag constant byte address 0x0 - dummy sync flag']
  #allocation131 [shape = 's32[]', space=sflag, size = 0x4, offset = 0, fixed_abs, tag = 'sflag constant byte address 0x0 - dummy sync flag']
  #allocation132 [shape = 's32[]', space=sflag, size = 0x4, offset = 0, fixed_abs, tag = 'sflag constant byte address 0x0 - dummy sync flag']
  #allocation133 [shape = 's32[]', space=sflag, size = 0x4, offset = 0, fixed_abs, tag = 'sflag constant byte address 0x0 - dummy sync flag']
  #allocation134 [shape = 's32[]', space=sflag, size = 0x4, offset = 0, fixed_abs, tag = 'sflag constant byte address 0x0 - dummy sync flag']
  #allocation135 [shape = 's32[]', space=sflag, size = 0x4, offset = 0, fixed_abs, tag = 'sflag constant byte address 0x0 - dummy sync flag']
  #allocation136 [shape = 's32[]', space=sflag, size = 0x4, offset = 0, fixed_abs, tag = 'sflag constant byte address 0x0 - dummy sync flag']
  #allocation137 [shape = 's32[]', space=sflag, size = 0x4, offset = 0, fixed_abs, tag = 'sflag constant byte address 0x0 - dummy sync flag']
  #allocation138 [shape = 's32[]', space=sflag, size = 0x4, offset = 0, fixed_abs, tag = 'sflag constant byte address 0x0 - dummy sync flag']
  #allocation139 [shape = 's32[]', space=sflag, size = 0x4, offset = 0, fixed_abs, tag = 'sflag constant byte address 0x0 - dummy sync flag']
  %s0 = inlined_call_operand.hbm [shape: s32[128], index: 0, kind: input, shape index: {}]
  %s1 = inlined_call_operand.hbm [shape: f32[512,128], index: 1, kind: input, shape index: {}]
  %s2 = inlined_call_operand.hbm [shape: f32[32,128], index: 2, kind: input, shape index: {}]
  %s3 = inlined_call_operand.vmem [shape: f32[1,128], index: 3, kind: input, shape index: {}]
  %s4 = inlined_call_operand.vmem [shape: f32[1,128], index: 4, kind: input, shape index: {}]
  %s5 = inlined_call_operand.hbm [shape: f32[128,128], index: 5, kind: output, shape index: {}]
  %s6 = sld [smem:[#allocation0]]
  $region313: #{tpu_custom_call.1} parent=0
    _
  %s8 = ssub.s32 1, %s6
  %s9 = scalar_select 0, %s8, %s6
  %s11 = sshll.u32 %s0, 4
  %s12 = int_to_ptr.hbm [resolvable:$true] %s11
  %14 = dma.hbm_to_smem %s12, 16, [#allocation5], [#allocation4]
  %16 = dma.done [#allocation4], 16
  %17 = sfence
  $region1: #{tpu_custom_call.1} parent=0
    #allocation6 [shape = 'u8[16384]{0}', space=vmem, size = 0x4000, scoped, tag = 'input window, operand 2, single buffered']
    #allocation7 [shape = 's32[2]{0}', space=sflag, size = 0x8, scoped, tag = 'scoped memory for tpu_custom_call.1']
    #allocation8 [shape = 's32[2]{0}', space=sflag, size = 0x8, scoped, tag = 'scoped memory for tpu_custom_call.1']
    #allocation9 [shape = 'u8[32768]{0}', space=vmem, size = 0x8000, scoped, tag = 'output window, operand 0']
    %18 = vsyncpa [#allocation7], 0
    %19 = vsyncpa [#allocation8], 0
    %s20 = scalar_lea.sflag [#allocation8], 1
    %21 = vsyncpa %s20, 0
    loop: start=0, step=1, limit=6
    $region2: #{tpu_custom_call.1} parent=1 // loop_pre_header
      _
    $region3: #{tpu_custom_call.1} parent=1 // loop_header
      %s23 = sphi 0, %s27
      %p24 = scmp.ge.s32.totalorder %s23, 6
      %s30 = sphi 0, %s42
      %s31 = sphi 0, %s38
      %s32 = sphi 0, %s30
      %s33 = sphi 0, %s31
      %s34 = sphi 0, %s32
      %s35 = sphi 0, %s33
      %s43 = sphi 0, %s43
      %s45 = sphi 0, %s43
      %s46 = sphi 0, %s45
      %s60 = sphi 0, %s46
      %s64 = sphi 0, %s64
      %s66 = sphi 0, %s64
      %s67 = sphi 0, %s66
      %s81 = sphi 0, %s67
      %s85 = sphi 0, %s85
      %s87 = sphi 0, %s85
      %s88 = sphi 0, %s87
      %s102 = sphi 0, %s88
      %s112 = sphi 0, %s114
      %s115 = sphi 0, %s112
      %s116 = sphi 0, %s115
      %s132 = sphi 0, %s116
    $region4: #{tpu_custom_call.1} parent=1 // loop_header_branch
      %26 = sbr.rel (%p24) target = $region8
    $region5: #{tpu_custom_call.1} parent=1 // loop_body
      %s28 = ssub.s32 %s23, 1
      %s29 = ssub.s32 %s23, 2
      %s36 = sadd.s32 1, %s31
      %p37 = scmp.ge.s32.totalorder %s36, 2
      %s38 = scalar_select %p37, 0, %s36
      %s39 = sadd.s32 1, %s30
      %s40 = scalar_select %p37, %s39, %s30
      %p41 = scmp.ge.s32.totalorder %s40, 2
      %s42 = scalar_select %p41, 0, %s40
      %s44 = sadd.s32 %s43, 1
      %p47 = scmp.eq.s32.totalorder %s23, 3
      %p48 = scmp.ne.s32.totalorder %s43, %s45
      %p49 = scmp.eq.s32.totalorder %s23, 0
      %p50 = por %p48, %p49
      %p51 = scmp.ne.s32.totalorder %s43, %s45
      %p52 = scmp.eq.s32.totalorder %s28, 3
      %p53 = por %p51, %p52
      %p54 = scmp.ne.s32.totalorder %s45, %s46
      %p55 = scmp.eq.s32.totalorder %s28, 0
      %p56 = por %p54, %p55
      %p57 = scmp.ne.s32.totalorder %s45, %s46
      %p58 = scmp.eq.s32.totalorder %s29, 3
      %p59 = por %p57, %p58
      %p61 = scmp.ne.s32.totalorder %s46, %s60
      %p62 = scmp.eq.s32.totalorder %s29, 0
      %p63 = por %p61, %p62
      %s65 = sadd.s32 %s64, 1
      %p68 = scmp.eq.s32.totalorder %s23, 3
      %p69 = scmp.ne.s32.totalorder %s64, %s66
      %p70 = scmp.eq.s32.totalorder %s23, 0
      %p71 = por %p69, %p70
      %p72 = scmp.ne.s32.totalorder %s64, %s66
      %p73 = scmp.eq.s32.totalorder %s28, 3
      %p74 = por %p72, %p73
      %p75 = scmp.ne.s32.totalorder %s66, %s67
      %p76 = scmp.eq.s32.totalorder %s28, 0
      %p77 = por %p75, %p76
      %p78 = scmp.ne.s32.totalorder %s66, %s67
      %p79 = scmp.eq.s32.totalorder %s29, 3
      %p80 = por %p78, %p79
      %p82 = scmp.ne.s32.totalorder %s67, %s81
      %p83 = scmp.eq.s32.totalorder %s29, 0
      %p84 = por %p82, %p83
      %s86 = sadd.s32 %s85, 1
      %p89 = scmp.eq.s32.totalorder %s23, 3
      %p90 = scmp.ne.s32.totalorder %s85, %s87
      %p91 = scmp.eq.s32.totalorder %s23, 0
      %p92 = por %p90, %p91
      %p93 = scmp.ne.s32.totalorder %s85, %s87
      %p94 = scmp.eq.s32.totalorder %s28, 3
      %p95 = por %p93, %p94
      %p96 = scmp.ne.s32.totalorder %s87, %s88
      %p97 = scmp.eq.s32.totalorder %s28, 0
      %p98 = por %p96, %p97
      %p99 = scmp.ne.s32.totalorder %s87, %s88
      %p100 = scmp.eq.s32.totalorder %s29, 3
      %p101 = por %p99, %p100
      %p103 = scmp.ne.s32.totalorder %s88, %s102
      %p104 = scmp.eq.s32.totalorder %s29, 0
      %p105 = por %p103, %p104
      %s106 = smul.u32 %s30, 2
      %s107 = sadd.s32 %s106, %s31
      %s108 = smul.u32 %s42, 2
      %s109 = sadd.s32 %s108, %s38
      %s110 = ssub.s32 %s107, %s109
      %p111 = scmp.eq.s32.totalorder %s110, 0
      %s113 = sadd.s32 %s112, 1
      %s114 = scalar_select %p111, %s112, %s113
      %p117 = pneg %p111
      %p118 = scmp.eq.s32.totalorder %s23, 3
      %p119 = por %p117, %p118
      %p120 = scmp.ne.s32.totalorder %s112, %s115
      %p121 = scmp.eq.s32.totalorder %s23, 0
      %p122 = por %p120, %p121
      %p123 = scmp.ne.s32.totalorder %s112, %s115
      %p124 = scmp.eq.s32.totalorder %s28, 3
      %p125 = por %p123, %p124
      %p126 = scmp.ne.s32.totalorder %s115, %s116
      %p127 = scmp.eq.s32.totalorder %s28, 0
      %p128 = por %p126, %p127
      %p129 = scmp.ne.s32.totalorder %s115, %s116
      %p130 = scmp.eq.s32.totalorder %s29, 3
      %p131 = por %p129, %p130
      %p133 = scmp.ne.s32.totalorder %s116, %s132
      %p134 = scmp.eq.s32.totalorder %s29, 0
      %p135 = por %p133, %p134
      %p136 = scmp.le.s32.totalorder 1, %s23
      %p137 = scmp.lt.s32.totalorder %s23, 5
      %p138 = pnand %p136, %p137
      %p139 = pneg %p138
      // Predicated region
      $region9: #{tpu_custom_call.1} parent=5 // pred_check
        _
      $region10: #{tpu_custom_call.1} parent=5 // pred_check_branch
        %141 = sbr.rel (%p138) target = $region12
      $region11: #{tpu_custom_call.1} parent=5 // pred_region
        %s142 = ssub.s32 %s23, 1
        // Predicated region
        $region13: #{tpu_custom_call.1} parent=11 // pred_check
          %p143 = pneg %p56
        $region14: #{tpu_custom_call.1} parent=11 // pred_check_branch
          %145 = sbr.rel (%p143) target = $region16
        $region15: #{tpu_custom_call.1} parent=11 // pred_region
          %147 = vsyncadd [#allocation7], 0
          %s148 = sshll.u32 %s2, 4
          %s149 = int_to_ptr.hbm [resolvable:$true] %s148
          %s150 = sshll.u32 [#allocation6], 4
          %s151 = int_to_ptr.vmem [resolvable:$true] %s150
          %156 = dma.hbm_to_vmem [thread:$0]  %s149, 512, %s151, [#allocation7], 128, 128, 8
        $region16: #{tpu_custom_call.1} parent=11 // pred_fallthru
          _
        // Predicated region
        $region17: #{tpu_custom_call.1} parent=11 // pred_check
          %p157 = pneg %p77
        $region18: #{tpu_custom_call.1} parent=11 // pred_check_branch
          %159 = sbr.rel (%p157) target = $region20
        $region19: #{tpu_custom_call.1} parent=11 // pred_region
          _
        $region20: #{tpu_custom_call.1} parent=11 // pred_fallthru
          _
        // Predicated region
        $region21: #{tpu_custom_call.1} parent=11 // pred_check
          %p160 = pneg %p98
        $region22: #{tpu_custom_call.1} parent=11 // pred_check_branch
          %162 = sbr.rel (%p160) target = $region24
        $region23: #{tpu_custom_call.1} parent=11 // pred_region
          _
        $region24: #{tpu_custom_call.1} parent=11 // pred_fallthru
          _
      $region12: #{tpu_custom_call.1} parent=5 // pred_fallthru
        _
      %p163 = scmp.lt.s32.totalorder %s23, 4
      // Predicated region
      $region25: #{tpu_custom_call.1} parent=5 // pred_check
        %p164 = pneg %p163
      $region26: #{tpu_custom_call.1} parent=5 // pred_check_branch
        %166 = sbr.rel (%p164) target = $region28
      $region27: #{tpu_custom_call.1} parent=5 // pred_region
        _
      $region28: #{tpu_custom_call.1} parent=5 // pred_fallthru
        _
      %p167 = scmp.le.s32.totalorder 1, %s23
      %p168 = scmp.lt.s32.totalorder %s23, 5
      %p169 = pnand %p167, %p168
      %p170 = pneg %p169
      // Predicated region
      $region29: #{tpu_custom_call.1} parent=5 // pred_check
        _
      $region30: #{tpu_custom_call.1} parent=5 // pred_check_branch
        %172 = sbr.rel (%p169) target = $region32
      $region31: #{tpu_custom_call.1} parent=5 // pred_region
        %s173 = ssub.s32 %s23, 1
        // Predicated region
        $region33: #{tpu_custom_call.1} parent=31 // pred_check
          %p174 = pneg %p56
        $region34: #{tpu_custom_call.1} parent=31 // pred_check_branch
          %176 = sbr.rel (%p174) target = $region36
        $region35: #{tpu_custom_call.1} parent=31 // pred_region
          %178 = dma.done [#allocation7], 512
        $region36: #{tpu_custom_call.1} parent=31 // pred_fallthru
          _
        %p179 = pneg %p56
        %p180 = pneg %p53
        %p181 = pneg %p77
        %p182 = pneg %p74
        %p183 = pneg %p98
        %p184 = pneg %p95
        %p185 = pneg %p128
        %p186 = pneg %p125
        %s187 = sand.u32 %s115, 1
        %s188 = scalar_lea.sflag [#allocation8], %s187
        %s189 = sand.u32 %s115, 1
        %s190 = smul.addr %s189, 32
        %s191 = scalar_lea.vmem [#allocation9], %s190
        %s192 = smul.u32 %s32, 2
        %s193 = sadd.s32 %s192, %s33
        %s194 = smul.u32 4, %s193
        %s195 = smul.u32 %s32, 2
        %s196 = sadd.s32 %s195, %s33
        %p197 = scmp.lt.s32.totalorder %s33, 0
        %s198 = ssub.s32 0, %s33
        %s199 = scalar_select %p197, %s198, %s33
        %s200 = sand.u32 %s199, 1
        %s201 = ssub.s32 0, %s200
        %s202 = scalar_select %p197, %s201, %s200
        %p203 = scmp.ne.s32.totalorder %s202, 0
        %p204 = scmp.lt.s32.totalorder %s202, 0
        %p205 = pnand %p204, %p203
        %p206 = pneg %p205
        %s207 = sadd.s32 %s202, 2
        %s208 = scalar_select %p206, %s207, %s202
        %p209 = scmp.eq.s32.totalorder %s33, 0
        // Predicated region
        $region37: #{tpu_custom_call.1} parent=31 // pred_check
          %p210 = pneg %p209
        $region38: #{tpu_custom_call.1} parent=31 // pred_check_branch
          %212 = sbr.rel (%p210) target = $region40
        $region39: #{tpu_custom_call.1} parent=31 // pred_region
          %s213 = smul.u32 %s196, 32
          %s214 = sld [smem:[#allocation5 + %s213]]
          %s215 = scalar_lea.hbm %s1, %s214
          %s216 = smul.u32 %s208, 32
          %s217 = scalar_lea.vmem [#allocation2], %s216
          %s218 = scalar_lea.sflag [#allocation3], %s208
          // Predicated region
          $region41: #{tpu_custom_call.1} parent=39 // pred_check
            _
          $region42: #{tpu_custom_call.1} parent=39 // pred_check_branch
            %220 = sbr.rel target = $region44
          $region43: #{tpu_custom_call.1} parent=39 // pred_region
            %221 = sst [smem:[#allocation12]] [#allocation11]
            %222 = sst [smem:[#allocation13]] [#allocation10]
          $region44: #{tpu_custom_call.1} parent=39 // pred_fallthru
            _
          %224 = shalt.err (0)
          %s226 = sshll.u32 %s215, 4
          %s227 = int_to_ptr.hbm [resolvable:$true] %s226
          %s228 = sshll.u32 %s217, 4
          %s229 = int_to_ptr.vmem [resolvable:$true] %s228
          %231 = dma.hbm_to_vmem [thread:$0]  %s227, 16, %s229, %s218
          %s232 = sadd.s32 %s213, 1
          %s233 = sld [smem:[#allocation5 + %s232]]
          %s234 = scalar_lea.hbm %s1, %s233
          %s235 = sadd.s32 1, %s216
          %s236 = scalar_lea.vmem [#allocation2], %s235
          // Predicated region
          $region45: #{tpu_custom_call.1} parent=39 // pred_check
            _
          $region46: #{tpu_custom_call.1} parent=39 // pred_check_branch
            %238 = sbr.rel target = $region48
          $region47: #{tpu_custom_call.1} parent=39 // pred_region
            %239 = sst [smem:[#allocation12]] [#allocation15]
            %240 = sst [smem:[#allocation13]] [#allocation14]
          $region48: #{tpu_custom_call.1} parent=39 // pred_fallthru
            _
          %242 = shalt.err (0)
          %s244 = sshll.u32 %s234, 4
          %s245 = int_to_ptr.hbm [resolvable:$true] %s244
          %s246 = sshll.u32 %s236, 4
          %s247 = int_to_ptr.vmem [resolvable:$true] %s246
          %249 = dma.hbm_to_vmem [thread:$0]  %s245, 16, %s247, %s218
          %s250 = sadd.s32 %s213, 2
          %s251 = sld [smem:[#allocation5 + %s250]]
          %s252 = scalar_lea.hbm %s1, %s251
          %s253 = sadd.s32 2, %s216
          %s254 = scalar_lea.vmem [#allocation2], %s253
          // Predicated region
          $region49: #{tpu_custom_call.1} parent=39 // pred_check
            _
          $region50: #{tpu_custom_call.1} parent=39 // pred_check_branch
            %256 = sbr.rel target = $region52
          $region51: #{tpu_custom_call.1} parent=39 // pred_region
            %257 = sst [smem:[#allocation12]] [#allocation17]
            %258 = sst [smem:[#allocation13]] [#allocation16]
          $region52: #{tpu_custom_call.1} parent=39 // pred_fallthru
            _
          %260 = shalt.err (0)
          %s262 = sshll.u32 %s252, 4
          %s263 = int_to_ptr.hbm [resolvable:$true] %s262
          %s264 = sshll.u32 %s254, 4
          %s265 = int_to_ptr.vmem [resolvable:$true] %s264
          %267 = dma.hbm_to_vmem [thread:$0]  %s263, 16, %s265, %s218
          %s268 = sadd.s32 %s213, 3
          %s269 = sld [smem:[#allocation5 + %s268]]
          %s270 = scalar_lea.hbm %s1, %s269
          %s271 = sadd.s32 3, %s216
          %s272 = scalar_lea.vmem [#allocation2], %s271
          // Predicated region
          $region53: #{tpu_custom_call.1} parent=39 // pred_check
            _
          $region54: #{tpu_custom_call.1} parent=39 // pred_check_branch
            %274 = sbr.rel target = $region56
          $region55: #{tpu_custom_call.1} parent=39 // pred_region
            %275 = sst [smem:[#allocation12]] [#allocation19]
            %276 = sst [smem:[#allocation13]] [#allocation18]
          $region56: #{tpu_custom_call.1} parent=39 // pred_fallthru
            _
          %278 = shalt.err (0)
          %s280 = sshll.u32 %s270, 4
          %s281 = int_to_ptr.hbm [resolvable:$true] %s280
          %s282 = sshll.u32 %s272, 4
          %s283 = int_to_ptr.vmem [resolvable:$true] %s282
          %285 = dma.hbm_to_vmem [thread:$0]  %s281, 16, %s283, %s218
          %s286 = sadd.s32 %s213, 4
          %s287 = sld [smem:[#allocation5 + %s286]]
          %s288 = scalar_lea.hbm %s1, %s287
          %s289 = sadd.s32 4, %s216
          %s290 = scalar_lea.vmem [#allocation2], %s289
          // Predicated region
          $region57: #{tpu_custom_call.1} parent=39 // pred_check
            _
          $region58: #{tpu_custom_call.1} parent=39 // pred_check_branch
            %292 = sbr.rel target = $region60
          $region59: #{tpu_custom_call.1} parent=39 // pred_region
            %293 = sst [smem:[#allocation12]] [#allocation21]
            %294 = sst [smem:[#allocation13]] [#allocation20]
          $region60: #{tpu_custom_call.1} parent=39 // pred_fallthru
            _
          %296 = shalt.err (0)
          %s298 = sshll.u32 %s288, 4
          %s299 = int_to_ptr.hbm [resolvable:$true] %s298
          %s300 = sshll.u32 %s290, 4
          %s301 = int_to_ptr.vmem [resolvable:$true] %s300
          %303 = dma.hbm_to_vmem [thread:$0]  %s299, 16, %s301, %s218
          %s304 = sadd.s32 %s213, 5
          %s305 = sld [smem:[#allocation5 + %s304]]
          %s306 = scalar_lea.hbm %s1, %s305
          %s307 = sadd.s32 5, %s216
          %s308 = scalar_lea.vmem [#allocation2], %s307
          // Predicated region
          $region61: #{tpu_custom_call.1} parent=39 // pred_check
            _
          $region62: #{tpu_custom_call.1} parent=39 // pred_check_branch
            %310 = sbr.rel target = $region64
          $region63: #{tpu_custom_call.1} parent=39 // pred_region
            %311 = sst [smem:[#allocation12]] [#allocation23]
            %312 = sst [smem:[#allocation13]] [#allocation22]
          $region64: #{tpu_custom_call.1} parent=39 // pred_fallthru
            _
          %314 = shalt.err (0)
          %s316 = sshll.u32 %s306, 4
          %s317 = int_to_ptr.hbm [resolvable:$true] %s316
          %s318 = sshll.u32 %s308, 4
          %s319 = int_to_ptr.vmem [resolvable:$true] %s318
          %321 = dma.hbm_to_vmem [thread:$0]  %s317, 16, %s319, %s218
          %s322 = sadd.s32 %s213, 6
          %s323 = sld [smem:[#allocation5 + %s322]]
          %s324 = scalar_lea.hbm %s1, %s323
          %s325 = sadd.s32 6, %s216
          %s326 = scalar_lea.vmem [#allocation2], %s325
          // Predicated region
          $region65: #{tpu_custom_call.1} parent=39 // pred_check
            _
          $region66: #{tpu_custom_call.1} parent=39 // pred_check_branch
            %328 = sbr.rel target = $region68
          $region67: #{tpu_custom_call.1} parent=39 // pred_region
            %329 = sst [smem:[#allocation12]] [#allocation25]
            %330 = sst [smem:[#allocation13]] [#allocation24]
          $region68: #{tpu_custom_call.1} parent=39 // pred_fallthru
            _
          %332 = shalt.err (0)
          %s334 = sshll.u32 %s324, 4
          %s335 = int_to_ptr.hbm [resolvable:$true] %s334
          %s336 = sshll.u32 %s326, 4
          %s337 = int_to_ptr.vmem [resolvable:$true] %s336
          %339 = dma.hbm_to_vmem [thread:$0]  %s335, 16, %s337, %s218
          %s340 = sadd.s32 %s213, 7
          %s341 = sld [smem:[#allocation5 + %s340]]
          %s342 = scalar_lea.hbm %s1, %s341
          %s343 = sadd.s32 7, %s216
          %s344 = scalar_lea.vmem [#allocation2], %s343
          // Predicated region
          $region69: #{tpu_custom_call.1} parent=39 // pred_check
            _
          $region70: #{tpu_custom_call.1} parent=39 // pred_check_branch
            %346 = sbr.rel target = $region72
          $region71: #{tpu_custom_call.1} parent=39 // pred_region
            %347 = sst [smem:[#allocation12]] [#allocation27]
            %348 = sst [smem:[#allocation13]] [#allocation26]
          $region72: #{tpu_custom_call.1} parent=39 // pred_fallthru
            _
          %350 = shalt.err (0)
          %s352 = sshll.u32 %s342, 4
          %s353 = int_to_ptr.hbm [resolvable:$true] %s352
          %s354 = sshll.u32 %s344, 4
          %s355 = int_to_ptr.vmem [resolvable:$true] %s354
          %357 = dma.hbm_to_vmem [thread:$0]  %s353, 16, %s355, %s218
          %s358 = sadd.s32 %s213, 8
          %s359 = sld [smem:[#allocation5 + %s358]]
          %s360 = scalar_lea.hbm %s1, %s359
          %s361 = sadd.s32 8, %s216
          %s362 = scalar_lea.vmem [#allocation2], %s361
          // Predicated region
          $region73: #{tpu_custom_call.1} parent=39 // pred_check
            _
          $region74: #{tpu_custom_call.1} parent=39 // pred_check_branch
            %364 = sbr.rel target = $region76
          $region75: #{tpu_custom_call.1} parent=39 // pred_region
            %365 = sst [smem:[#allocation12]] [#allocation29]
            %366 = sst [smem:[#allocation13]] [#allocation28]
          $region76: #{tpu_custom_call.1} parent=39 // pred_fallthru
            _
          %368 = shalt.err (0)
          %s370 = sshll.u32 %s360, 4
          %s371 = int_to_ptr.hbm [resolvable:$true] %s370
          %s372 = sshll.u32 %s362, 4
          %s373 = int_to_ptr.vmem [resolvable:$true] %s372
          %375 = dma.hbm_to_vmem [thread:$0]  %s371, 16, %s373, %s218
          %s376 = sadd.s32 %s213, 9
          %s377 = sld [smem:[#allocation5 + %s376]]
          %s378 = scalar_lea.hbm %s1, %s377
          %s379 = sadd.s32 9, %s216
          %s380 = scalar_lea.vmem [#allocation2], %s379
          // Predicated region
          $region77: #{tpu_custom_call.1} parent=39 // pred_check
            _
          $region78: #{tpu_custom_call.1} parent=39 // pred_check_branch
            %382 = sbr.rel target = $region80
          $region79: #{tpu_custom_call.1} parent=39 // pred_region
            %383 = sst [smem:[#allocation12]] [#allocation31]
            %384 = sst [smem:[#allocation13]] [#allocation30]
          $region80: #{tpu_custom_call.1} parent=39 // pred_fallthru
            _
          %386 = shalt.err (0)
          %s388 = sshll.u32 %s378, 4
          %s389 = int_to_ptr.hbm [resolvable:$true] %s388
          %s390 = sshll.u32 %s380, 4
          %s391 = int_to_ptr.vmem [resolvable:$true] %s390
          %393 = dma.hbm_to_vmem [thread:$0]  %s389, 16, %s391, %s218
          %s394 = sadd.s32 %s213, 10
          %s395 = sld [smem:[#allocation5 + %s394]]
          %s396 = scalar_lea.hbm %s1, %s395
          %s397 = sadd.s32 10, %s216
          %s398 = scalar_lea.vmem [#allocation2], %s397
          // Predicated region
          $region81: #{tpu_custom_call.1} parent=39 // pred_check
            _
          $region82: #{tpu_custom_call.1} parent=39 // pred_check_branch
            %400 = sbr.rel target = $region84
          $region83: #{tpu_custom_call.1} parent=39 // pred_region
            %401 = sst [smem:[#allocation12]] [#allocation33]
            %402 = sst [smem:[#allocation13]] [#allocation32]
          $region84: #{tpu_custom_call.1} parent=39 // pred_fallthru
            _
          %404 = shalt.err (0)
          %s406 = sshll.u32 %s396, 4
          %s407 = int_to_ptr.hbm [resolvable:$true] %s406
          %s408 = sshll.u32 %s398, 4
          %s409 = int_to_ptr.vmem [resolvable:$true] %s408
          %411 = dma.hbm_to_vmem [thread:$0]  %s407, 16, %s409, %s218
          %s412 = sadd.s32 %s213, 11
          %s413 = sld [smem:[#allocation5 + %s412]]
          %s414 = scalar_lea.hbm %s1, %s413
          %s415 = sadd.s32 11, %s216
          %s416 = scalar_lea.vmem [#allocation2], %s415
          // Predicated region
          $region85: #{tpu_custom_call.1} parent=39 // pred_check
            _
          $region86: #{tpu_custom_call.1} parent=39 // pred_check_branch
            %418 = sbr.rel target = $region88
          $region87: #{tpu_custom_call.1} parent=39 // pred_region
            %419 = sst [smem:[#allocation12]] [#allocation35]
            %420 = sst [smem:[#allocation13]] [#allocation34]
          $region88: #{tpu_custom_call.1} parent=39 // pred_fallthru
            _
          %422 = shalt.err (0)
          %s424 = sshll.u32 %s414, 4
          %s425 = int_to_ptr.hbm [resolvable:$true] %s424
          %s426 = sshll.u32 %s416, 4
          %s427 = int_to_ptr.vmem [resolvable:$true] %s426
          %429 = dma.hbm_to_vmem [thread:$0]  %s425, 16, %s427, %s218
          %s430 = sadd.s32 %s213, 12
          %s431 = sld [smem:[#allocation5 + %s430]]
          %s432 = scalar_lea.hbm %s1, %s431
          %s433 = sadd.s32 12, %s216
          %s434 = scalar_lea.vmem [#allocation2], %s433
          // Predicated region
          $region89: #{tpu_custom_call.1} parent=39 // pred_check
            _
          $region90: #{tpu_custom_call.1} parent=39 // pred_check_branch
            %436 = sbr.rel target = $region92
          $region91: #{tpu_custom_call.1} parent=39 // pred_region
            %437 = sst [smem:[#allocation12]] [#allocation37]
            %438 = sst [smem:[#allocation13]] [#allocation36]
          $region92: #{tpu_custom_call.1} parent=39 // pred_fallthru
            _
          %440 = shalt.err (0)
          %s442 = sshll.u32 %s432, 4
          %s443 = int_to_ptr.hbm [resolvable:$true] %s442
          %s444 = sshll.u32 %s434, 4
          %s445 = int_to_ptr.vmem [resolvable:$true] %s444
          %447 = dma.hbm_to_vmem [thread:$0]  %s443, 16, %s445, %s218
          %s448 = sadd.s32 %s213, 13
          %s449 = sld [smem:[#allocation5 + %s448]]
          %s450 = scalar_lea.hbm %s1, %s449
          %s451 = sadd.s32 13, %s216
          %s452 = scalar_lea.vmem [#allocation2], %s451
          // Predicated region
          $region93: #{tpu_custom_call.1} parent=39 // pred_check
            _
          $region94: #{tpu_custom_call.1} parent=39 // pred_check_branch
            %454 = sbr.rel target = $region96
          $region95: #{tpu_custom_call.1} parent=39 // pred_region
            %455 = sst [smem:[#allocation12]] [#allocation39]
            %456 = sst [smem:[#allocation13]] [#allocation38]
          $region96: #{tpu_custom_call.1} parent=39 // pred_fallthru
            _
          %458 = shalt.err (0)
          %s460 = sshll.u32 %s450, 4
          %s461 = int_to_ptr.hbm [resolvable:$true] %s460
          %s462 = sshll.u32 %s452, 4
          %s463 = int_to_ptr.vmem [resolvable:$true] %s462
          %465 = dma.hbm_to_vmem [thread:$0]  %s461, 16, %s463, %s218
          %s466 = sadd.s32 %s213, 14
          %s467 = sld [smem:[#allocation5 + %s466]]
          %s468 = scalar_lea.hbm %s1, %s467
          %s469 = sadd.s32 14, %s216
          %s470 = scalar_lea.vmem [#allocation2], %s469
          // Predicated region
          $region97: #{tpu_custom_call.1} parent=39 // pred_check
            _
          $region98: #{tpu_custom_call.1} parent=39 // pred_check_branch
            %472 = sbr.rel target = $region100
          $region99: #{tpu_custom_call.1} parent=39 // pred_region
            %473 = sst [smem:[#allocation12]] [#allocation41]
            %474 = sst [smem:[#allocation13]] [#allocation40]
          $region100: #{tpu_custom_call.1} parent=39 // pred_fallthru
            _
          %476 = shalt.err (0)
          %s478 = sshll.u32 %s468, 4
          %s479 = int_to_ptr.hbm [resolvable:$true] %s478
          %s480 = sshll.u32 %s470, 4
          %s481 = int_to_ptr.vmem [resolvable:$true] %s480
          %483 = dma.hbm_to_vmem [thread:$0]  %s479, 16, %s481, %s218
          %s484 = sadd.s32 %s213, 15
          %s485 = sld [smem:[#allocation5 + %s484]]
          %s486 = scalar_lea.hbm %s1, %s485
          %s487 = sadd.s32 15, %s216
          %s488 = scalar_lea.vmem [#allocation2], %s487
          // Predicated region
          $region101: #{tpu_custom_call.1} parent=39 // pred_check
            _
          $region102: #{tpu_custom_call.1} parent=39 // pred_check_branch
            %490 = sbr.rel target = $region104
          $region103: #{tpu_custom_call.1} parent=39 // pred_region
            %491 = sst [smem:[#allocation12]] [#allocation43]
            %492 = sst [smem:[#allocation13]] [#allocation42]
          $region104: #{tpu_custom_call.1} parent=39 // pred_fallthru
            _
          %494 = shalt.err (0)
          %s496 = sshll.u32 %s486, 4
          %s497 = int_to_ptr.hbm [resolvable:$true] %s496
          %s498 = sshll.u32 %s488, 4
          %s499 = int_to_ptr.vmem [resolvable:$true] %s498
          %501 = dma.hbm_to_vmem [thread:$0]  %s497, 16, %s499, %s218
          %s502 = sadd.s32 %s213, 16
          %s503 = sld [smem:[#allocation5 + %s502]]
          %s504 = scalar_lea.hbm %s1, %s503
          %s505 = sadd.s32 16, %s216
          %s506 = scalar_lea.vmem [#allocation2], %s505
          // Predicated region
          $region105: #{tpu_custom_call.1} parent=39 // pred_check
            _
          $region106: #{tpu_custom_call.1} parent=39 // pred_check_branch
            %508 = sbr.rel target = $region108
          $region107: #{tpu_custom_call.1} parent=39 // pred_region
            %509 = sst [smem:[#allocation12]] [#allocation45]
            %510 = sst [smem:[#allocation13]] [#allocation44]
          $region108: #{tpu_custom_call.1} parent=39 // pred_fallthru
            _
          %512 = shalt.err (0)
          %s514 = sshll.u32 %s504, 4
          %s515 = int_to_ptr.hbm [resolvable:$true] %s514
          %s516 = sshll.u32 %s506, 4
          %s517 = int_to_ptr.vmem [resolvable:$true] %s516
          %519 = dma.hbm_to_vmem [thread:$0]  %s515, 16, %s517, %s218
          %s520 = sadd.s32 %s213, 17
          %s521 = sld [smem:[#allocation5 + %s520]]
          %s522 = scalar_lea.hbm %s1, %s521
          %s523 = sadd.s32 17, %s216
          %s524 = scalar_lea.vmem [#allocation2], %s523
          // Predicated region
          $region109: #{tpu_custom_call.1} parent=39 // pred_check
            _
          $region110: #{tpu_custom_call.1} parent=39 // pred_check_branch
            %526 = sbr.rel target = $region112
          $region111: #{tpu_custom_call.1} parent=39 // pred_region
            %527 = sst [smem:[#allocation12]] [#allocation47]
            %528 = sst [smem:[#allocation13]] [#allocation46]
          $region112: #{tpu_custom_call.1} parent=39 // pred_fallthru
            _
          %530 = shalt.err (0)
          %s532 = sshll.u32 %s522, 4
          %s533 = int_to_ptr.hbm [resolvable:$true] %s532
          %s534 = sshll.u32 %s524, 4
          %s535 = int_to_ptr.vmem [resolvable:$true] %s534
          %537 = dma.hbm_to_vmem [thread:$0]  %s533, 16, %s535, %s218
          %s538 = sadd.s32 %s213, 18
          %s539 = sld [smem:[#allocation5 + %s538]]
          %s540 = scalar_lea.hbm %s1, %s539
          %s541 = sadd.s32 18, %s216
          %s542 = scalar_lea.vmem [#allocation2], %s541
          // Predicated region
          $region113: #{tpu_custom_call.1} parent=39 // pred_check
            _
          $region114: #{tpu_custom_call.1} parent=39 // pred_check_branch
            %544 = sbr.rel target = $region116
          $region115: #{tpu_custom_call.1} parent=39 // pred_region
            %545 = sst [smem:[#allocation12]] [#allocation49]
            %546 = sst [smem:[#allocation13]] [#allocation48]
          $region116: #{tpu_custom_call.1} parent=39 // pred_fallthru
            _
          %548 = shalt.err (0)
          %s550 = sshll.u32 %s540, 4
          %s551 = int_to_ptr.hbm [resolvable:$true] %s550
          %s552 = sshll.u32 %s542, 4
          %s553 = int_to_ptr.vmem [resolvable:$true] %s552
          %555 = dma.hbm_to_vmem [thread:$0]  %s551, 16, %s553, %s218
          %s556 = sadd.s32 %s213, 19
          %s557 = sld [smem:[#allocation5 + %s556]]
          %s558 = scalar_lea.hbm %s1, %s557
          %s559 = sadd.s32 19, %s216
          %s560 = scalar_lea.vmem [#allocation2], %s559
          // Predicated region
          $region117: #{tpu_custom_call.1} parent=39 // pred_check
            _
          $region118: #{tpu_custom_call.1} parent=39 // pred_check_branch
            %562 = sbr.rel target = $region120
          $region119: #{tpu_custom_call.1} parent=39 // pred_region
            %563 = sst [smem:[#allocation12]] [#allocation51]
            %564 = sst [smem:[#allocation13]] [#allocation50]
          $region120: #{tpu_custom_call.1} parent=39 // pred_fallthru
            _
          %566 = shalt.err (0)
          %s568 = sshll.u32 %s558, 4
          %s569 = int_to_ptr.hbm [resolvable:$true] %s568
          %s570 = sshll.u32 %s560, 4
          %s571 = int_to_ptr.vmem [resolvable:$true] %s570
          %573 = dma.hbm_to_vmem [thread:$0]  %s569, 16, %s571, %s218
          %s574 = sadd.s32 %s213, 20
          %s575 = sld [smem:[#allocation5 + %s574]]
          %s576 = scalar_lea.hbm %s1, %s575
          %s577 = sadd.s32 20, %s216
          %s578 = scalar_lea.vmem [#allocation2], %s577
          // Predicated region
          $region121: #{tpu_custom_call.1} parent=39 // pred_check
            _
          $region122: #{tpu_custom_call.1} parent=39 // pred_check_branch
            %580 = sbr.rel target = $region124
          $region123: #{tpu_custom_call.1} parent=39 // pred_region
            %581 = sst [smem:[#allocation12]] [#allocation53]
            %582 = sst [smem:[#allocation13]] [#allocation52]
          $region124: #{tpu_custom_call.1} parent=39 // pred_fallthru
            _
          %584 = shalt.err (0)
          %s586 = sshll.u32 %s576, 4
          %s587 = int_to_ptr.hbm [resolvable:$true] %s586
          %s588 = sshll.u32 %s578, 4
          %s589 = int_to_ptr.vmem [resolvable:$true] %s588
          %591 = dma.hbm_to_vmem [thread:$0]  %s587, 16, %s589, %s218
          %s592 = sadd.s32 %s213, 21
          %s593 = sld [smem:[#allocation5 + %s592]]
          %s594 = scalar_lea.hbm %s1, %s593
          %s595 = sadd.s32 21, %s216
          %s596 = scalar_lea.vmem [#allocation2], %s595
          // Predicated region
          $region125: #{tpu_custom_call.1} parent=39 // pred_check
            _
          $region126: #{tpu_custom_call.1} parent=39 // pred_check_branch
            %598 = sbr.rel target = $region128
          $region127: #{tpu_custom_call.1} parent=39 // pred_region
            %599 = sst [smem:[#allocation12]] [#allocation55]
            %600 = sst [smem:[#allocation13]] [#allocation54]
          $region128: #{tpu_custom_call.1} parent=39 // pred_fallthru
            _
          %602 = shalt.err (0)
          %s604 = sshll.u32 %s594, 4
          %s605 = int_to_ptr.hbm [resolvable:$true] %s604
          %s606 = sshll.u32 %s596, 4
          %s607 = int_to_ptr.vmem [resolvable:$true] %s606
          %609 = dma.hbm_to_vmem [thread:$0]  %s605, 16, %s607, %s218
          %s610 = sadd.s32 %s213, 22
          %s611 = sld [smem:[#allocation5 + %s610]]
          %s612 = scalar_lea.hbm %s1, %s611
          %s613 = sadd.s32 22, %s216
          %s614 = scalar_lea.vmem [#allocation2], %s613
          // Predicated region
          $region129: #{tpu_custom_call.1} parent=39 // pred_check
            _
          $region130: #{tpu_custom_call.1} parent=39 // pred_check_branch
            %616 = sbr.rel target = $region132
          $region131: #{tpu_custom_call.1} parent=39 // pred_region
            %617 = sst [smem:[#allocation12]] [#allocation57]
            %618 = sst [smem:[#allocation13]] [#allocation56]
          $region132: #{tpu_custom_call.1} parent=39 // pred_fallthru
            _
          %620 = shalt.err (0)
          %s622 = sshll.u32 %s612, 4
          %s623 = int_to_ptr.hbm [resolvable:$true] %s622
          %s624 = sshll.u32 %s614, 4
          %s625 = int_to_ptr.vmem [resolvable:$true] %s624
          %627 = dma.hbm_to_vmem [thread:$0]  %s623, 16, %s625, %s218
          %s628 = sadd.s32 %s213, 23
          %s629 = sld [smem:[#allocation5 + %s628]]
          %s630 = scalar_lea.hbm %s1, %s629
          %s631 = sadd.s32 23, %s216
          %s632 = scalar_lea.vmem [#allocation2], %s631
          // Predicated region
          $region133: #{tpu_custom_call.1} parent=39 // pred_check
            _
          $region134: #{tpu_custom_call.1} parent=39 // pred_check_branch
            %634 = sbr.rel target = $region136
          $region135: #{tpu_custom_call.1} parent=39 // pred_region
            %635 = sst [smem:[#allocation12]] [#allocation59]
            %636 = sst [smem:[#allocation13]] [#allocation58]
          $region136: #{tpu_custom_call.1} parent=39 // pred_fallthru
            _
          %638 = shalt.err (0)
          %s640 = sshll.u32 %s630, 4
          %s641 = int_to_ptr.hbm [resolvable:$true] %s640
          %s642 = sshll.u32 %s632, 4
          %s643 = int_to_ptr.vmem [resolvable:$true] %s642
          %645 = dma.hbm_to_vmem [thread:$0]  %s641, 16, %s643, %s218
          %s646 = sadd.s32 %s213, 24
          %s647 = sld [smem:[#allocation5 + %s646]]
          %s648 = scalar_lea.hbm %s1, %s647
          %s649 = sadd.s32 24, %s216
          %s650 = scalar_lea.vmem [#allocation2], %s649
          // Predicated region
          $region137: #{tpu_custom_call.1} parent=39 // pred_check
            _
          $region138: #{tpu_custom_call.1} parent=39 // pred_check_branch
            %652 = sbr.rel target = $region140
          $region139: #{tpu_custom_call.1} parent=39 // pred_region
            %653 = sst [smem:[#allocation12]] [#allocation61]
            %654 = sst [smem:[#allocation13]] [#allocation60]
          $region140: #{tpu_custom_call.1} parent=39 // pred_fallthru
            _
          %656 = shalt.err (0)
          %s658 = sshll.u32 %s648, 4
          %s659 = int_to_ptr.hbm [resolvable:$true] %s658
          %s660 = sshll.u32 %s650, 4
          %s661 = int_to_ptr.vmem [resolvable:$true] %s660
          %663 = dma.hbm_to_vmem [thread:$0]  %s659, 16, %s661, %s218
          %s664 = sadd.s32 %s213, 25
          %s665 = sld [smem:[#allocation5 + %s664]]
          %s666 = scalar_lea.hbm %s1, %s665
          %s667 = sadd.s32 25, %s216
          %s668 = scalar_lea.vmem [#allocation2], %s667
          // Predicated region
          $region141: #{tpu_custom_call.1} parent=39 // pred_check
            _
          $region142: #{tpu_custom_call.1} parent=39 // pred_check_branch
            %670 = sbr.rel target = $region144
          $region143: #{tpu_custom_call.1} parent=39 // pred_region
            %671 = sst [smem:[#allocation12]] [#allocation63]
            %672 = sst [smem:[#allocation13]] [#allocation62]
          $region144: #{tpu_custom_call.1} parent=39 // pred_fallthru
            _
          %674 = shalt.err (0)
          %s676 = sshll.u32 %s666, 4
          %s677 = int_to_ptr.hbm [resolvable:$true] %s676
          %s678 = sshll.u32 %s668, 4
          %s679 = int_to_ptr.vmem [resolvable:$true] %s678
          %681 = dma.hbm_to_vmem [thread:$0]  %s677, 16, %s679, %s218
          %s682 = sadd.s32 %s213, 26
          %s683 = sld [smem:[#allocation5 + %s682]]
          %s684 = scalar_lea.hbm %s1, %s683
          %s685 = sadd.s32 26, %s216
          %s686 = scalar_lea.vmem [#allocation2], %s685
          // Predicated region
          $region145: #{tpu_custom_call.1} parent=39 // pred_check
            _
          $region146: #{tpu_custom_call.1} parent=39 // pred_check_branch
            %688 = sbr.rel target = $region148
          $region147: #{tpu_custom_call.1} parent=39 // pred_region
            %689 = sst [smem:[#allocation12]] [#allocation65]
            %690 = sst [smem:[#allocation13]] [#allocation64]
          $region148: #{tpu_custom_call.1} parent=39 // pred_fallthru
            _
          %692 = shalt.err (0)
          %s694 = sshll.u32 %s684, 4
          %s695 = int_to_ptr.hbm [resolvable:$true] %s694
          %s696 = sshll.u32 %s686, 4
          %s697 = int_to_ptr.vmem [resolvable:$true] %s696
          %699 = dma.hbm_to_vmem [thread:$0]  %s695, 16, %s697, %s218
          %s700 = sadd.s32 %s213, 27
          %s701 = sld [smem:[#allocation5 + %s700]]
          %s702 = scalar_lea.hbm %s1, %s701
          %s703 = sadd.s32 27, %s216
          %s704 = scalar_lea.vmem [#allocation2], %s703
          // Predicated region
          $region149: #{tpu_custom_call.1} parent=39 // pred_check
            _
          $region150: #{tpu_custom_call.1} parent=39 // pred_check_branch
            %706 = sbr.rel target = $region152
          $region151: #{tpu_custom_call.1} parent=39 // pred_region
            %707 = sst [smem:[#allocation12]] [#allocation67]
            %708 = sst [smem:[#allocation13]] [#allocation66]
          $region152: #{tpu_custom_call.1} parent=39 // pred_fallthru
            _
          %710 = shalt.err (0)
          %s712 = sshll.u32 %s702, 4
          %s713 = int_to_ptr.hbm [resolvable:$true] %s712
          %s714 = sshll.u32 %s704, 4
          %s715 = int_to_ptr.vmem [resolvable:$true] %s714
          %717 = dma.hbm_to_vmem [thread:$0]  %s713, 16, %s715, %s218
          %s718 = sadd.s32 %s213, 28
          %s719 = sld [smem:[#allocation5 + %s718]]
          %s720 = scalar_lea.hbm %s1, %s719
          %s721 = sadd.s32 28, %s216
          %s722 = scalar_lea.vmem [#allocation2], %s721
          // Predicated region
          $region153: #{tpu_custom_call.1} parent=39 // pred_check
            _
          $region154: #{tpu_custom_call.1} parent=39 // pred_check_branch
            %724 = sbr.rel target = $region156
          $region155: #{tpu_custom_call.1} parent=39 // pred_region
            %725 = sst [smem:[#allocation12]] [#allocation69]
            %726 = sst [smem:[#allocation13]] [#allocation68]
          $region156: #{tpu_custom_call.1} parent=39 // pred_fallthru
            _
          %728 = shalt.err (0)
          %s730 = sshll.u32 %s720, 4
          %s731 = int_to_ptr.hbm [resolvable:$true] %s730
          %s732 = sshll.u32 %s722, 4
          %s733 = int_to_ptr.vmem [resolvable:$true] %s732
          %735 = dma.hbm_to_vmem [thread:$0]  %s731, 16, %s733, %s218
          %s736 = sadd.s32 %s213, 29
          %s737 = sld [smem:[#allocation5 + %s736]]
          %s738 = scalar_lea.hbm %s1, %s737
          %s739 = sadd.s32 29, %s216
          %s740 = scalar_lea.vmem [#allocation2], %s739
          // Predicated region
          $region157: #{tpu_custom_call.1} parent=39 // pred_check
            _
          $region158: #{tpu_custom_call.1} parent=39 // pred_check_branch
            %742 = sbr.rel target = $region160
          $region159: #{tpu_custom_call.1} parent=39 // pred_region
            %743 = sst [smem:[#allocation12]] [#allocation71]
            %744 = sst [smem:[#allocation13]] [#allocation70]
          $region160: #{tpu_custom_call.1} parent=39 // pred_fallthru
            _
          %746 = shalt.err (0)
          %s748 = sshll.u32 %s738, 4
          %s749 = int_to_ptr.hbm [resolvable:$true] %s748
          %s750 = sshll.u32 %s740, 4
          %s751 = int_to_ptr.vmem [resolvable:$true] %s750
          %753 = dma.hbm_to_vmem [thread:$0]  %s749, 16, %s751, %s218
          %s754 = sadd.s32 %s213, 30
          %s755 = sld [smem:[#allocation5 + %s754]]
          %s756 = scalar_lea.hbm %s1, %s755
          %s757 = sadd.s32 30, %s216
          %s758 = scalar_lea.vmem [#allocation2], %s757
          // Predicated region
          $region161: #{tpu_custom_call.1} parent=39 // pred_check
            _
          $region162: #{tpu_custom_call.1} parent=39 // pred_check_branch
            %760 = sbr.rel target = $region164
          $region163: #{tpu_custom_call.1} parent=39 // pred_region
            %761 = sst [smem:[#allocation12]] [#allocation73]
            %762 = sst [smem:[#allocation13]] [#allocation72]
          $region164: #{tpu_custom_call.1} parent=39 // pred_fallthru
            _
          %764 = shalt.err (0)
          %s766 = sshll.u32 %s756, 4
          %s767 = int_to_ptr.hbm [resolvable:$true] %s766
          %s768 = sshll.u32 %s758, 4
          %s769 = int_to_ptr.vmem [resolvable:$true] %s768
          %771 = dma.hbm_to_vmem [thread:$0]  %s767, 16, %s769, %s218
          %s772 = sadd.s32 %s213, 31
          %s773 = sld [smem:[#allocation5 + %s772]]
          %s774 = scalar_lea.hbm %s1, %s773
          %s775 = sadd.s32 31, %s216
          %s776 = scalar_lea.vmem [#allocation2], %s775
          // Predicated region
          $region165: #{tpu_custom_call.1} parent=39 // pred_check
            _
          $region166: #{tpu_custom_call.1} parent=39 // pred_check_branch
            %778 = sbr.rel target = $region168
          $region167: #{tpu_custom_call.1} parent=39 // pred_region
            %779 = sst [smem:[#allocation12]] [#allocation75]
            %780 = sst [smem:[#allocation13]] [#allocation74]
          $region168: #{tpu_custom_call.1} parent=39 // pred_fallthru
            _
          %782 = shalt.err (0)
          %s784 = sshll.u32 %s774, 4
          %s785 = int_to_ptr.hbm [resolvable:$true] %s784
          %s786 = sshll.u32 %s776, 4
          %s787 = int_to_ptr.vmem [resolvable:$true] %s786
          %789 = dma.hbm_to_vmem [thread:$0]  %s785, 16, %s787, %s218
        $region40: #{tpu_custom_call.1} parent=31 // pred_fallthru
          _
        %s790 = sadd.s32 %s33, 1
        %p791 = scmp.lt.s32.totalorder %s790, 2
        // Predicated region
        $region169: #{tpu_custom_call.1} parent=31 // pred_check
          %p792 = pneg %p791
        $region170: #{tpu_custom_call.1} parent=31 // pred_check_branch
          %794 = sbr.rel (%p792) target = $region172
        $region171: #{tpu_custom_call.1} parent=31 // pred_region
          %s795 = sadd.s32 %s196, 1
          %p796 = scmp.lt.s32.totalorder %s790, 0
          %s797 = ssub.s32 0, %s790
          %s798 = scalar_select %p796, %s797, %s790
          %s799 = sand.u32 %s798, 1
          %s800 = ssub.s32 0, %s799
          %s801 = scalar_select %p796, %s800, %s799
          %p802 = scmp.ne.s32.totalorder %s801, 0
          %p803 = scmp.lt.s32.totalorder %s801, 0
          %p804 = pnand %p803, %p802
          %p805 = pneg %p804
          %s806 = sadd.s32 %s801, 2
          %s807 = scalar_select %p805, %s806, %s801
          %s808 = smul.u32 %s795, 32
          %s809 = sld [smem:[#allocation5 + %s808]]
          %s810 = scalar_lea.hbm %s1, %s809
          %s811 = smul.u32 %s807, 32
          %s812 = scalar_lea.vmem [#allocation2], %s811
          %s813 = scalar_lea.sflag [#allocation3], %s807
          // Predicated region
          $region173: #{tpu_custom_call.1} parent=171 // pred_check
            _
          $region174: #{tpu_custom_call.1} parent=171 // pred_check_branch
            %815 = sbr.rel target = $region176
          $region175: #{tpu_custom_call.1} parent=171 // pred_region
            %816 = sst [smem:[#allocation12]] [#allocation77]
            %817 = sst [smem:[#allocation13]] [#allocation76]
          $region176: #{tpu_custom_call.1} parent=171 // pred_fallthru
            _
          %819 = shalt.err (0)
          %s821 = sshll.u32 %s810, 4
          %s822 = int_to_ptr.hbm [resolvable:$true] %s821
          %s823 = sshll.u32 %s812, 4
          %s824 = int_to_ptr.vmem [resolvable:$true] %s823
          %826 = dma.hbm_to_vmem [thread:$0]  %s822, 16, %s824, %s813
          %s827 = sadd.s32 %s808, 1
          %s828 = sld [smem:[#allocation5 + %s827]]
          %s829 = scalar_lea.hbm %s1, %s828
          %s830 = sadd.s32 1, %s811
          %s831 = scalar_lea.vmem [#allocation2], %s830
          // Predicated region
          $region177: #{tpu_custom_call.1} parent=171 // pred_check
            _
          $region178: #{tpu_custom_call.1} parent=171 // pred_check_branch
            %833 = sbr.rel target = $region180
          $region179: #{tpu_custom_call.1} parent=171 // pred_region
            %834 = sst [smem:[#allocation12]] [#allocation79]
            %835 = sst [smem:[#allocation13]] [#allocation78]
          $region180: #{tpu_custom_call.1} parent=171 // pred_fallthru
            _
          %837 = shalt.err (0)
          %s839 = sshll.u32 %s829, 4
          %s840 = int_to_ptr.hbm [resolvable:$true] %s839
          %s841 = sshll.u32 %s831, 4
          %s842 = int_to_ptr.vmem [resolvable:$true] %s841
          %844 = dma.hbm_to_vmem [thread:$0]  %s840, 16, %s842, %s813
          %s845 = sadd.s32 %s808, 2
          %s846 = sld [smem:[#allocation5 + %s845]]
          %s847 = scalar_lea.hbm %s1, %s846
          %s848 = sadd.s32 2, %s811
          %s849 = scalar_lea.vmem [#allocation2], %s848
          // Predicated region
          $region181: #{tpu_custom_call.1} parent=171 // pred_check
            _
          $region182: #{tpu_custom_call.1} parent=171 // pred_check_branch
            %851 = sbr.rel target = $region184
          $region183: #{tpu_custom_call.1} parent=171 // pred_region
            %852 = sst [smem:[#allocation12]] [#allocation81]
            %853 = sst [smem:[#allocation13]] [#allocation80]
          $region184: #{tpu_custom_call.1} parent=171 // pred_fallthru
            _
          %855 = shalt.err (0)
          %s857 = sshll.u32 %s847, 4
          %s858 = int_to_ptr.hbm [resolvable:$true] %s857
          %s859 = sshll.u32 %s849, 4
          %s860 = int_to_ptr.vmem [resolvable:$true] %s859
          %862 = dma.hbm_to_vmem [thread:$0]  %s858, 16, %s860, %s813
          %s863 = sadd.s32 %s808, 3
          %s864 = sld [smem:[#allocation5 + %s863]]
          %s865 = scalar_lea.hbm %s1, %s864
          %s866 = sadd.s32 3, %s811
          %s867 = scalar_lea.vmem [#allocation2], %s866
          // Predicated region
          $region185: #{tpu_custom_call.1} parent=171 // pred_check
            _
          $region186: #{tpu_custom_call.1} parent=171 // pred_check_branch
            %869 = sbr.rel target = $region188
          $region187: #{tpu_custom_call.1} parent=171 // pred_region
            %870 = sst [smem:[#allocation12]] [#allocation83]
            %871 = sst [smem:[#allocation13]] [#allocation82]
          $region188: #{tpu_custom_call.1} parent=171 // pred_fallthru
            _
          %873 = shalt.err (0)
          %s875 = sshll.u32 %s865, 4
          %s876 = int_to_ptr.hbm [resolvable:$true] %s875
          %s877 = sshll.u32 %s867, 4
          %s878 = int_to_ptr.vmem [resolvable:$true] %s877
          %880 = dma.hbm_to_vmem [thread:$0]  %s876, 16, %s878, %s813
          %s881 = sadd.s32 %s808, 4
          %s882 = sld [smem:[#allocation5 + %s881]]
          %s883 = scalar_lea.hbm %s1, %s882
          %s884 = sadd.s32 4, %s811
          %s885 = scalar_lea.vmem [#allocation2], %s884
          // Predicated region
          $region189: #{tpu_custom_call.1} parent=171 // pred_check
            _
          $region190: #{tpu_custom_call.1} parent=171 // pred_check_branch
            %887 = sbr.rel target = $region192
          $region191: #{tpu_custom_call.1} parent=171 // pred_region
            %888 = sst [smem:[#allocation12]] [#allocation85]
            %889 = sst [smem:[#allocation13]] [#allocation84]
          $region192: #{tpu_custom_call.1} parent=171 // pred_fallthru
            _
          %891 = shalt.err (0)
          %s893 = sshll.u32 %s883, 4
          %s894 = int_to_ptr.hbm [resolvable:$true] %s893
          %s895 = sshll.u32 %s885, 4
          %s896 = int_to_ptr.vmem [resolvable:$true] %s895
          %898 = dma.hbm_to_vmem [thread:$0]  %s894, 16, %s896, %s813
          %s899 = sadd.s32 %s808, 5
          %s900 = sld [smem:[#allocation5 + %s899]]
          %s901 = scalar_lea.hbm %s1, %s900
          %s902 = sadd.s32 5, %s811
          %s903 = scalar_lea.vmem [#allocation2], %s902
          // Predicated region
          $region193: #{tpu_custom_call.1} parent=171 // pred_check
            _
          $region194: #{tpu_custom_call.1} parent=171 // pred_check_branch
            %905 = sbr.rel target = $region196
          $region195: #{tpu_custom_call.1} parent=171 // pred_region
            %906 = sst [smem:[#allocation12]] [#allocation87]
            %907 = sst [smem:[#allocation13]] [#allocation86]
          $region196: #{tpu_custom_call.1} parent=171 // pred_fallthru
            _
          %909 = shalt.err (0)
          %s911 = sshll.u32 %s901, 4
          %s912 = int_to_ptr.hbm [resolvable:$true] %s911
          %s913 = sshll.u32 %s903, 4
          %s914 = int_to_ptr.vmem [resolvable:$true] %s913
          %916 = dma.hbm_to_vmem [thread:$0]  %s912, 16, %s914, %s813
          %s917 = sadd.s32 %s808, 6
          %s918 = sld [smem:[#allocation5 + %s917]]
          %s919 = scalar_lea.hbm %s1, %s918
          %s920 = sadd.s32 6, %s811
          %s921 = scalar_lea.vmem [#allocation2], %s920
          // Predicated region
          $region197: #{tpu_custom_call.1} parent=171 // pred_check
            _
          $region198: #{tpu_custom_call.1} parent=171 // pred_check_branch
            %923 = sbr.rel target = $region200
          $region199: #{tpu_custom_call.1} parent=171 // pred_region
            %924 = sst [smem:[#allocation12]] [#allocation89]
            %925 = sst [smem:[#allocation13]] [#allocation88]
          $region200: #{tpu_custom_call.1} parent=171 // pred_fallthru
            _
          %927 = shalt.err (0)
          %s929 = sshll.u32 %s919, 4
          %s930 = int_to_ptr.hbm [resolvable:$true] %s929
          %s931 = sshll.u32 %s921, 4
          %s932 = int_to_ptr.vmem [resolvable:$true] %s931
          %934 = dma.hbm_to_vmem [thread:$0]  %s930, 16, %s932, %s813
          %s935 = sadd.s32 %s808, 7
          %s936 = sld [smem:[#allocation5 + %s935]]
          %s937 = scalar_lea.hbm %s1, %s936
          %s938 = sadd.s32 7, %s811
          %s939 = scalar_lea.vmem [#allocation2], %s938
          // Predicated region
          $region201: #{tpu_custom_call.1} parent=171 // pred_check
            _
          $region202: #{tpu_custom_call.1} parent=171 // pred_check_branch
            %941 = sbr.rel target = $region204
          $region203: #{tpu_custom_call.1} parent=171 // pred_region
            %942 = sst [smem:[#allocation12]] [#allocation91]
            %943 = sst [smem:[#allocation13]] [#allocation90]
          $region204: #{tpu_custom_call.1} parent=171 // pred_fallthru
            _
          %945 = shalt.err (0)
          %s947 = sshll.u32 %s937, 4
          %s948 = int_to_ptr.hbm [resolvable:$true] %s947
          %s949 = sshll.u32 %s939, 4
          %s950 = int_to_ptr.vmem [resolvable:$true] %s949
          %952 = dma.hbm_to_vmem [thread:$0]  %s948, 16, %s950, %s813
          %s953 = sadd.s32 %s808, 8
          %s954 = sld [smem:[#allocation5 + %s953]]
          %s955 = scalar_lea.hbm %s1, %s954
          %s956 = sadd.s32 8, %s811
          %s957 = scalar_lea.vmem [#allocation2], %s956
          // Predicated region
          $region205: #{tpu_custom_call.1} parent=171 // pred_check
            _
          $region206: #{tpu_custom_call.1} parent=171 // pred_check_branch
            %959 = sbr.rel target = $region208
          $region207: #{tpu_custom_call.1} parent=171 // pred_region
            %960 = sst [smem:[#allocation12]] [#allocation93]
            %961 = sst [smem:[#allocation13]] [#allocation92]
          $region208: #{tpu_custom_call.1} parent=171 // pred_fallthru
            _
          %963 = shalt.err (0)
          %s965 = sshll.u32 %s955, 4
          %s966 = int_to_ptr.hbm [resolvable:$true] %s965
          %s967 = sshll.u32 %s957, 4
          %s968 = int_to_ptr.vmem [resolvable:$true] %s967
          %970 = dma.hbm_to_vmem [thread:$0]  %s966, 16, %s968, %s813
          %s971 = sadd.s32 %s808, 9
          %s972 = sld [smem:[#allocation5 + %s971]]
          %s973 = scalar_lea.hbm %s1, %s972
          %s974 = sadd.s32 9, %s811
          %s975 = scalar_lea.vmem [#allocation2], %s974
          // Predicated region
          $region209: #{tpu_custom_call.1} parent=171 // pred_check
            _
          $region210: #{tpu_custom_call.1} parent=171 // pred_check_branch
            %977 = sbr.rel target = $region212
          $region211: #{tpu_custom_call.1} parent=171 // pred_region
            %978 = sst [smem:[#allocation12]] [#allocation95]
            %979 = sst [smem:[#allocation13]] [#allocation94]
          $region212: #{tpu_custom_call.1} parent=171 // pred_fallthru
            _
          %981 = shalt.err (0)
          %s983 = sshll.u32 %s973, 4
          %s984 = int_to_ptr.hbm [resolvable:$true] %s983
          %s985 = sshll.u32 %s975, 4
          %s986 = int_to_ptr.vmem [resolvable:$true] %s985
          %988 = dma.hbm_to_vmem [thread:$0]  %s984, 16, %s986, %s813
          %s989 = sadd.s32 %s808, 10
          %s990 = sld [smem:[#allocation5 + %s989]]
          %s991 = scalar_lea.hbm %s1, %s990
          %s992 = sadd.s32 10, %s811
          %s993 = scalar_lea.vmem [#allocation2], %s992
          // Predicated region
          $region213: #{tpu_custom_call.1} parent=171 // pred_check
            _
          $region214: #{tpu_custom_call.1} parent=171 // pred_check_branch
            %995 = sbr.rel target = $region216
          $region215: #{tpu_custom_call.1} parent=171 // pred_region
            %996 = sst [smem:[#allocation12]] [#allocation97]
            %997 = sst [smem:[#allocation13]] [#allocation96]
          $region216: #{tpu_custom_call.1} parent=171 // pred_fallthru
            _
          %999 = shalt.err (0)
          %s1001 = sshll.u32 %s991, 4
          %s1002 = int_to_ptr.hbm [resolvable:$true] %s1001
          %s1003 = sshll.u32 %s993, 4
          %s1004 = int_to_ptr.vmem [resolvable:$true] %s1003
          %1006 = dma.hbm_to_vmem [thread:$0]  %s1002, 16, %s1004, %s813
          %s1007 = sadd.s32 %s808, 11
          %s1008 = sld [smem:[#allocation5 + %s1007]]
          %s1009 = scalar_lea.hbm %s1, %s1008
          %s1010 = sadd.s32 11, %s811
          %s1011 = scalar_lea.vmem [#allocation2], %s1010
          // Predicated region
          $region217: #{tpu_custom_call.1} parent=171 // pred_check
            _
          $region218: #{tpu_custom_call.1} parent=171 // pred_check_branch
            %1013 = sbr.rel target = $region220
          $region219: #{tpu_custom_call.1} parent=171 // pred_region
            %1014 = sst [smem:[#allocation12]] [#allocation99]
            %1015 = sst [smem:[#allocation13]] [#allocation98]
          $region220: #{tpu_custom_call.1} parent=171 // pred_fallthru
            _
          %1017 = shalt.err (0)
          %s1019 = sshll.u32 %s1009, 4
          %s1020 = int_to_ptr.hbm [resolvable:$true] %s1019
          %s1021 = sshll.u32 %s1011, 4
          %s1022 = int_to_ptr.vmem [resolvable:$true] %s1021
          %1024 = dma.hbm_to_vmem [thread:$0]  %s1020, 16, %s1022, %s813
          %s1025 = sadd.s32 %s808, 12
          %s1026 = sld [smem:[#allocation5 + %s1025]]
          %s1027 = scalar_lea.hbm %s1, %s1026
          %s1028 = sadd.s32 12, %s811
          %s1029 = scalar_lea.vmem [#allocation2], %s1028
          // Predicated region
          $region221: #{tpu_custom_call.1} parent=171 // pred_check
            _
          $region222: #{tpu_custom_call.1} parent=171 // pred_check_branch
            %1031 = sbr.rel target = $region224
          $region223: #{tpu_custom_call.1} parent=171 // pred_region
            %1032 = sst [smem:[#allocation12]] [#allocation101]
            %1033 = sst [smem:[#allocation13]] [#allocation100]
          $region224: #{tpu_custom_call.1} parent=171 // pred_fallthru
            _
          %1035 = shalt.err (0)
          %s1037 = sshll.u32 %s1027, 4
          %s1038 = int_to_ptr.hbm [resolvable:$true] %s1037
          %s1039 = sshll.u32 %s1029, 4
          %s1040 = int_to_ptr.vmem [resolvable:$true] %s1039
          %1042 = dma.hbm_to_vmem [thread:$0]  %s1038, 16, %s1040, %s813
          %s1043 = sadd.s32 %s808, 13
          %s1044 = sld [smem:[#allocation5 + %s1043]]
          %s1045 = scalar_lea.hbm %s1, %s1044
          %s1046 = sadd.s32 13, %s811
          %s1047 = scalar_lea.vmem [#allocation2], %s1046
          // Predicated region
          $region225: #{tpu_custom_call.1} parent=171 // pred_check
            _
          $region226: #{tpu_custom_call.1} parent=171 // pred_check_branch
            %1049 = sbr.rel target = $region228
          $region227: #{tpu_custom_call.1} parent=171 // pred_region
            %1050 = sst [smem:[#allocation12]] [#allocation103]
            %1051 = sst [smem:[#allocation13]] [#allocation102]
          $region228: #{tpu_custom_call.1} parent=171 // pred_fallthru
            _
          %1053 = shalt.err (0)
          %s1055 = sshll.u32 %s1045, 4
          %s1056 = int_to_ptr.hbm [resolvable:$true] %s1055
          %s1057 = sshll.u32 %s1047, 4
          %s1058 = int_to_ptr.vmem [resolvable:$true] %s1057
          %1060 = dma.hbm_to_vmem [thread:$0]  %s1056, 16, %s1058, %s813
          %s1061 = sadd.s32 %s808, 14
          %s1062 = sld [smem:[#allocation5 + %s1061]]
          %s1063 = scalar_lea.hbm %s1, %s1062
          %s1064 = sadd.s32 14, %s811
          %s1065 = scalar_lea.vmem [#allocation2], %s1064
          // Predicated region
          $region229: #{tpu_custom_call.1} parent=171 // pred_check
            _
          $region230: #{tpu_custom_call.1} parent=171 // pred_check_branch
            %1067 = sbr.rel target = $region232
          $region231: #{tpu_custom_call.1} parent=171 // pred_region
            %1068 = sst [smem:[#allocation12]] [#allocation105]
            %1069 = sst [smem:[#allocation13]] [#allocation104]
          $region232: #{tpu_custom_call.1} parent=171 // pred_fallthru
            _
          %1071 = shalt.err (0)
          %s1073 = sshll.u32 %s1063, 4
          %s1074 = int_to_ptr.hbm [resolvable:$true] %s1073
          %s1075 = sshll.u32 %s1065, 4
          %s1076 = int_to_ptr.vmem [resolvable:$true] %s1075
          %1078 = dma.hbm_to_vmem [thread:$0]  %s1074, 16, %s1076, %s813
          %s1079 = sadd.s32 %s808, 15
          %s1080 = sld [smem:[#allocation5 + %s1079]]
          %s1081 = scalar_lea.hbm %s1, %s1080
          %s1082 = sadd.s32 15, %s811
          %s1083 = scalar_lea.vmem [#allocation2], %s1082
          // Predicated region
          $region233: #{tpu_custom_call.1} parent=171 // pred_check
            _
          $region234: #{tpu_custom_call.1} parent=171 // pred_check_branch
            %1085 = sbr.rel target = $region236
          $region235: #{tpu_custom_call.1} parent=171 // pred_region
            %1086 = sst [smem:[#allocation12]] [#allocation107]
            %1087 = sst [smem:[#allocation13]] [#allocation106]
          $region236: #{tpu_custom_call.1} parent=171 // pred_fallthru
            _
          %1089 = shalt.err (0)
          %s1091 = sshll.u32 %s1081, 4
          %s1092 = int_to_ptr.hbm [resolvable:$true] %s1091
          %s1093 = sshll.u32 %s1083, 4
          %s1094 = int_to_ptr.vmem [resolvable:$true] %s1093
          %1096 = dma.hbm_to_vmem [thread:$0]  %s1092, 16, %s1094, %s813
          %s1097 = sadd.s32 %s808, 16
          %s1098 = sld [smem:[#allocation5 + %s1097]]
          %s1099 = scalar_lea.hbm %s1, %s1098
          %s1100 = sadd.s32 16, %s811
          %s1101 = scalar_lea.vmem [#allocation2], %s1100
          // Predicated region
          $region237: #{tpu_custom_call.1} parent=171 // pred_check
            _
          $region238: #{tpu_custom_call.1} parent=171 // pred_check_branch
            %1103 = sbr.rel target = $region240
          $region239: #{tpu_custom_call.1} parent=171 // pred_region
            %1104 = sst [smem:[#allocation12]] [#allocation109]
            %1105 = sst [smem:[#allocation13]] [#allocation108]
          $region240: #{tpu_custom_call.1} parent=171 // pred_fallthru
            _
          %1107 = shalt.err (0)
          %s1109 = sshll.u32 %s1099, 4
          %s1110 = int_to_ptr.hbm [resolvable:$true] %s1109
          %s1111 = sshll.u32 %s1101, 4
          %s1112 = int_to_ptr.vmem [resolvable:$true] %s1111
          %1114 = dma.hbm_to_vmem [thread:$0]  %s1110, 16, %s1112, %s813
          %s1115 = sadd.s32 %s808, 17
          %s1116 = sld [smem:[#allocation5 + %s1115]]
          %s1117 = scalar_lea.hbm %s1, %s1116
          %s1118 = sadd.s32 17, %s811
          %s1119 = scalar_lea.vmem [#allocation2], %s1118
          // Predicated region
          $region241: #{tpu_custom_call.1} parent=171 // pred_check
            _
          $region242: #{tpu_custom_call.1} parent=171 // pred_check_branch
            %1121 = sbr.rel target = $region244
          $region243: #{tpu_custom_call.1} parent=171 // pred_region
            %1122 = sst [smem:[#allocation12]] [#allocation111]
            %1123 = sst [smem:[#allocation13]] [#allocation110]
          $region244: #{tpu_custom_call.1} parent=171 // pred_fallthru
            _
          %1125 = shalt.err (0)
          %s1127 = sshll.u32 %s1117, 4
          %s1128 = int_to_ptr.hbm [resolvable:$true] %s1127
          %s1129 = sshll.u32 %s1119, 4
          %s1130 = int_to_ptr.vmem [resolvable:$true] %s1129
          %1132 = dma.hbm_to_vmem [thread:$0]  %s1128, 16, %s1130, %s813
          %s1133 = sadd.s32 %s808, 18
          %s1134 = sld [smem:[#allocation5 + %s1133]]
          %s1135 = scalar_lea.hbm %s1, %s1134
          %s1136 = sadd.s32 18, %s811
          %s1137 = scalar_lea.vmem [#allocation2], %s1136
          // Predicated region
          $region245: #{tpu_custom_call.1} parent=171 // pred_check
            _
          $region246: #{tpu_custom_call.1} parent=171 // pred_check_branch
            %1139 = sbr.rel target = $region248
          $region247: #{tpu_custom_call.1} parent=171 // pred_region
            %1140 = sst [smem:[#allocation12]] [#allocation113]
            %1141 = sst [smem:[#allocation13]] [#allocation112]
          $region248: #{tpu_custom_call.1} parent=171 // pred_fallthru
            _
          %1143 = shalt.err (0)
          %s1145 = sshll.u32 %s1135, 4
          %s1146 = int_to_ptr.hbm [resolvable:$true] %s1145
          %s1147 = sshll.u32 %s1137, 4
          %s1148 = int_to_ptr.vmem [resolvable:$true] %s1147
          %1150 = dma.hbm_to_vmem [thread:$0]  %s1146, 16, %s1148, %s813
          %s1151 = sadd.s32 %s808, 19
          %s1152 = sld [smem:[#allocation5 + %s1151]]
          %s1153 = scalar_lea.hbm %s1, %s1152
          %s1154 = sadd.s32 19, %s811
          %s1155 = scalar_lea.vmem [#allocation2], %s1154
          // Predicated region
          $region249: #{tpu_custom_call.1} parent=171 // pred_check
            _
          $region250: #{tpu_custom_call.1} parent=171 // pred_check_branch
            %1157 = sbr.rel target = $region252
          $region251: #{tpu_custom_call.1} parent=171 // pred_region
            %1158 = sst [smem:[#allocation12]] [#allocation115]
            %1159 = sst [smem:[#allocation13]] [#allocation114]
          $region252: #{tpu_custom_call.1} parent=171 // pred_fallthru
            _
          %1161 = shalt.err (0)
          %s1163 = sshll.u32 %s1153, 4
          %s1164 = int_to_ptr.hbm [resolvable:$true] %s1163
          %s1165 = sshll.u32 %s1155, 4
          %s1166 = int_to_ptr.vmem [resolvable:$true] %s1165
          %1168 = dma.hbm_to_vmem [thread:$0]  %s1164, 16, %s1166, %s813
          %s1169 = sadd.s32 %s808, 20
          %s1170 = sld [smem:[#allocation5 + %s1169]]
          %s1171 = scalar_lea.hbm %s1, %s1170
          %s1172 = sadd.s32 20, %s811
          %s1173 = scalar_lea.vmem [#allocation2], %s1172
          // Predicated region
          $region253: #{tpu_custom_call.1} parent=171 // pred_check
            _
          $region254: #{tpu_custom_call.1} parent=171 // pred_check_branch
            %1175 = sbr.rel target = $region256
          $region255: #{tpu_custom_call.1} parent=171 // pred_region
            %1176 = sst [smem:[#allocation12]] [#allocation117]
            %1177 = sst [smem:[#allocation13]] [#allocation116]
          $region256: #{tpu_custom_call.1} parent=171 // pred_fallthru
            _
          %1179 = shalt.err (0)
          %s1181 = sshll.u32 %s1171, 4
          %s1182 = int_to_ptr.hbm [resolvable:$true] %s1181
          %s1183 = sshll.u32 %s1173, 4
          %s1184 = int_to_ptr.vmem [resolvable:$true] %s1183
          %1186 = dma.hbm_to_vmem [thread:$0]  %s1182, 16, %s1184, %s813
          %s1187 = sadd.s32 %s808, 21
          %s1188 = sld [smem:[#allocation5 + %s1187]]
          %s1189 = scalar_lea.hbm %s1, %s1188
          %s1190 = sadd.s32 21, %s811
          %s1191 = scalar_lea.vmem [#allocation2], %s1190
          // Predicated region
          $region257: #{tpu_custom_call.1} parent=171 // pred_check
            _
          $region258: #{tpu_custom_call.1} parent=171 // pred_check_branch
            %1193 = sbr.rel target = $region260
          $region259: #{tpu_custom_call.1} parent=171 // pred_region
            %1194 = sst [smem:[#allocation12]] [#allocation119]
            %1195 = sst [smem:[#allocation13]] [#allocation118]
          $region260: #{tpu_custom_call.1} parent=171 // pred_fallthru
            _
          %1197 = shalt.err (0)
          %s1199 = sshll.u32 %s1189, 4
          %s1200 = int_to_ptr.hbm [resolvable:$true] %s1199
          %s1201 = sshll.u32 %s1191, 4
          %s1202 = int_to_ptr.vmem [resolvable:$true] %s1201
          %1204 = dma.hbm_to_vmem [thread:$0]  %s1200, 16, %s1202, %s813
          %s1205 = sadd.s32 %s808, 22
          %s1206 = sld [smem:[#allocation5 + %s1205]]
          %s1207 = scalar_lea.hbm %s1, %s1206
          %s1208 = sadd.s32 22, %s811
          %s1209 = scalar_lea.vmem [#allocation2], %s1208
          // Predicated region
          $region261: #{tpu_custom_call.1} parent=171 // pred_check
            _
          $region262: #{tpu_custom_call.1} parent=171 // pred_check_branch
            %1211 = sbr.rel target = $region264
          $region263: #{tpu_custom_call.1} parent=171 // pred_region
            %1212 = sst [smem:[#allocation12]] [#allocation121]
            %1213 = sst [smem:[#allocation13]] [#allocation120]
          $region264: #{tpu_custom_call.1} parent=171 // pred_fallthru
            _
          %1215 = shalt.err (0)
          %s1217 = sshll.u32 %s1207, 4
          %s1218 = int_to_ptr.hbm [resolvable:$true] %s1217
          %s1219 = sshll.u32 %s1209, 4
          %s1220 = int_to_ptr.vmem [resolvable:$true] %s1219
          %1222 = dma.hbm_to_vmem [thread:$0]  %s1218, 16, %s1220, %s813
          %s1223 = sadd.s32 %s808, 23
          %s1224 = sld [smem:[#allocation5 + %s1223]]
          %s1225 = scalar_lea.hbm %s1, %s1224
          %s1226 = sadd.s32 23, %s811
          %s1227 = scalar_lea.vmem [#allocation2], %s1226
          // Predicated region
          $region265: #{tpu_custom_call.1} parent=171 // pred_check
            _
          $region266: #{tpu_custom_call.1} parent=171 // pred_check_branch
            %1229 = sbr.rel target = $region268
          $region267: #{tpu_custom_call.1} parent=171 // pred_region
            %1230 = sst [smem:[#allocation12]] [#allocation123]
            %1231 = sst [smem:[#allocation13]] [#allocation122]
          $region268: #{tpu_custom_call.1} parent=171 // pred_fallthru
            _
          %1233 = shalt.err (0)
          %s1235 = sshll.u32 %s1225, 4
          %s1236 = int_to_ptr.hbm [resolvable:$true] %s1235
          %s1237 = sshll.u32 %s1227, 4
          %s1238 = int_to_ptr.vmem [resolvable:$true] %s1237
          %1240 = dma.hbm_to_vmem [thread:$0]  %s1236, 16, %s1238, %s813
          %s1241 = sadd.s32 %s808, 24
          %s1242 = sld [smem:[#allocation5 + %s1241]]
          %s1243 = scalar_lea.hbm %s1, %s1242
          %s1244 = sadd.s32 24, %s811
          %s1245 = scalar_lea.vmem [#allocation2], %s1244
          // Predicated region
          $region269: #{tpu_custom_call.1} parent=171 // pred_check
            _
          $region270: #{tpu_custom_call.1} parent=171 // pred_check_branch
            %1247 = sbr.rel target = $region272
          $region271: #{tpu_custom_call.1} parent=171 // pred_region
            %1248 = sst [smem:[#allocation12]] [#allocation125]
            %1249 = sst [smem:[#allocation13]] [#allocation124]
          $region272: #{tpu_custom_call.1} parent=171 // pred_fallthru
            _
          %1251 = shalt.err (0)
          %s1253 = sshll.u32 %s1243, 4
          %s1254 = int_to_ptr.hbm [resolvable:$true] %s1253
          %s1255 = sshll.u32 %s1245, 4
          %s1256 = int_to_ptr.vmem [resolvable:$true] %s1255
          %1258 = dma.hbm_to_vmem [thread:$0]  %s1254, 16, %s1256, %s813
          %s1259 = sadd.s32 %s808, 25
          %s1260 = sld [smem:[#allocation5 + %s1259]]
          %s1261 = scalar_lea.hbm %s1, %s1260
          %s1262 = sadd.s32 25, %s811
          %s1263 = scalar_lea.vmem [#allocation2], %s1262
          // Predicated region
          $region273: #{tpu_custom_call.1} parent=171 // pred_check
            _
          $region274: #{tpu_custom_call.1} parent=171 // pred_check_branch
            %1265 = sbr.rel target = $region276
          $region275: #{tpu_custom_call.1} parent=171 // pred_region
            %1266 = sst [smem:[#allocation12]] [#allocation127]
            %1267 = sst [smem:[#allocation13]] [#allocation126]
          $region276: #{tpu_custom_call.1} parent=171 // pred_fallthru
            _
          %1269 = shalt.err (0)
          %s1271 = sshll.u32 %s1261, 4
          %s1272 = int_to_ptr.hbm [resolvable:$true] %s1271
          %s1273 = sshll.u32 %s1263, 4
          %s1274 = int_to_ptr.vmem [resolvable:$true] %s1273
          %1276 = dma.hbm_to_vmem [thread:$0]  %s1272, 16, %s1274, %s813
          %s1277 = sadd.s32 %s808, 26
          %s1278 = sld [smem:[#allocation5 + %s1277]]
          %s1279 = scalar_lea.hbm %s1, %s1278
          %s1280 = sadd.s32 26, %s811
          %s1281 = scalar_lea.vmem [#allocation2], %s1280
          // Predicated region
          $region277: #{tpu_custom_call.1} parent=171 // pred_check
            _
          $region278: #{tpu_custom_call.1} parent=171 // pred_check_branch
            %1283 = sbr.rel target = $region280
          $region279: #{tpu_custom_call.1} parent=171 // pred_region
            %1284 = sst [smem:[#allocation12]] [#allocation129]
            %1285 = sst [smem:[#allocation13]] [#allocation128]
          $region280: #{tpu_custom_call.1} parent=171 // pred_fallthru
            _
          %1287 = shalt.err (0)
          %s1289 = sshll.u32 %s1279, 4
          %s1290 = int_to_ptr.hbm [resolvable:$true] %s1289
          %s1291 = sshll.u32 %s1281, 4
          %s1292 = int_to_ptr.vmem [resolvable:$true] %s1291
          %1294 = dma.hbm_to_vmem [thread:$0]  %s1290, 16, %s1292, %s813
          %s1295 = sadd.s32 %s808, 27
          %s1296 = sld [smem:[#allocation5 + %s1295]]
          %s1297 = scalar_lea.hbm %s1, %s1296
          %s1298 = sadd.s32 27, %s811
          %s1299 = scalar_lea.vmem [#allocation2], %s1298
          // Predicated region
          $region281: #{tpu_custom_call.1} parent=171 // pred_check
            _
          $region282: #{tpu_custom_call.1} parent=171 // pred_check_branch
            %1301 = sbr.rel target = $region284
          $region283: #{tpu_custom_call.1} parent=171 // pred_region
            %1302 = sst [smem:[#allocation12]] [#allocation131]
            %1303 = sst [smem:[#allocation13]] [#allocation130]
          $region284: #{tpu_custom_call.1} parent=171 // pred_fallthru
            _
          %1305 = shalt.err (0)
          %s1307 = sshll.u32 %s1297, 4
          %s1308 = int_to_ptr.hbm [resolvable:$true] %s1307
          %s1309 = sshll.u32 %s1299, 4
          %s1310 = int_to_ptr.vmem [resolvable:$true] %s1309
          %1312 = dma.hbm_to_vmem [thread:$0]  %s1308, 16, %s1310, %s813
          %s1313 = sadd.s32 %s808, 28
          %s1314 = sld [smem:[#allocation5 + %s1313]]
          %s1315 = scalar_lea.hbm %s1, %s1314
          %s1316 = sadd.s32 28, %s811
          %s1317 = scalar_lea.vmem [#allocation2], %s1316
          // Predicated region
          $region285: #{tpu_custom_call.1} parent=171 // pred_check
            _
          $region286: #{tpu_custom_call.1} parent=171 // pred_check_branch
            %1319 = sbr.rel target = $region288
          $region287: #{tpu_custom_call.1} parent=171 // pred_region
            %1320 = sst [smem:[#allocation12]] [#allocation133]
            %1321 = sst [smem:[#allocation13]] [#allocation132]
          $region288: #{tpu_custom_call.1} parent=171 // pred_fallthru
            _
          %1323 = shalt.err (0)
          %s1325 = sshll.u32 %s1315, 4
          %s1326 = int_to_ptr.hbm [resolvable:$true] %s1325
          %s1327 = sshll.u32 %s1317, 4
          %s1328 = int_to_ptr.vmem [resolvable:$true] %s1327
          %1330 = dma.hbm_to_vmem [thread:$0]  %s1326, 16, %s1328, %s813
          %s1331 = sadd.s32 %s808, 29
          %s1332 = sld [smem:[#allocation5 + %s1331]]
          %s1333 = scalar_lea.hbm %s1, %s1332
          %s1334 = sadd.s32 29, %s811
          %s1335 = scalar_lea.vmem [#allocation2], %s1334
          // Predicated region
          $region289: #{tpu_custom_call.1} parent=171 // pred_check
            _
          $region290: #{tpu_custom_call.1} parent=171 // pred_check_branch
            %1337 = sbr.rel target = $region292
          $region291: #{tpu_custom_call.1} parent=171 // pred_region
            %1338 = sst [smem:[#allocation12]] [#allocation135]
            %1339 = sst [smem:[#allocation13]] [#allocation134]
          $region292: #{tpu_custom_call.1} parent=171 // pred_fallthru
            _
          %1341 = shalt.err (0)
          %s1343 = sshll.u32 %s1333, 4
          %s1344 = int_to_ptr.hbm [resolvable:$true] %s1343
          %s1345 = sshll.u32 %s1335, 4
          %s1346 = int_to_ptr.vmem [resolvable:$true] %s1345
          %1348 = dma.hbm_to_vmem [thread:$0]  %s1344, 16, %s1346, %s813
          %s1349 = sadd.s32 %s808, 30
          %s1350 = sld [smem:[#allocation5 + %s1349]]
          %s1351 = scalar_lea.hbm %s1, %s1350
          %s1352 = sadd.s32 30, %s811
          %s1353 = scalar_lea.vmem [#allocation2], %s1352
          // Predicated region
          $region293: #{tpu_custom_call.1} parent=171 // pred_check
            _
          $region294: #{tpu_custom_call.1} parent=171 // pred_check_branch
            %1355 = sbr.rel target = $region296
          $region295: #{tpu_custom_call.1} parent=171 // pred_region
            %1356 = sst [smem:[#allocation12]] [#allocation137]
            %1357 = sst [smem:[#allocation13]] [#allocation136]
          $region296: #{tpu_custom_call.1} parent=171 // pred_fallthru
            _
          %1359 = shalt.err (0)
          %s1361 = sshll.u32 %s1351, 4
          %s1362 = int_to_ptr.hbm [resolvable:$true] %s1361
          %s1363 = sshll.u32 %s1353, 4
          %s1364 = int_to_ptr.vmem [resolvable:$true] %s1363
          %1366 = dma.hbm_to_vmem [thread:$0]  %s1362, 16, %s1364, %s813
          %s1367 = sadd.s32 %s808, 31
          %s1368 = sld [smem:[#allocation5 + %s1367]]
          %s1369 = scalar_lea.hbm %s1, %s1368
          %s1370 = sadd.s32 31, %s811
          %s1371 = scalar_lea.vmem [#allocation2], %s1370
          // Predicated region
          $region297: #{tpu_custom_call.1} parent=171 // pred_check
            _
          $region298: #{tpu_custom_call.1} parent=171 // pred_check_branch
            %1373 = sbr.rel target = $region300
          $region299: #{tpu_custom_call.1} parent=171 // pred_region
            %1374 = sst [smem:[#allocation12]] [#allocation139]
            %1375 = sst [smem:[#allocation13]] [#allocation138]
          $region300: #{tpu_custom_call.1} parent=171 // pred_fallthru
            _
          %1377 = shalt.err (0)
          %s1379 = sshll.u32 %s1369, 4
          %s1380 = int_to_ptr.hbm [resolvable:$true] %s1379
          %s1381 = sshll.u32 %s1371, 4
          %s1382 = int_to_ptr.vmem [resolvable:$true] %s1381
          %1384 = dma.hbm_to_vmem [thread:$0]  %s1380, 16, %s1382, %s813
        $region172: #{tpu_custom_call.1} parent=31 // pred_fallthru
          _
        %s1385 = smul.u32 %s208, 32
        %s1386 = scalar_lea.vmem [#allocation2], %s1385
        %s1387 = scalar_lea.sflag [#allocation3], %s208
        %s1388 = smul.u32 32, 1
        %s1389 = sshll.u32 %s1388, 4
        %1390 = dma.done %s1387, %s1389
        %v1391 = vld [vmem:[%s1386] sm:$0xff]
        %v1392 = vld [vmem:[%s1386 + $0x8] sm:$0xff]
        %v1393 = vld [vmem:[%s1386 + $0x10] sm:$0xff]
        %v1394 = vld [vmem:[%s1386 + $0x18] sm:$0xff]
        %v1395 = vld [vmem:[#allocation6] sm:$0xff]
        %v1396 = vld [vmem:[#allocation6 + $0x8] sm:$0xff]
        %v1397 = vld [vmem:[#allocation6 + $0x10] sm:$0xff]
        %v1398 = vld [vmem:[#allocation6 + $0x18] sm:$0xff]
        %v1399 = vadd.f32 %v1391, %v1395
        %v1400 = vadd.f32 %v1392, %v1396
        %v1401 = vadd.f32 %v1393, %v1397
        %v1402 = vadd.f32 %v1394, %v1398
        %1403 = vadd.xlane.f32.xlu0 %v1399
        %v1404 = vpop.xlane.xlu0 %1403
        %1405 = vadd.xlane.f32.xlu0 %v1400
        %v1406 = vpop.xlane.xlu0 %1405
        %1407 = vadd.xlane.f32.xlu0 %v1401
        %v1408 = vpop.xlane.xlu0 %1407
        %1409 = vadd.xlane.f32.xlu0 %v1402
        %v1410 = vpop.xlane.xlu0 %1409
        %v1411 = vmul.f32 %v1404, 0.0078125
        %v1412 = vmul.f32 %v1406, 0.0078125
        %v1413 = vmul.f32 %v1408, 0.0078125
        %v1414 = vmul.f32 %v1410, 0.0078125
        %v1415 = vsub.f32 %v1399, %v1411
        %v1416 = vsub.f32 %v1400, %v1412
        %v1417 = vsub.f32 %v1401, %v1413
        %v1418 = vsub.f32 %v1402, %v1414
        %v1419 = vmul.f32 %v1415, %v1415
        %v1420 = vmul.f32 %v1416, %v1416
        %v1421 = vmul.f32 %v1417, %v1417
        %v1422 = vmul.f32 %v1418, %v1418
        %1423 = vadd.xlane.f32.xlu0 %v1419
        %v1424 = vpop.xlane.xlu0 %1423
        %1425 = vadd.xlane.f32.xlu0 %v1420
        %v1426 = vpop.xlane.xlu0 %1425
        %1427 = vadd.xlane.f32.xlu0 %v1421
        %v1428 = vpop.xlane.xlu0 %1427
        %1429 = vadd.xlane.f32.xlu0 %v1422
        %v1430 = vpop.xlane.xlu0 %1429
        %v1431 = vmul.f32 %v1424, 0.0078125
        %v1432 = vmul.f32 %v1426, 0.0078125
        %v1433 = vmul.f32 %v1428, 0.0078125
        %v1434 = vmul.f32 %v1430, 0.0078125
        %v1435 = vadd.f32 %v1431, 1e-05
        %v1436 = vadd.f32 %v1432, 1e-05
        %v1437 = vadd.f32 %v1433, 1e-05
        %v1438 = vadd.f32 %v1434, 1e-05
        %v1439 = vrsqrt.pop %v1435
        %v1440 = vmul.f32 %v1439, %v1435
        %v1441 = vmul.f32 %v1440, %v1439
        %v1442 = vmul.f32 0.5, %v1441
        %v1443 = vsub.f32 1.5, %v1442
        %v1444 = vmul.f32 %v1439, %v1443
        %vm1445 = vweird.f32 %v1435
        %vm1446 = vweird.f32 %v1439
        %vm1447 = vmor %vm1445, %vm1446
        %v1448 = vsel %vm1447, %v1439, %v1444
        %v1449 = vrsqrt.pop %v1436
        %v1450 = vmul.f32 %v1449, %v1436
        %v1451 = vmul.f32 %v1450, %v1449
        %v1452 = vmul.f32 0.5, %v1451
        %v1453 = vsub.f32 1.5, %v1452
        %v1454 = vmul.f32 %v1449, %v1453
        %vm1455 = vweird.f32 %v1436
        %vm1456 = vweird.f32 %v1449
        %vm1457 = vmor %vm1455, %vm1456
        %v1458 = vsel %vm1457, %v1449, %v1454
        %v1459 = vrsqrt.pop %v1437
        %v1460 = vmul.f32 %v1459, %v1437
        %v1461 = vmul.f32 %v1460, %v1459
        %v1462 = vmul.f32 0.5, %v1461
        %v1463 = vsub.f32 1.5, %v1462
        %v1464 = vmul.f32 %v1459, %v1463
        %vm1465 = vweird.f32 %v1437
        %vm1466 = vweird.f32 %v1459
        %vm1467 = vmor %vm1465, %vm1466
        %v1468 = vsel %vm1467, %v1459, %v1464
        %v1469 = vrsqrt.pop %v1438
        %v1470 = vmul.f32 %v1469, %v1438
        %v1471 = vmul.f32 %v1470, %v1469
        %v1472 = vmul.f32 0.5, %v1471
        %v1473 = vsub.f32 1.5, %v1472
        %v1474 = vmul.f32 %v1469, %v1473
        %vm1475 = vweird.f32 %v1438
        %vm1476 = vweird.f32 %v1469
        %vm1477 = vmor %vm1475, %vm1476
        %v1478 = vsel %vm1477, %v1469, %v1474
        %v1479 = vmul.f32 %v1415, %v1448
        %v1480 = vmul.f32 %v1416, %v1458
        %v1481 = vmul.f32 %v1417, %v1468
        %v1482 = vmul.f32 %v1418, %v1478
        %v1483 = vld [vmem:[%s3] sm:$0x1]
        %v1485 = vperm.slane %v1483, 0
        %v1487 = vmul.f32 %v1479, %v1485
        %v1488 = vmul.f32 %v1480, %v1485
        %v1489 = vmul.f32 %v1481, %v1485
        %v1490 = vmul.f32 %v1482, %v1485
        %v1491 = vld [vmem:[%s4] sm:$0x1]
        %v1493 = vperm.slane %v1491, 0
        %v1495 = vadd.f32 %v1487, %v1493
        %v1496 = vadd.f32 %v1488, %v1493
        %v1497 = vadd.f32 %v1489, %v1493
        %v1498 = vadd.f32 %v1490, %v1493
        %1499 = vst [vmem:[%s191] sm:$0xff] %v1495
        %1500 = vst [vmem:[%s191 + $0x8] sm:$0xff] %v1496
        %1501 = vst [vmem:[%s191 + $0x10] sm:$0xff] %v1497
        %1502 = vst [vmem:[%s191 + $0x18] sm:$0xff] %v1498
        %s1503 = sand.u32 %s115, 1
        %s1504 = scalar_lea.sflag [#allocation8], %s1503
        %s1505 = sand.u32 %s115, 1
        %s1506 = smul.addr %s1505, 32
        %s1507 = scalar_lea.vmem [#allocation9], %s1506
        // Predicated region
        $region301: #{tpu_custom_call.1} parent=31 // pred_check
          %p1508 = pneg %p125
        $region302: #{tpu_custom_call.1} parent=31 // pred_check_branch
          %1510 = sbr.rel (%p1508) target = $region304
        $region303: #{tpu_custom_call.1} parent=31 // pred_region
          %s1511 = smul.u32 %s32, 2
          %s1512 = sadd.s32 %s1511, %s33
          %s1513 = smul.u32 4, %s1512
          %1515 = vsyncadd %s1504, 0
          %s1516 = smul.addr %s1513, 8
          %s1517 = scalar_lea.hbm %s5, %s1516
          %s1518 = sshll.u32 %s1507, 4
          %s1519 = int_to_ptr.vmem [resolvable:$true] %s1518
          %s1520 = sshll.u32 %s1517, 4
          %s1521 = int_to_ptr.hbm [resolvable:$true] %s1520
          %1526 = dma.vmem_to_hbm [thread:$0]  %s1519, 512, %s1521, %s1504, 128, 128, 8
        $region304: #{tpu_custom_call.1} parent=31 // pred_fallthru
          _
      $region32: #{tpu_custom_call.1} parent=5 // pred_fallthru
        _
      %p1527 = scmp.le.s32.totalorder 2, %s23
      // Predicated region
      $region305: #{tpu_custom_call.1} parent=5 // pred_check
        %p1528 = pneg %p1527
      $region306: #{tpu_custom_call.1} parent=5 // pred_check_branch
        %1530 = sbr.rel (%p1528) target = $region308
      $region307: #{tpu_custom_call.1} parent=5 // pred_region
        %s1531 = ssub.s32 %s23, 2
        // Predicated region
        $region309: #{tpu_custom_call.1} parent=307 // pred_check
          %p1532 = pneg %p131
        $region310: #{tpu_custom_call.1} parent=307 // pred_check_branch
          %1534 = sbr.rel (%p1532) target = $region312
        $region311: #{tpu_custom_call.1} parent=307 // pred_region
          %s1535 = sand.u32 %s116, 1
          %s1536 = scalar_lea.sflag [#allocation8], %s1535
          %s1537 = sand.u32 %s116, 1
          %s1538 = smul.addr %s1537, 32
          %s1539 = scalar_lea.vmem [#allocation9], %s1538
          %1541 = dma.done %s1536, 512
        $region312: #{tpu_custom_call.1} parent=307 // pred_fallthru
          _
      $region308: #{tpu_custom_call.1} parent=5 // pred_fallthru
        _
    $region6: #{tpu_custom_call.1} parent=1 // loop_footer
      %s27 = sadd.s32 1, %s23
    $region7: #{tpu_custom_call.1} parent=1 // loop_footer_branch
      %22 = sbr.rel target = $region3
    $region8: #{tpu_custom_call.1} parent=1 // loop_exit
      _
    %1542 = vsyncpa [#allocation7], 1
    %s1543 = scalar_lea.sflag [#allocation7], 1
    %1544 = vsyncpa %s1543, 1
    %1545 = vsyncpa [#allocation8], 1
    %s1546 = scalar_lea.sflag [#allocation8], 1
    %1547 = vsyncpa %s1546, 1
  %1548 = vsyncmov [#allocation3]
  %s1549 = vpop.sfrf %1548
  %p1550 = scmp.eq.s32.totalorder %s1549, 0
  %p1551 = pneg %p1550
  %1553 = shalt.err (%p1551)
  %s1554 = scalar_lea.sflag [#allocation3], 1
  %1555 = vsyncmov %s1554
  %s1556 = vpop.sfrf %1555
  %p1557 = scmp.eq.s32.totalorder %s1556, 0
  %p1558 = pneg %p1557
  %1560 = shalt.err (%p1558)

</llo_original>
